<compile_context>
chip_gen: v7x
topology: tpu7x:2x2x1
jax: 0.10.0
libtpu: 0.0.40
codegen_flags: <defaults>
</compile_context>

<pallas_src>
import functools

import jax
import jax.numpy as jnp
from jax import lax
from jax.experimental import pallas as pl
from jax.experimental.pallas import tpu as pltpu

LANE = 128           # lane-dense channel padding
TM = 256             # row-tile cap for residual-stage kernels
TM_PARENT = 64       # parent-row-tile cap for the fused upsample+resize kernel

# In-kernel row-gather keeps the whole activation array VMEM/vreg resident; cap its size.
# TODO(synk): beyond this cap a chunked-residency / DMA-gather variant is needed; we fall
#             back to the XLA-level im2col (HBM round trip) instead.
_GATHER_RESIDENCY_BYTES = 8 * 1024 * 1024

KERNEL2_OFFSETS = [(a, b, c) for a in (0, 1) for b in (0, 1) for c in (0, 1)]               # 8
KERNEL3_OFFSETS = [(a, b, c) for a in (-1, 0, 1) for b in (-1, 0, 1) for c in (-1, 0, 1)]   # 27


# ------------------------------------------------------------------ small helpers
def _round_up(n, m):
    return (n + m - 1) // m * m


def _pad_last(a, width):
    pad = width - a.shape[-1]
    if pad <= 0:
        return a
    cfg = [(0, 0)] * (a.ndim - 1) + [(0, pad)]
    return jnp.pad(a, cfg)


def _pad_last2(a, rows, cols):
    pr = rows - a.shape[-2]
    pc = cols - a.shape[-1]
    cfg = [(0, 0)] * (a.ndim - 2) + [(0, max(pr, 0)), (0, max(pc, 0))]
    return jnp.pad(a, cfg)


def bn_affine(bn):
    gamma, beta, mean, var = bn
    s = gamma / jnp.sqrt(var + 1e-5)
    t = beta - mean * s
    return s, t


@functools.lru_cache(maxsize=None)
def _compiler_params():
    # vmem budget per TPU generation: v7x has 64 MiB physical VMEM, v5e/v6e 128 MiB.
    kind = ""
    try:
        kind = jax.devices()[0].device_kind.lower()
    except Exception:
        pass
    if "v7" in kind:
        vmem = 40 * 1024 * 1024
    elif "v5" in kind or "v6" in kind:
        vmem = 64 * 1024 * 1024
    else:
        vmem = 32 * 1024 * 1024
    return pltpu.CompilerParams(dimension_semantics=("parallel",),
                                vmem_limit_bytes=vmem)


def _pick_tile(n_rows, cap):
    # keep >= ~8 grid steps so the BlockSpec double-buffer pipeline has depth on a single
    # TensorCore (v5e/v6e) and both v7x TensorCores get >= 4 steps each.
    t = _round_up(max(1, pl.cdiv(n_rows, 8)), 8)
    t = max(8, min(cap, t))
    return int(min(t, _round_up(n_rows, 8)))


# ------------------------------------------------------------------ fused upsample + resize
def _up_resize_kernel(x_ref, coord_ref, short_ref, wup_ref, bup_ref, wfeat_ref,
                      wcoord_ref, brs_ref, o_ref, *, bounds):
    # For each of the 8 children of the parent tile:
    #   generative deconv tap (BN+ReLU folded) -> prune mask -> 1x1 resize conv
    #   (feature part bf16 on MXU, coord part f32) -> + shortcut.
    lo0, hi0, lo1, hi1, lo2, hi2 = bounds
    x = x_ref[...]                                   # [tm, in_c] bf16
    wfeat = wfeat_ref[...]
    wcoord = wcoord_ref[...]
    bup = bup_ref[...]
    brs = brs_ref[...]
    for c in range(8):
        up = jnp.dot(x, wup_ref[c], preferred_element_type=jnp.float32)
        up = jnp.maximum(up + bup, 0.0)              # BN + ReLU folded
        cf = coord_ref[c]                            # [tm, 8] f32, lanes 0..2 = xyz/stride
        c0 = cf[:, 0:1]
        c1 = cf[:, 1:2]
        c2 = cf[:, 2:3]
        keep = ((c0 >= lo0) & (c0 <= hi0) & (c1 >= lo1) & (c1 <= hi1)
                & (c2 >= lo2) & (c2 <= hi2)).astype(jnp.float32)
        up = up * keep                               # MinkowskiPruning -> mask
        y = jnp.dot(up.astype(jnp.bfloat16), wfeat, preferred_element_type=jnp.float32)
        y = y + jnp.dot(cf, wcoord, preferred_element_type=jnp.float32)  # coords kept in f32
        y = y + brs + short_ref[c].astype(jnp.float32)
        o_ref[c] = y.astype(o_ref.dtype)


def up_resize_call(x_feats, coordf, shortcut3, prep, bounds, *, tm):
    N, in_c = x_feats.shape
    CP = prep["CP"]
    grid = (pl.cdiv(N, tm),)
    kern = functools.partial(_up_resize_kernel, bounds=bounds)
    return pl.pallas_call(
        kern,
        out_shape=jax.ShapeDtypeStruct((8, N, CP), jnp.bfloat16),
        grid=grid,
        in_specs=[
            pl.BlockSpec((tm, in_c), lambda i: (i, 0)),
            pl.BlockSpec((8, tm, 8), lambda i: (0, i, 0)),
            pl.BlockSpec((8, tm, CP), lambda i: (0, i, 0)),
            pl.BlockSpec((8, in_c, CP), lambda i: (0, 0, 0)),
            pl.BlockSpec((1, CP), lambda i: (0, 0)),
            pl.BlockSpec((CP, CP), lambda i: (0, 0)),
            pl.BlockSpec((8, CP), lambda i: (0, 0)),
            pl.BlockSpec((1, CP), lambda i: (0, 0)),
        ],
        out_specs=pl.BlockSpec((8, tm, CP), lambda i: (0, i, 0)),
        compiler_params=_compiler_params(),
    )(x_feats, coordf, shortcut3, prep["W_up"], prep["b_up"],
      prep["W_feat"], prep["W_coord"], prep["b_resize"])


# ------------------------------------------------------------------ residual conv: in-kernel gather path
def _gather_accum(nmap_ref, feats, w_ref, m_valid, out_shape):
    # sum over 27 kernel offsets of gather(feats, nmap[:, k]) @ W[k]; invalid/pruned
    # neighbours carry index >= m_valid and contribute zero.
    acc = jnp.zeros(out_shape, jnp.float32)
    for k in range(27):
        idx = nmap_ref[:, k]
        safe = jnp.clip(idx, 0, m_valid - 1)
        g = jnp.take(feats, safe, axis=0,
                     mode=lax.GatherScatterMode.PROMISE_IN_BOUNDS)
        ok = (idx >= 0) & (idx < m_valid)
        g = jnp.where(ok[:, None], g, jnp.zeros_like(g))
        acc = acc + jnp.dot(g, w_ref[k], preferred_element_type=jnp.float32)
    return acc


def _conv3g_kernel(nmap_ref, feats_ref, w_ref, b_ref, o_ref, *, m_valid, relu):
    acc = _gather_accum(nmap_ref, feats_ref[...], w_ref, m_valid, o_ref.shape)
    acc = acc + b_ref[...]
    if relu:
        acc = jnp.maximum(acc, 0.0)
    o_ref[...] = acc.astype(o_ref.dtype)


def _conv3g_add_kernel(nmap_ref, feats_ref, add_ref, w_ref, b_ref, o_ref, *, m_valid):
    acc = _gather_accum(nmap_ref, feats_ref[...], w_ref, m_valid, o_ref.shape)
    acc = jnp.maximum(acc + b_ref[...] + add_ref[...].astype(jnp.float32), 0.0)
    o_ref[...] = acc.astype(o_ref.dtype)


def _conv3g_final_kernel(nmap_ref, feats_ref, skip_ref, keep_ref, w_ref, b_ref,
                         wh_ref, bh_ref, o_ref, *, m_valid):
    acc = _gather_accum(nmap_ref, feats_ref[...], w_ref, m_valid, o_ref.shape)
    keep = keep_ref[...]
    y = jnp.maximum(acc + b_ref[...] + skip_ref[...].astype(jnp.float32), 0.0) * keep
    lg = jnp.dot(y.astype(jnp.bfloat16), wh_ref[...], preferred_element_type=jnp.float32)
    lg = (lg + bh_ref[...]) * keep
    o_ref[...] = y + lg         # dec in lanes [:out_c], head logits packed in padded lanes


def conv3_gather(feats, nmap, w, b, *, m_valid, tm, relu=False, add=None):
    M, CP = feats.shape
    grid = (pl.cdiv(M, tm),)
    specs = [pl.BlockSpec((tm, 27), lambda i: (i, 0)),
             pl.BlockSpec((M, CP), lambda i: (0, 0))]      # resident activations (DMA'd once)
    args = [nmap, feats]
    if add is None:
        kern = functools.partial(_conv3g_kernel, m_valid=m_valid, relu=relu)
    else:
        kern = functools.partial(_conv3g_add_kernel, m_valid=m_valid)
        specs.append(pl.BlockSpec((tm, CP), lambda i: (i, 0)))
        args.append(add)
    specs += [pl.BlockSpec((27, CP, CP), lambda i: (0, 0, 0)),
              pl.BlockSpec((1, CP), lambda i: (0, 0))]
    args += [w, b]
    return pl.pallas_call(
        kern,
        out_shape=jax.ShapeDtypeStruct((M, CP), jnp.bfloat16),
        grid=grid, in_specs=specs,
        out_specs=pl.BlockSpec((tm, CP), lambda i: (i, 0)),
        compiler_params=_compiler_params(),
    )(*args)


def conv3_gather_final(feats, nmap, w, b, skip, keep_f, wh, bh, *, m_valid, tm):
    M, CP = feats.shape
    grid = (pl.cdiv(M, tm),)
    return pl.pallas_call(
        functools.partial(_conv3g_final_kernel, m_valid=m_valid),
        out_shape=jax.ShapeDtypeStruct((M, CP), jnp.float32),
        grid=grid,
        in_specs=[pl.BlockSpec((tm, 27), lambda i: (i, 0)),
                  pl.BlockSpec((M, CP), lambda i: (0, 0)),
                  pl.BlockSpec((tm, CP), lambda i: (i, 0)),
                  pl.BlockSpec((tm, 1), lambda i: (i, 0)),
                  pl.BlockSpec((27, CP, CP), lambda i: (0, 0, 0)),
                  pl.BlockSpec((1, CP), lambda i: (0, 0)),
                  pl.BlockSpec((CP, CP), lambda i: (0, 0)),
                  pl.BlockSpec((1, CP), lambda i: (0, 0))],
        out_specs=pl.BlockSpec((tm, CP), lambda i: (i, 0)),
        compiler_params=_compiler_params(),
    )(nmap, feats, skip, keep_f, w, b, wh, bh)


# ------------------------------------------------------------------ residual conv: im2col fallback path
def _gemm_kernel(x_ref, w_ref, b_ref, o_ref, *, relu):
    y = jnp.dot(x_ref[...], w_ref[...], preferred_element_type=jnp.float32) + b_ref[...]
    if relu:
        y = jnp.maximum(y, 0.0)
    o_ref[...] = y.astype(o_ref.dtype)


def _gemm_add_kernel(x_ref, w_ref, b_ref, add_ref, o_ref):
    y = jnp.dot(x_ref[...], w_ref[...], preferred_element_type=jnp.float32)
    y = jnp.maximum(y + b_ref[...] + add_ref[...].astype(jnp.float32), 0.0)
    o_ref[...] = y.astype(o_ref.dtype)


def _gemm_final_kernel(x_ref, w_ref, b_ref, skip_ref, keep_ref, wh_ref, bh_ref, o_ref):
    keep = keep_ref[...]
    y = jnp.dot(x_ref[...], w_ref[...], preferred_element_type=jnp.float32)
    y = jnp.maximum(y + b_ref[...] + skip_ref[...].astype(jnp.float32), 0.0) * keep
    lg = jnp.dot(y.astype(jnp.bfloat16), wh_ref[...], preferred_element_type=jnp.float32)
    lg = (lg + bh_ref[...]) * keep
    o_ref[...] = y + lg


def fused_gemm(x, w, b, *, tm, relu=False, add=None):
    M, K = x.shape
    C = w.shape[1]
    grid = (pl.cdiv(M, tm),)
    specs = [pl.BlockSpec((tm, K), lambda i: (i, 0)),
             pl.BlockSpec((K, C), lambda i: (0, 0)),
             pl.BlockSpec((1, C), lambda i: (0, 0))]
    args = [x, w, b]
    if add is None:
        kern = functools.partial(_gemm_kernel, relu=relu)
    else:
        kern = _gemm_add_kernel
        specs.append(pl.BlockSpec((tm, C), lambda i: (i, 0)))
        args.append(add)
    return pl.pallas_call(
        kern, out_shape=jax.ShapeDtypeStruct((M, C), jnp.bfloat16),
        grid=grid, in_specs=specs,
        out_specs=pl.BlockSpec((tm, C), lambda i: (i, 0)),
        compiler_params=_compiler_params(),
    )(*args)


def gemm_final(x, w, b, skip, keep_f, wh, bh, *, tm):
    M, K = x.shape
    C = w.shape[1]
    grid = (pl.cdiv(M, tm),)
    return pl.pallas_call(
        _gemm_final_kernel,
        out_shape=jax.ShapeDtypeStruct((M, C), jnp.float32),
        grid=grid,
        in_specs=[pl.BlockSpec((tm, K), lambda i: (i, 0)),
                  pl.BlockSpec((K, C), lambda i: (0, 0)),
                  pl.BlockSpec((1, C), lambda i: (0, 0)),
                  pl.BlockSpec((tm, C), lambda i: (i, 0)),
                  pl.BlockSpec((tm, 1), lambda i: (i, 0)),
                  pl.BlockSpec((C, C), lambda i: (0, 0)),
                  pl.BlockSpec((1, C), lambda i: (0, 0))],
        out_specs=pl.BlockSpec((tm, C), lambda i: (i, 0)),
        compiler_params=_compiler_params(),
    )(x, w, b, skip, keep_f, wh, bh)


def im2col(feats, nmap, out_c):
    # XLA-level gather of the 27 neighbour rows (real channels only) -> [M, 27*out_c].
    M = feats.shape[0]
    real = feats[:, :out_c]
    padded = jnp.concatenate([real, jnp.zeros((1, out_c), real.dtype)], axis=0)
    safe = jnp.where((nmap >= 0) & (nmap < M), nmap, M)
    return padded[safe].reshape(M, nmap.shape[1] * out_c)


# ------------------------------------------------------------------ row-gather capability probe
_row_gather_cache = [None]


def _probe_row_gather():
    # Verify that a dynamic row gather (jnp.take along sublanes) from a VMEM-resident source
    # both lowers in Mosaic and is numerically correct; otherwise use the im2col fallback.
    try:
        rows, tm = 64, 16
        src = ((jnp.arange(rows * LANE, dtype=jnp.float32) % 63.0) - 31.0)
        src = src.reshape(rows, LANE).astype(jnp.bfloat16)
        nm = jnp.asarray([[(5 * r + 3 * k) % rows for k in range(27)]
                          for r in range(tm)], jnp.int32)

        def kern(nm_ref, src_ref, o_ref):
            feats = src_ref[...]
            acc = jnp.zeros((tm, LANE), jnp.float32)
            for k in range(27):
                idx = nm_ref[:, k]
                safe = jnp.clip(idx, 0, rows - 1)
                g = jnp.take(feats, safe, axis=0,
                             mode=lax.GatherScatterMode.PROMISE_IN_BOUNDS)
                acc = acc + g.astype(jnp.float32) * float(k + 1)
            o_ref[...] = acc

        out = pl.pallas_call(
            kern,
            out_shape=jax.ShapeDtypeStruct((tm, LANE), jnp.float32),
            grid=(1,),
            in_specs=[pl.BlockSpec((tm, 27), lambda i: (0, 0)),
                      pl.BlockSpec((rows, LANE), lambda i: (0, 0))],
            out_specs=pl.BlockSpec((tm, LANE), lambda i: (0, 0)),
            compiler_params=_compiler_params(),
        )(nm, src)
        ref = sum(src.astype(jnp.float32)[nm[:, k]] * float(k + 1) for k in range(27))
        return bool(jnp.allclose(jax.block_until_ready(out), ref, rtol=1e-2, atol=1e-2))
    except Exception:
        return False


def _row_gather_supported():
    if _row_gather_cache[0] is None:
        _row_gather_cache[0] = _probe_row_gather()
    return _row_gather_cache[0]


# ------------------------------------------------------------------ sparse-conv neighbour map (XLA glue)
def coord_key(coords, lo, span):
    b = coords[:, 0]
    x = coords[:, 1] - lo[0]
    y = coords[:, 2] - lo[1]
    z = coords[:, 3] - lo[2]
    return ((b * span + x) * span + y) * span + z


def build_kernel3_map(dec_coords, keep, out_stride, lo, span):
    """For each point and each of the 27 (stride-scaled) offsets: neighbour row or M."""
    M = dec_coords.shape[0]
    lo_xyz = jnp.asarray(lo, jnp.int32)
    keys = coord_key(dec_coords, lo, span)
    order = jnp.argsort(keys)
    skeys = keys[order]
    cols = []
    for off in KERNEL3_OFFSETS:
        delta = jnp.asarray(off, jnp.int32) * out_stride
        shifted = dec_coords[:, 1:] + delta[None, :]
        in_rng = jnp.all((shifted >= lo_xyz[None, :]) &
                         (shifted < lo_xyz[None, :] + span), axis=1)
        tkeys = coord_key(jnp.concatenate([dec_coords[:, :1], shifted], axis=1), lo, span)
        pos = jnp.searchsorted(skeys, tkeys)
        pos_c = jnp.minimum(pos, M - 1)
        cand = order[pos_c]
        found = (pos < M) & (skeys[pos_c] == tkeys) & in_rng
        valid = found & keep[cand]            # pruned neighbours never contribute
        cols.append(jnp.where(valid, cand, M))
    return jnp.stack(cols, axis=1).astype(jnp.int32)      # [M, 27], M = "no neighbour"


# ------------------------------------------------------------------ parameter preparation
def prepare_params(params):
    """BN folds, lane padding, bf16 weight casts — done once in the wrapper."""
    out_c = params["up_w"].shape[2]
    in_c = params["up_w"].shape[1]
    nh = len(params["heads"])
    hd = params["heads"][0][0].shape[1]
    CP = _round_up(out_c + nh * hd, LANE)      # head logits live in the padded lanes
    bf16 = jnp.bfloat16
    prep = {"out_c": out_c, "in_c": in_c, "CP": CP, "n_heads": nh, "head_dim": hd}

    # upsample: generative deconv ks=2/s=2 (8 taps), BN + ReLU folded
    s, t = bn_affine(params["up_bn"])
    prep["W_up"] = _pad_last(params["up_w"] * s[None, None, :], CP).astype(bf16)  # [8,in_c,CP]
    prep["b_up"] = _pad_last(t[None, :], CP)                                      # [1,CP] f32

    # resize: BN(out_c+3) folded; feature part (bf16) / coordinate part (f32) split
    s, t = bn_affine(params["resize_bn"])
    wr = params["resize_w"] * s[:, None]                                          # [out_c+3,out_c]
    prep["W_feat"] = _pad_last2(wr[:out_c], CP, CP).astype(bf16)
    prep["W_coord"] = _pad_last2(wr[out_c:], 8, CP)                               # f32 [8,CP]
    prep["b_resize"] = _pad_last((t @ params["resize_w"] + params["resize_b"])[None, :], CP)

    # residual blocks: [27, CP, CP] tap-major weights, BN folded into W/b
    res = []
    for (w1, bn1, w2, bn2) in params["res_blocks"]:
        s1, t1 = bn_affine(bn1)
        s2, t2 = bn_affine(bn2)
        w1t = _pad_last2(w1.reshape(27, out_c, out_c) * s1[None, None, :], CP, CP).astype(bf16)
        w2t = _pad_last2(w2.reshape(27, out_c, out_c) * s2[None, None, :], CP, CP).astype(bf16)
        res.append((w1t, _pad_last(t1[None, :], CP), w2t, _pad_last(t2[None, :], CP)))
    prep["res"] = res

    # completion heads folded into the last conv's epilogue, packed into padded lanes
    hw = jnp.concatenate([w for (w, _) in params["heads"]], axis=1)               # [out_c, nh*hd]
    hb = jnp.concatenate([b for (_, b) in params["heads"]], axis=0)               # [nh*hd]
    whp = jnp.zeros((CP, CP), jnp.float32).at[:out_c, out_c:out_c + nh * hd].set(hw)
    bhp = jnp.zeros((1, CP), jnp.float32).at[0, out_c:out_c + nh * hd].set(hb)
    prep["W_headpack"] = whp.astype(bf16)
    prep["b_headpack"] = bhp
    return prep


# ------------------------------------------------------------------ residual stage
def _residual_stage(dec, nmap, keep_f, prep, use_gather):
    M, CP = dec.shape
    out_c = prep["out_c"]
    tm = _pick_tile(M, TM)
    wh, bh = prep["W_headpack"], prep["b_headpack"]
    packed = None
    res = prep["res"]
    for r, (w1, b1, w2, b2) in enumerate(res):
        last = r == len(res) - 1
        if use_gather:
            h = conv3_gather(dec, nmap, w1, b1, m_valid=M, tm=tm, relu=True)
            if not last:
                dec = conv3_gather(h, nmap, w2, b2, m_valid=M, tm=tm, add=dec)
            else:
                packed = conv3_gather_final(h, nmap, w2, b2, dec, keep_f, wh, bh,
                                            m_valid=M, tm=tm)
        else:
            # TODO(synk): XLA im2col fallback materialises [M, 27*out_c] in HBM; used only
            #             when the Mosaic row gather is unavailable or M is too large.
            w1f = w1[:, :out_c, :].reshape(27 * out_c, CP)
            w2f = w2[:, :out_c, :].reshape(27 * out_c, CP)
            h = fused_gemm(im2col(dec, nmap, out_c), w1f, b1, tm=tm, relu=True)
            x2 = im2col(h, nmap, out_c)
            if not last:
                dec = fused_gemm(x2, w2f, b2, tm=tm, add=dec)
            else:
                packed = gemm_final(x2, w2f, b2, dec, keep_f, wh, bh, tm=tm)
    return packed


# ------------------------------------------------------------------ DecoderBlock forward
def decoder_block_forward(prep, x_coords, x_feats, tensor_stride, shortcut_feats,
                          global_min_coords, global_max_coords, num_batches):
    N, in_c = x_feats.shape
    out_c, CP = prep["out_c"], prep["CP"]
    out_stride = tensor_stride // 2
    assert out_stride >= 1 and (out_stride & (out_stride - 1)) == 0, "stride must be 2^k"
    M = 8 * N

    # child coordinates, CHILD-MAJOR row order (row = c*N + p) so the fused upsample kernel
    # writes contiguous lane-dense blocks.
    offs = jnp.asarray(KERNEL2_OFFSETS, jnp.int32) * out_stride                   # [8,3]
    dec_xyz = x_coords[None, :, 1:] + offs[:, None, :]                            # [8,N,3]
    dec_coords = jnp.concatenate(
        [jnp.broadcast_to(x_coords[None, :, :1], (8, N, 1)), dec_xyz],
        axis=-1).reshape(M, 4).astype(jnp.int32)

    gmin = jnp.asarray(global_min_coords, jnp.int32)
    gmax = jnp.asarray(global_max_coords, jnp.int32)
    keep = jnp.all((dec_coords[:, 1:] >= gmin[None, :]) &
                   (dec_coords[:, 1:] <= gmax[None, :]), axis=1)                  # [M] bool
    keep_f = keep.astype(jnp.float32)[:, None]

    # narrow f32 coordinate stream (3 useful lanes) instead of a dense [M, CP] coordpad
    coordf = jnp.zeros((8, N, 8), jnp.float32).at[:, :, :3].set(
        dec_xyz.astype(jnp.float32) / float(out_stride))
    shortcut3 = _pad_last(shortcut_feats.astype(jnp.bfloat16), CP).reshape(8, N, CP)

    bounds = []
    for k in range(3):
        bounds.append(float(global_min_coords[k]) / float(out_stride))
        bounds.append(float(global_max_coords[k]) / float(out_stride))
    bounds = tuple(bounds)

    # fused: upsample (deconv + BN + ReLU) + pruning mask + concat_coords + resize + shortcut
    tm_par = _pick_tile(N, TM_PARENT)
    dec3 = up_resize_call(x_feats.astype(jnp.bfloat16), coordf, shortcut3, prep, bounds,
                          tm=tm_par)
    dec = dec3.reshape(M, CP)                   # bf16, child-major row order

    # neighbour map for the kernel_size=3 convolutions (sort + searchsorted join)
    lo = tuple(int(v) - tensor_stride - out_stride for v in global_min_coords)
    hi = tuple(int(v) + tensor_stride + out_stride for v in global_max_coords)
    span = max(h - l + 1 for h, l in zip(hi, lo))
    assert num_batches * span ** 3 < 2 ** 31 - 1, "int32 coord key overflow"
    nmap = build_kernel3_map(dec_coords, keep, out_stride, lo, span)

    # residual stage (heavy_decoder=False -> 3 blocks), heads fused into the last conv
    use_gather = _row_gather_supported() and (M * CP * 2 <= _GATHER_RESIDENCY_BYTES)
    packed = None
    if use_gather:
        try:
            packed = jax.block_until_ready(_residual_stage(dec, nmap, keep_f, prep, True))
        except Exception:
            packed = None
    if packed is None:
        packed = _residual_stage(dec, nmap, keep_f, prep, False)

    hd, nh = prep["head_dim"], prep["n_heads"]
    dec_out = packed[:, :out_c]
    completion_logits = [packed[:, out_c + i * hd: out_c + (i + 1) * hd] for i in range(nh)]
    return dec_out, completion_logits, dec_coords, keep


# ------------------------------------------------------------------ deterministic params
def init_params(key, in_c, out_c, n_heads=2, compl_head_dim=1, n_res=3):
    keys = list(jax.random.split(key, 32))
    it = iter(keys)

    def nrm(shape, scale=0.1):
        return jax.random.normal(next(it), shape, jnp.float32) * scale

    def bn(c):
        k1, k2, k3 = jax.random.split(next(it), 3)
        gamma = 1.0 + jax.random.normal(k1, (c,), jnp.float32) * 0.05
        beta = jax.random.normal(k2, (c,), jnp.float32) * 0.05
        mean = jax.random.normal(k3, (c,), jnp.float32) * 0.05
        var = jnp.ones((c,), jnp.float32)
        return (gamma, beta, mean, var)

    params = {}
    params["up_w"] = nrm((8, in_c, out_c))          # generative deconv ks=2: 8 kernel taps
    params["up_bn"] = bn(out_c)
    params["resize_bn"] = bn(out_c + 3)
    params["resize_w"] = nrm((out_c + 3, out_c))
    params["resize_b"] = nrm((out_c,))
    res = []
    for _ in range(n_res):
        res.append((nrm((27 * out_c, out_c)), bn(out_c),
                    nrm((27 * out_c, out_c)), bn(out_c)))
    params["res_blocks"] = res
    params["heads"] = [(nrm((out_c, compl_head_dim)), nrm((compl_head_dim,)))
                       for _ in range(n_heads)]
    return params


if __name__ == "__main__":
    key = jax.random.PRNGKey(0)
    k_coord, k_feat, k_short, k_param = jax.random.split(key, 4)

    in_c, out_c = 8, 16
    B, pts_per_batch = 2, 32
    tensor_stride = 2

    # unique input coords on an 8^3 grid (multiples of tensor_stride) per batch
    coords_list = []
    kc = jax.random.split(k_coord, B)
    for b in range(B):
        perm = jax.random.permutation(kc[b], 8 * 8 * 8)[:pts_per_batch]
        gx = perm // 64
        gy = (perm // 8) % 8
        gz = perm % 8
        bc = jnp.stack([jnp.full_like(gx, b),
                        gx * tensor_stride, gy * tensor_stride, gz * tensor_stride], axis=1)
        coords_list.append(bc)
    x_coords = jnp.concatenate(coords_list, axis=0).astype(jnp.int32)       # [64, 4]
    N = x_coords.shape[0]
    x_feats = jax.random.normal(k_feat, (N, in_c), jnp.float32)             # [64, 8]

    M = N * 8                                                               # 512 upsampled pts
    shortcut_feats = jax.random.normal(k_short, (M, out_c), jnp.float32)    # shortcut.F

    params = init_params(k_param, in_c, out_c, n_heads=2, compl_head_dim=1, n_res=3)
    prep = prepare_params(params)

    global_min_coords = (0, 0, 0)
    global_max_coords = (15, 15, 15)   # all upsampled coords are kept

    dec, completion_logits, dec_coords, keep = decoder_block_forward(
        prep, x_coords, x_feats, tensor_stride,
        shortcut_feats, global_min_coords, global_max_coords, num_batches=B)

    jax.block_until_ready(dec)
    for lg in completion_logits:
        jax.block_until_ready(lg)

    assert dec.shape == (M, out_c)
    assert all(lg.shape == (M, 1) for lg in completion_logits)
    assert bool(jnp.isfinite(dec).all())
    print("KERNEL_OK")
</pallas_src>

<mosaic_0001>
module attributes {stable_mosaic.version = 11 : i64} {
  func.func @_up_resize_kernel(%arg0: i32, %arg1: memref<8x8xbf16, #tpu.memory_space<vmem>>, %arg2: memref<8x8x8xf32, #tpu.memory_space<vmem>>, %arg3: memref<8x8x128xbf16, #tpu.memory_space<vmem>>, %arg4: memref<8x8x128xbf16, #tpu.memory_space<vmem>>, %arg5: memref<1x128xf32, #tpu.memory_space<vmem>>, %arg6: memref<128x128xbf16, #tpu.memory_space<vmem>>, %arg7: memref<8x128xf32, #tpu.memory_space<vmem>>, %arg8: memref<1x128xf32, #tpu.memory_space<vmem>>, %arg9: memref<8x8x128xbf16, #tpu.memory_space<vmem>>) attributes {dimension_semantics = [#tpu.dimension_semantics<parallel>], iteration_bounds = array<i64: 8>, scalar_prefetch = 0 : i64, scratch_operands = 0 : i64, tpu.core_type = #tpu.core_type<tc>, window_params = [{transform_indices = @transform_0, window_bounds = array<i64: 8, 8>}, {transform_indices = @transform_1, window_bounds = array<i64: 8, 8, 8>}, {transform_indices = @transform_2, window_bounds = array<i64: 8, 8, 128>}, {pipeline_mode = #tpu.pipeline_mode<synchronous>, transform_indices = @transform_3, window_bounds = array<i64: 8, 8, 128>}, {pipeline_mode = #tpu.pipeline_mode<synchronous>, transform_indices = @transform_4, window_bounds = array<i64: 1, 128>}, {pipeline_mode = #tpu.pipeline_mode<synchronous>, transform_indices = @transform_5, window_bounds = array<i64: 128, 128>}, {pipeline_mode = #tpu.pipeline_mode<synchronous>, transform_indices = @transform_6, window_bounds = array<i64: 8, 128>}, {pipeline_mode = #tpu.pipeline_mode<synchronous>, transform_indices = @transform_7, window_bounds = array<i64: 1, 128>}, {transform_indices = @transform_8, window_bounds = array<i64: 8, 8, 128>}]} {
    %c0 = arith.constant 0 : index
    %c0_0 = arith.constant 0 : index
    %0 = vector.load %arg1[%c0, %c0_0] : memref<8x8xbf16, #tpu.memory_space<vmem>>, vector<8x8xbf16>
    %c0_1 = arith.constant 0 : index
    %c0_2 = arith.constant 0 : index
    %1 = vector.load %arg6[%c0_1, %c0_2] : memref<128x128xbf16, #tpu.memory_space<vmem>>, vector<128x128xbf16>
    %c0_3 = arith.constant 0 : index
    %c0_4 = arith.constant 0 : index
    %2 = vector.load %arg7[%c0_3, %c0_4] : memref<8x128xf32, #tpu.memory_space<vmem>>, vector<8x128xf32>
    %c0_5 = arith.constant 0 : index
    %c0_6 = arith.constant 0 : index
    %3 = vector.load %arg5[%c0_5, %c0_6] : memref<1x128xf32, #tpu.memory_space<vmem>>, vector<1x128xf32>
    %c0_7 = arith.constant 0 : index
    %c0_8 = arith.constant 0 : index
    %4 = vector.load %arg8[%c0_7, %c0_8] : memref<1x128xf32, #tpu.memory_space<vmem>>, vector<1x128xf32>
    %c0_9 = arith.constant 0 : index
    %c0_10 = arith.constant 0 : index
    %c0_11 = arith.constant 0 : index
    %5 = vector.load %arg4[%c0_9, %c0_10, %c0_11] : memref<8x8x128xbf16, #tpu.memory_space<vmem>>, vector<1x8x128xbf16>
    %6 = vector.shape_cast %5 : vector<1x8x128xbf16> to vector<8x128xbf16>
    %cst = arith.constant dense<0.000000e+00> : vector<8x128xf32>
    %7 = tpu.matmul %0, %6, %cst {dimension_numbers = #tpu.dot_dimension_numbers<[1], [0], [0], [1], [0, 0, 1, 1], [], []>} : vector<8x8xbf16>, vector<8x128xbf16>, vector<8x128xf32> -> vector<8x128xf32>
    %8 = vector.broadcast %3 : vector<1x128xf32> to vector<8x128xf32>
    %9 = arith.addf %7, %8 : vector<8x128xf32>
    %cst_12 = arith.constant 0.000000e+00 : f32
    %10 = vector.broadcast %cst_12 : f32 to vector<8x128xf32>
    %11 = arith.maximumf %9, %10 : vector<8x128xf32>
    %c0_13 = arith.constant 0 : index
    %c0_14 = arith.constant 0 : index
    %c0_15 = arith.constant 0 : index
    %12 = vector.load %arg2[%c0_13, %c0_14, %c0_15] : memref<8x8x8xf32, #tpu.memory_space<vmem>>, vector<1x8x8xf32>
    %13 = vector.shape_cast %12 : vector<1x8x8xf32> to vector<8x8xf32>
    %14 = vector.extract_strided_slice %13 {offsets = [0, 0], sizes = [8, 1], strides = [1, 1]} : vector<8x8xf32> to vector<8x1xf32>
    %15 = vector.extract_strided_slice %13 {offsets = [0, 1], sizes = [8, 1], strides = [1, 1]} : vector<8x8xf32> to vector<8x1xf32>
    %16 = vector.extract_strided_slice %13 {offsets = [0, 2], sizes = [8, 1], strides = [1, 1]} : vector<8x8xf32> to vector<8x1xf32>
    %cst_16 = arith.constant 0.000000e+00 : f32
    %17 = vector.broadcast %cst_16 : f32 to vector<8x1xf32>
    %18 = arith.cmpf oge, %14, %17 : vector<8x1xf32>
    %cst_17 = arith.constant 1.500000e+01 : f32
    %19 = vector.broadcast %cst_17 : f32 to vector<8x1xf32>
    %20 = arith.cmpf ole, %14, %19 : vector<8x1xf32>
    %21 = arith.andi %18, %20 : vector<8x1xi1>
    %cst_18 = arith.constant 0.000000e+00 : f32
    %22 = vector.broadcast %cst_18 : f32 to vector<8x1xf32>
    %23 = arith.cmpf oge, %15, %22 : vector<8x1xf32>
    %24 = arith.andi %21, %23 : vector<8x1xi1>
    %cst_19 = arith.constant 1.500000e+01 : f32
    %25 = vector.broadcast %cst_19 : f32 to vector<8x1xf32>
    %26 = arith.cmpf ole, %15, %25 : vector<8x1xf32>
    %27 = arith.andi %24, %26 : vector<8x1xi1>
    %cst_20 = arith.constant 0.000000e+00 : f32
    %28 = vector.broadcast %cst_20 : f32 to vector<8x1xf32>
    %29 = arith.cmpf oge, %16, %28 : vector<8x1xf32>
    %30 = arith.andi %27, %29 : vector<8x1xi1>
    %cst_21 = arith.constant 1.500000e+01 : f32
    %31 = vector.broadcast %cst_21 : f32 to vector<8x1xf32>
    %32 = arith.cmpf ole, %16, %31 : vector<8x1xf32>
    %33 = arith.andi %30, %32 : vector<8x1xi1>
    %34 = arith.extui %33 : vector<8x1xi1> to vector<8x1xi32>
    %35 = arith.sitofp %34 : vector<8x1xi32> to vector<8x1xf32>
    %36 = vector.broadcast %35 : vector<8x1xf32> to vector<8x128xf32>
    %37 = arith.mulf %11, %36 : vector<8x128xf32>
    %38 = arith.truncf %37 : vector<8x128xf32> to vector<8x128xbf16>
    %cst_22 = arith.constant dense<0.000000e+00> : vector<8x128xf32>
    %39 = tpu.matmul %38, %1, %cst_22 {dimension_numbers = #tpu.dot_dimension_numbers<[1], [0], [0], [1], [0, 0, 1, 1], [], []>} : vector<8x128xbf16>, vector<128x128xbf16>, vector<8x128xf32> -> vector<8x128xf32>
    %cst_23 = arith.constant dense<0.000000e+00> : vector<8x128xf32>
    %40 = tpu.matmul %13, %2, %cst_23 {dimension_numbers = #tpu.dot_dimension_numbers<[1], [0], [0], [1], [0, 0, 1, 1], [], []>} : vector<8x8xf32>, vector<8x128xf32>, vector<8x128xf32> -> vector<8x128xf32>
    %41 = arith.addf %39, %40 : vector<8x128xf32>
    %42 = vector.broadcast %4 : vector<1x128xf32> to vector<8x128xf32>
    %43 = arith.addf %41, %42 : vector<8x128xf32>
    %c0_24 = arith.constant 0 : index
    %c0_25 = arith.constant 0 : index
    %c0_26 = arith.constant 0 : index
    %44 = vector.load %arg3[%c0_24, %c0_25, %c0_26] : memref<8x8x128xbf16, #tpu.memory_space<vmem>>, vector<1x8x128xbf16>
    %45 = vector.shape_cast %44 : vector<1x8x128xbf16> to vector<8x128xbf16>
    %46 = arith.extf %45 : vector<8x128xbf16> to vector<8x128xf32>
    %47 = arith.addf %43, %46 : vector<8x128xf32>
    %48 = arith.truncf %47 : vector<8x128xf32> to vector<8x128xbf16>
    %c0_27 = arith.constant 0 : index
    %c0_28 = arith.constant 0 : index
    %c0_29 = arith.constant 0 : index
    %49 = vector.load %arg9[%c0_27, %c0_28, %c0_29] : memref<8x8x128xbf16, #tpu.memory_space<vmem>>, vector<1x8x128xbf16>
    %50 = vector.shape_cast %49 : vector<1x8x128xbf16> to vector<8x128xbf16>
    %51 = vector.shape_cast %48 : vector<8x128xbf16> to vector<1x8x128xbf16>
    tpu.vector_store %arg9[%c0_27, %c0_28, %c0_29], %51 {strides = array<i32>} : memref<8x8x128xbf16, #tpu.memory_space<vmem>>, vector<1x8x128xbf16>,
    %c1 = arith.constant 1 : index
    %c0_30 = arith.constant 0 : index
    %c0_31 = arith.constant 0 : index
    %52 = vector.load %arg4[%c1, %c0_30, %c0_31] : memref<8x8x128xbf16, #tpu.memory_space<vmem>>, vector<1x8x128xbf16>
    %53 = vector.shape_cast %52 : vector<1x8x128xbf16> to vector<8x128xbf16>
    %cst_32 = arith.constant dense<0.000000e+00> : vector<8x128xf32>
    %54 = tpu.matmul %0, %53, %cst_32 {dimension_numbers = #tpu.dot_dimension_numbers<[1], [0], [0], [1], [0, 0, 1, 1], [], []>} : vector<8x8xbf16>, vector<8x128xbf16>, vector<8x128xf32> -> vector<8x128xf32>
    %55 = vector.broadcast %3 : vector<1x128xf32> to vector<8x128xf32>
    %56 = arith.addf %54, %55 : vector<8x128xf32>
    %cst_33 = arith.constant 0.000000e+00 : f32
    %57 = vector.broadcast %cst_33 : f32 to vector<8x128xf32>
    %58 = arith.maximumf %56, %57 : vector<8x128xf32>
    %c1_34 = arith.constant 1 : index
    %c0_35 = arith.constant 0 : index
    %c0_36 = arith.constant 0 : index
    %59 = vector.load %arg2[%c1_34, %c0_35, %c0_36] : memref<8x8x8xf32, #tpu.memory_space<vmem>>, vector<1x8x8xf32>
    %60 = vector.shape_cast %59 : vector<1x8x8xf32> to vector<8x8xf32>
    %61 = vector.extract_strided_slice %60 {offsets = [0, 0], sizes = [8, 1], strides = [1, 1]} : vector<8x8xf32> to vector<8x1xf32>
    %62 = vector.extract_strided_slice %60 {offsets = [0, 1], sizes = [8, 1], strides = [1, 1]} : vector<8x8xf32> to vector<8x1xf32>
    %63 = vector.extract_strided_slice %60 {offsets = [0, 2], sizes = [8, 1], strides = [1, 1]} : vector<8x8xf32> to vector<8x1xf32>
    %cst_37 = arith.constant 0.000000e+00 : f32
    %64 = vector.broadcast %cst_37 : f32 to vector<8x1xf32>
    %65 = arith.cmpf oge, %61, %64 : vector<8x1xf32>
    %cst_38 = arith.constant 1.500000e+01 : f32
    %66 = vector.broadcast %cst_38 : f32 to vector<8x1xf32>
    %67 = arith.cmpf ole, %61, %66 : vector<8x1xf32>
    %68 = arith.andi %65, %67 : vector<8x1xi1>
    %cst_39 = arith.constant 0.000000e+00 : f32
    %69 = vector.broadcast %cst_39 : f32 to vector<8x1xf32>
    %70 = arith.cmpf oge, %62, %69 : vector<8x1xf32>
    %71 = arith.andi %68, %70 : vector<8x1xi1>
    %cst_40 = arith.constant 1.500000e+01 : f32
    %72 = vector.broadcast %cst_40 : f32 to vector<8x1xf32>
    %73 = arith.cmpf ole, %62, %72 : vector<8x1xf32>
    %74 = arith.andi %71, %73 : vector<8x1xi1>
    %cst_41 = arith.constant 0.000000e+00 : f32
    %75 = vector.broadcast %cst_41 : f32 to vector<8x1xf32>
    %76 = arith.cmpf oge, %63, %75 : vector<8x1xf32>
    %77 = arith.andi %74, %76 : vector<8x1xi1>
    %cst_42 = arith.constant 1.500000e+01 : f32
    %78 = vector.broadcast %cst_42 : f32 to vector<8x1xf32>
    %79 = arith.cmpf ole, %63, %78 : vector<8x1xf32>
    %80 = arith.andi %77, %79 : vector<8x1xi1>
    %81 = arith.extui %80 : vector<8x1xi1> to vector<8x1xi32>
    %82 = arith.sitofp %81 : vector<8x1xi32> to vector<8x1xf32>
    %83 = vector.broadcast %82 : vector<8x1xf32> to vector<8x128xf32>
    %84 = arith.mulf %58, %83 : vector<8x128xf32>
    %85 = arith.truncf %84 : vector<8x128xf32> to vector<8x128xbf16>
    %cst_43 = arith.constant dense<0.000000e+00> : vector<8x128xf32>
    %86 = tpu.matmul %85, %1, %cst_43 {dimension_numbers = #tpu.dot_dimension_numbers<[1], [0], [0], [1], [0, 0, 1, 1], [], []>} : vector<8x128xbf16>, vector<128x128xbf16>, vector<8x128xf32> -> vector<8x128xf32>
    %cst_44 = arith.constant dense<0.000000e+00> : vector<8x128xf32>
    %87 = tpu.matmul %60, %2, %cst_44 {dimension_numbers = #tpu.dot_dimension_numbers<[1], [0], [0], [1], [0, 0, 1, 1], [], []>} : vector<8x8xf32>, vector<8x128xf32>, vector<8x128xf32> -> vector<8x128xf32>
    %88 = arith.addf %86, %87 : vector<8x128xf32>
    %89 = vector.broadcast %4 : vector<1x128xf32> to vector<8x128xf32>
    %90 = arith.addf %88, %89 : vector<8x128xf32>
    %c1_45 = arith.constant 1 : index
    %c0_46 = arith.constant 0 : index
    %c0_47 = arith.constant 0 : index
    %91 = vector.load %arg3[%c1_45, %c0_46, %c0_47] : memref<8x8x128xbf16, #tpu.memory_space<vmem>>, vector<1x8x128xbf16>
    %92 = vector.shape_cast %91 : vector<1x8x128xbf16> to vector<8x128xbf16>
    %93 = arith.extf %92 : vector<8x128xbf16> to vector<8x128xf32>
    %94 = arith.addf %90, %93 : vector<8x128xf32>
    %95 = arith.truncf %94 : vector<8x128xf32> to vector<8x128xbf16>
    %c1_48 = arith.constant 1 : index
    %c0_49 = arith.constant 0 : index
    %c0_50 = arith.constant 0 : index
    %96 = vector.load %arg9[%c1_48, %c0_49, %c0_50] : memref<8x8x128xbf16, #tpu.memory_space<vmem>>, vector<1x8x128xbf16>
    %97 = vector.shape_cast %96 : vector<1x8x128xbf16> to vector<8x128xbf16>
    %98 = vector.shape_cast %95 : vector<8x128xbf16> to vector<1x8x128xbf16>
    tpu.vector_store %arg9[%c1_48, %c0_49, %c0_50], %98 {strides = array<i32>} : memref<8x8x128xbf16, #tpu.memory_space<vmem>>, vector<1x8x128xbf16>,
    %c2 = arith.constant 2 : index
    %c0_51 = arith.constant 0 : index
    %c0_52 = arith.constant 0 : index
    %99 = vector.load %arg4[%c2, %c0_51, %c0_52] : memref<8x8x128xbf16, #tpu.memory_space<vmem>>, vector<1x8x128xbf16>
    %100 = vector.shape_cast %99 : vector<1x8x128xbf16> to vector<8x128xbf16>
    %cst_53 = arith.constant dense<0.000000e+00> : vector<8x128xf32>
    %101 = tpu.matmul %0, %100, %cst_53 {dimension_numbers = #tpu.dot_dimension_numbers<[1], [0], [0], [1], [0, 0, 1, 1], [], []>} : vector<8x8xbf16>, vector<8x128xbf16>, vector<8x128xf32> -> vector<8x128xf32>
    %102 = vector.broadcast %3 : vector<1x128xf32> to vector<8x128xf32>
    %103 = arith.addf %101, %102 : vector<8x128xf32>
    %cst_54 = arith.constant 0.000000e+00 : f32
    %104 = vector.broadcast %cst_54 : f32 to vector<8x128xf32>
    %105 = arith.maximumf %103, %104 : vector<8x128xf32>
    %c2_55 = arith.constant 2 : index
    %c0_56 = arith.constant 0 : index
    %c0_57 = arith.constant 0 : index
    %106 = vector.load %arg2[%c2_55, %c0_56, %c0_57] : memref<8x8x8xf32, #tpu.memory_space<vmem>>, vector<1x8x8xf32>
    %107 = vector.shape_cast %106 : vector<1x8x8xf32> to vector<8x8xf32>
    %108 = vector.extract_strided_slice %107 {offsets = [0, 0], sizes = [8, 1], strides = [1, 1]} : vector<8x8xf32> to vector<8x1xf32>
    %109 = vector.extract_strided_slice %107 {offsets = [0, 1], sizes = [8, 1], strides = [1, 1]} : vector<8x8xf32> to vector<8x1xf32>
    %110 = vector.extract_strided_slice %107 {offsets = [0, 2], sizes = [8, 1], strides = [1, 1]} : vector<8x8xf32> to vector<8x1xf32>
    %cst_58 = arith.constant 0.000000e+00 : f32
    %111 = vector.broadcast %cst_58 : f32 to vector<8x1xf32>
    %112 = arith.cmpf oge, %108, %111 : vector<8x1xf32>
    %cst_59 = arith.constant 1.500000e+01 : f32
    %113 = vector.broadcast %cst_59 : f32 to vector<8x1xf32>
    %114 = arith.cmpf ole, %108, %113 : vector<8x1xf32>
    %115 = arith.andi %112, %114 : vector<8x1xi1>
    %cst_60 = arith.constant 0.000000e+00 : f32
    %116 = vector.broadcast %cst_60 : f32 to vector<8x1xf32>
    %117 = arith.cmpf oge, %109, %116 : vector<8x1xf32>
    %118 = arith.andi %115, %117 : vector<8x1xi1>
    %cst_61 = arith.constant 1.500000e+01 : f32
    %119 = vector.broadcast %cst_61 : f32 to vector<8x1xf32>
    %120 = arith.cmpf ole, %109, %119 : vector<8x1xf32>
    %121 = arith.andi %118, %120 : vector<8x1xi1>
    %cst_62 = arith.constant 0.000000e+00 : f32
    %122 = vector.broadcast %cst_62 : f32 to vector<8x1xf32>
    %123 = arith.cmpf oge, %110, %122 : vector<8x1xf32>
    %124 = arith.andi %121, %123 : vector<8x1xi1>
    %cst_63 = arith.constant 1.500000e+01 : f32
    %125 = vector.broadcast %cst_63 : f32 to vector<8x1xf32>
    %126 = arith.cmpf ole, %110, %125 : vector<8x1xf32>
    %127 = arith.andi %124, %126 : vector<8x1xi1>
    %128 = arith.extui %127 : vector<8x1xi1> to vector<8x1xi32>
    %129 = arith.sitofp %128 : vector<8x1xi32> to vector<8x1xf32>
    %130 = vector.broadcast %129 : vector<8x1xf32> to vector<8x128xf32>
    %131 = arith.mulf %105, %130 : vector<8x128xf32>
    %132 = arith.truncf %131 : vector<8x128xf32> to vector<8x128xbf16>
    %cst_64 = arith.constant dense<0.000000e+00> : vector<8x128xf32>
    %133 = tpu.matmul %132, %1, %cst_64 {dimension_numbers = #tpu.dot_dimension_numbers<[1], [0], [0], [1], [0, 0, 1, 1], [], []>} : vector<8x128xbf16>, vector<128x128xbf16>, vector<8x128xf32> -> vector<8x128xf32>
    %cst_65 = arith.constant dense<0.000000e+00> : vector<8x128xf32>
    %134 = tpu.matmul %107, %2, %cst_65 {dimension_numbers = #tpu.dot_dimension_numbers<[1], [0], [0], [1], [0, 0, 1, 1], [], []>} : vector<8x8xf32>, vector<8x128xf32>, vector<8x128xf32> -> vector<8x128xf32>
    %135 = arith.addf %133, %134 : vector<8x128xf32>
    %136 = vector.broadcast %4 : vector<1x128xf32> to vector<8x128xf32>
    %137 = arith.addf %135, %136 : vector<8x128xf32>
    %c2_66 = arith.constant 2 : index
    %c0_67 = arith.constant 0 : index
    %c0_68 = arith.constant 0 : index
    %138 = vector.load %arg3[%c2_66, %c0_67, %c0_68] : memref<8x8x128xbf16, #tpu.memory_space<vmem>>, vector<1x8x128xbf16>
    %139 = vector.shape_cast %138 : vector<1x8x128xbf16> to vector<8x128xbf16>
    %140 = arith.extf %139 : vector<8x128xbf16> to vector<8x128xf32>
    %141 = arith.addf %137, %140 : vector<8x128xf32>
    %142 = arith.truncf %141 : vector<8x128xf32> to vector<8x128xbf16>
    %c2_69 = arith.constant 2 : index
    %c0_70 = arith.constant 0 : index
    %c0_71 = arith.constant 0 : index
    %143 = vector.load %arg9[%c2_69, %c0_70, %c0_71] : memref<8x8x128xbf16, #tpu.memory_space<vmem>>, vector<1x8x128xbf16>
    %144 = vector.shape_cast %143 : vector<1x8x128xbf16> to vector<8x128xbf16>
    %145 = vector.shape_cast %142 : vector<8x128xbf16> to vector<1x8x128xbf16>
    tpu.vector_store %arg9[%c2_69, %c0_70, %c0_71], %145 {strides = array<i32>} : memref<8x8x128xbf16, #tpu.memory_space<vmem>>, vector<1x8x128xbf16>,
    %c3 = arith.constant 3 : index
    %c0_72 = arith.constant 0 : index
    %c0_73 = arith.constant 0 : index
    %146 = vector.load %arg4[%c3, %c0_72, %c0_73] : memref<8x8x128xbf16, #tpu.memory_space<vmem>>, vector<1x8x128xbf16>
    %147 = vector.shape_cast %146 : vector<1x8x128xbf16> to vector<8x128xbf16>
    %cst_74 = arith.constant dense<0.000000e+00> : vector<8x128xf32>
    %148 = tpu.matmul %0, %147, %cst_74 {dimension_numbers = #tpu.dot_dimension_numbers<[1], [0], [0], [1], [0, 0, 1, 1], [], []>} : vector<8x8xbf16>, vector<8x128xbf16>, vector<8x128xf32> -> vector<8x128xf32>
    %149 = vector.broadcast %3 : vector<1x128xf32> to vector<8x128xf32>
    %150 = arith.addf %148, %149 : vector<8x128xf32>
    %cst_75 = arith.constant 0.000000e+00 : f32
    %151 = vector.broadcast %cst_75 : f32 to vector<8x128xf32>
    %152 = arith.maximumf %150, %151 : vector<8x128xf32>
    %c3_76 = arith.constant 3 : index
    %c0_77 = arith.constant 0 : index
    %c0_78 = arith.constant 0 : index
    %153 = vector.load %arg2[%c3_76, %c0_77, %c0_78] : memref<8x8x8xf32, #tpu.memory_space<vmem>>, vector<1x8x8xf32>
    %154 = vector.shape_cast %153 : vector<1x8x8xf32> to vector<8x8xf32>
    %155 = vector.extract_strided_slice %154 {offsets = [0, 0], sizes = [8, 1], strides = [1, 1]} : vector<8x8xf32> to vector<8x1xf32>
    %156 = vector.extract_strided_slice %154 {offsets = [0, 1], sizes = [8, 1], strides = [1, 1]} : vector<8x8xf32> to vector<8x1xf32>
    %157 = vector.extract_strided_slice %154 {offsets = [0, 2], sizes = [8, 1], strides = [1, 1]} : vector<8x8xf32> to vector<8x1xf32>
    %cst_79 = arith.constant 0.000000e+00 : f32
    %158 = vector.broadcast %cst_79 : f32 to vector<8x1xf32>
    %159 = arith.cmpf oge, %155, %158 : vector<8x1xf32>
    %cst_80 = arith.constant 1.500000e+01 : f32
    %160 = vector.broadcast %cst_80 : f32 to vector<8x1xf32>
    %161 = arith.cmpf ole, %155, %160 : vector<8x1xf32>
    %162 = arith.andi %159, %161 : vector<8x1xi1>
    %cst_81 = arith.constant 0.000000e+00 : f32
    %163 = vector.broadcast %cst_81 : f32 to vector<8x1xf32>
    %164 = arith.cmpf oge, %156, %163 : vector<8x1xf32>
    %165 = arith.andi %162, %164 : vector<8x1xi1>
    %cst_82 = arith.constant 1.500000e+01 : f32
    %166 = vector.broadcast %cst_82 : f32 to vector<8x1xf32>
    %167 = arith.cmpf ole, %156, %166 : vector<8x1xf32>
    %168 = arith.andi %165, %167 : vector<8x1xi1>
    %cst_83 = arith.constant 0.000000e+00 : f32
    %169 = vector.broadcast %cst_83 : f32 to vector<8x1xf32>
    %170 = arith.cmpf oge, %157, %169 : vector<8x1xf32>
    %171 = arith.andi %168, %170 : vector<8x1xi1>
    %cst_84 = arith.constant 1.500000e+01 : f32
    %172 = vector.broadcast %cst_84 : f32 to vector<8x1xf32>
    %173 = arith.cmpf ole, %157, %172 : vector<8x1xf32>
    %174 = arith.andi %171, %173 : vector<8x1xi1>
    %175 = arith.extui %174 : vector<8x1xi1> to vector<8x1xi32>
    %176 = arith.sitofp %175 : vector<8x1xi32> to vector<8x1xf32>
    %177 = vector.broadcast %176 : vector<8x1xf32> to vector<8x128xf32>
    %178 = arith.mulf %152, %177 : vector<8x128xf32>
    %179 = arith.truncf %178 : vector<8x128xf32> to vector<8x128xbf16>
    %cst_85 = arith.constant dense<0.000000e+00> : vector<8x128xf32>
    %180 = tpu.matmul %179, %1, %cst_85 {dimension_numbers = #tpu.dot_dimension_numbers<[1], [0], [0], [1], [0, 0, 1, 1], [], []>} : vector<8x128xbf16>, vector<128x128xbf16>, vector<8x128xf32> -> vector<8x128xf32>
    %cst_86 = arith.constant dense<0.000000e+00> : vector<8x128xf32>
    %181 = tpu.matmul %154, %2, %cst_86 {dimension_numbers = #tpu.dot_dimension_numbers<[1], [0], [0], [1], [0, 0, 1, 1], [], []>} : vector<8x8xf32>, vector<8x128xf32>, vector<8x128xf32> -> vector<8x128xf32>
    %182 = arith.addf %180, %181 : vector<8x128xf32>
    %183 = vector.broadcast %4 : vector<1x128xf32> to vector<8x128xf32>
    %184 = arith.addf %182, %183 : vector<8x128xf32>
    %c3_87 = arith.constant 3 : index
    %c0_88 = arith.constant 0 : index
    %c0_89 = arith.constant 0 : index
    %185 = vector.load %arg3[%c3_87, %c0_88, %c0_89] : memref<8x8x128xbf16, #tpu.memory_space<vmem>>, vector<1x8x128xbf16>
    %186 = vector.shape_cast %185 : vector<1x8x128xbf16> to vector<8x128xbf16>
    %187 = arith.extf %186 : vector<8x128xbf16> to vector<8x128xf32>
    %188 = arith.addf %184, %187 : vector<8x128xf32>
    %189 = arith.truncf %188 : vector<8x128xf32> to vector<8x128xbf16>
    %c3_90 = arith.constant 3 : index
    %c0_91 = arith.constant 0 : index
    %c0_92 = arith.constant 0 : index
    %190 = vector.load %arg9[%c3_90, %c0_91, %c0_92] : memref<8x8x128xbf16, #tpu.memory_space<vmem>>, vector<1x8x128xbf16>
    %191 = vector.shape_cast %190 : vector<1x8x128xbf16> to vector<8x128xbf16>
    %192 = vector.shape_cast %189 : vector<8x128xbf16> to vector<1x8x128xbf16>
    tpu.vector_store %arg9[%c3_90, %c0_91, %c0_92], %192 {strides = array<i32>} : memref<8x8x128xbf16, #tpu.memory_space<vmem>>, vector<1x8x128xbf16>,
    %c4 = arith.constant 4 : index
    %c0_93 = arith.constant 0 : index
    %c0_94 = arith.constant 0 : index
    %193 = vector.load %arg4[%c4, %c0_93, %c0_94] : memref<8x8x128xbf16, #tpu.memory_space<vmem>>, vector<1x8x128xbf16>
    %194 = vector.shape_cast %193 : vector<1x8x128xbf16> to vector<8x128xbf16>
    %cst_95 = arith.constant dense<0.000000e+00> : vector<8x128xf32>
    %195 = tpu.matmul %0, %194, %cst_95 {dimension_numbers = #tpu.dot_dimension_numbers<[1], [0], [0], [1], [0, 0, 1, 1], [], []>} : vector<8x8xbf16>, vector<8x128xbf16>, vector<8x128xf32> -> vector<8x128xf32>
    %196 = vector.broadcast %3 : vector<1x128xf32> to vector<8x128xf32>
    %197 = arith.addf %195, %196 : vector<8x128xf32>
    %cst_96 = arith.constant 0.000000e+00 : f32
    %198 = vector.broadcast %cst_96 : f32 to vector<8x128xf32>
    %199 = arith.maximumf %197, %198 : vector<8x128xf32>
    %c4_97 = arith.constant 4 : index
    %c0_98 = arith.constant 0 : index
    %c0_99 = arith.constant 0 : index
    %200 = vector.load %arg2[%c4_97, %c0_98, %c0_99] : memref<8x8x8xf32, #tpu.memory_space<vmem>>, vector<1x8x8xf32>
    %201 = vector.shape_cast %200 : vector<1x8x8xf32> to vector<8x8xf32>
    %202 = vector.extract_strided_slice %201 {offsets = [0, 0], sizes = [8, 1], strides = [1, 1]} : vector<8x8xf32> to vector<8x1xf32>
    %203 = vector.extract_strided_slice %201 {offsets = [0, 1], sizes = [8, 1], strides = [1, 1]} : vector<8x8xf32> to vector<8x1xf32>
    %204 = vector.extract_strided_slice %201 {offsets = [0, 2], sizes = [8, 1], strides = [1, 1]} : vector<8x8xf32> to vector<8x1xf32>
    %cst_100 = arith.constant 0.000000e+00 : f32
    %205 = vector.broadcast %cst_100 : f32 to vector<8x1xf32>
    %206 = arith.cmpf oge, %202, %205 : vector<8x1xf32>
    %cst_101 = arith.constant 1.500000e+01 : f32
    %207 = vector.broadcast %cst_101 : f32 to vector<8x1xf32>
    %208 = arith.cmpf ole, %202, %207 : vector<8x1xf32>
    %209 = arith.andi %206, %208 : vector<8x1xi1>
    %cst_102 = arith.constant 0.000000e+00 : f32
    %210 = vector.broadcast %cst_102 : f32 to vector<8x1xf32>
    %211 = arith.cmpf oge, %203, %210 : vector<8x1xf32>
    %212 = arith.andi %209, %211 : vector<8x1xi1>
    %cst_103 = arith.constant 1.500000e+01 : f32
    %213 = vector.broadcast %cst_103 : f32 to vector<8x1xf32>
    %214 = arith.cmpf ole, %203, %213 : vector<8x1xf32>
    %215 = arith.andi %212, %214 : vector<8x1xi1>
    %cst_104 = arith.constant 0.000000e+00 : f32
    %216 = vector.broadcast %cst_104 : f32 to vector<8x1xf32>
    %217 = arith.cmpf oge, %204, %216 : vector<8x1xf32>
    %218 = arith.andi %215, %217 : vector<8x1xi1>
    %cst_105 = arith.constant 1.500000e+01 : f32
    %219 = vector.broadcast %cst_105 : f32 to vector<8x1xf32>
    %220 = arith.cmpf ole, %204, %219 : vector<8x1xf32>
    %221 = arith.andi %218, %220 : vector<8x1xi1>
    %222 = arith.extui %221 : vector<8x1xi1> to vector<8x1xi32>
    %223 = arith.sitofp %222 : vector<8x1xi32> to vector<8x1xf32>
    %224 = vector.broadcast %223 : vector<8x1xf32> to vector<8x128xf32>
    %225 = arith.mulf %199, %224 : vector<8x128xf32>
    %226 = arith.truncf %225 : vector<8x128xf32> to vector<8x128xbf16>
    %cst_106 = arith.constant dense<0.000000e+00> : vector<8x128xf32>
    %227 = tpu.matmul %226, %1, %cst_106 {dimension_numbers = #tpu.dot_dimension_numbers<[1], [0], [0], [1], [0, 0, 1, 1], [], []>} : vector<8x128xbf16>, vector<128x128xbf16>, vector<8x128xf32> -> vector<8x128xf32>
    %cst_107 = arith.constant dense<0.000000e+00> : vector<8x128xf32>
    %228 = tpu.matmul %201, %2, %cst_107 {dimension_numbers = #tpu.dot_dimension_numbers<[1], [0], [0], [1], [0, 0, 1, 1], [], []>} : vector<8x8xf32>, vector<8x128xf32>, vector<8x128xf32> -> vector<8x128xf32>
    %229 = arith.addf %227, %228 : vector<8x128xf32>
    %230 = vector.broadcast %4 : vector<1x128xf32> to vector<8x128xf32>
    %231 = arith.addf %229, %230 : vector<8x128xf32>
    %c4_108 = arith.constant 4 : index
    %c0_109 = arith.constant 0 : index
    %c0_110 = arith.constant 0 : index
    %232 = vector.load %arg3[%c4_108, %c0_109, %c0_110] : memref<8x8x128xbf16, #tpu.memory_space<vmem>>, vector<1x8x128xbf16>
    %233 = vector.shape_cast %232 : vector<1x8x128xbf16> to vector<8x128xbf16>
    %234 = arith.extf %233 : vector<8x128xbf16> to vector<8x128xf32>
    %235 = arith.addf %231, %234 : vector<8x128xf32>
    %236 = arith.truncf %235 : vector<8x128xf32> to vector<8x128xbf16>
    %c4_111 = arith.constant 4 : index
    %c0_112 = arith.constant 0 : index
    %c0_113 = arith.constant 0 : index
    %237 = vector.load %arg9[%c4_111, %c0_112, %c0_113] : memref<8x8x128xbf16, #tpu.memory_space<vmem>>, vector<1x8x128xbf16>
    %238 = vector.shape_cast %237 : vector<1x8x128xbf16> to vector<8x128xbf16>
    %239 = vector.shape_cast %236 : vector<8x128xbf16> to vector<1x8x128xbf16>
    tpu.vector_store %arg9[%c4_111, %c0_112, %c0_113], %239 {strides = array<i32>} : memref<8x8x128xbf16, #tpu.memory_space<vmem>>, vector<1x8x128xbf16>,
    %c5 = arith.constant 5 : index
    %c0_114 = arith.constant 0 : index
    %c0_115 = arith.constant 0 : index
    %240 = vector.load %arg4[%c5, %c0_114, %c0_115] : memref<8x8x128xbf16, #tpu.memory_space<vmem>>, vector<1x8x128xbf16>
    %241 = vector.shape_cast %240 : vector<1x8x128xbf16> to vector<8x128xbf16>
    %cst_116 = arith.constant dense<0.000000e+00> : vector<8x128xf32>
    %242 = tpu.matmul %0, %241, %cst_116 {dimension_numbers = #tpu.dot_dimension_numbers<[1], [0], [0], [1], [0, 0, 1, 1], [], []>} : vector<8x8xbf16>, vector<8x128xbf16>, vector<8x128xf32> -> vector<8x128xf32>
    %243 = vector.broadcast %3 : vector<1x128xf32> to vector<8x128xf32>
    %244 = arith.addf %242, %243 : vector<8x128xf32>
    %cst_117 = arith.constant 0.000000e+00 : f32
    %245 = vector.broadcast %cst_117 : f32 to vector<8x128xf32>
    %246 = arith.maximumf %244, %245 : vector<8x128xf32>
    %c5_118 = arith.constant 5 : index
    %c0_119 = arith.constant 0 : index
    %c0_120 = arith.constant 0 : index
    %247 = vector.load %arg2[%c5_118, %c0_119, %c0_120] : memref<8x8x8xf32, #tpu.memory_space<vmem>>, vector<1x8x8xf32>
    %248 = vector.shape_cast %247 : vector<1x8x8xf32> to vector<8x8xf32>
    %249 = vector.extract_strided_slice %248 {offsets = [0, 0], sizes = [8, 1], strides = [1, 1]} : vector<8x8xf32> to vector<8x1xf32>
    %250 = vector.extract_strided_slice %248 {offsets = [0, 1], sizes = [8, 1], strides = [1, 1]} : vector<8x8xf32> to vector<8x1xf32>
    %251 = vector.extract_strided_slice %248 {offsets = [0, 2], sizes = [8, 1], strides = [1, 1]} : vector<8x8xf32> to vector<8x1xf32>
    %cst_121 = arith.constant 0.000000e+00 : f32
    %252 = vector.broadcast %cst_121 : f32 to vector<8x1xf32>
    %253 = arith.cmpf oge, %249, %252 : vector<8x1xf32>
    %cst_122 = arith.constant 1.500000e+01 : f32
    %254 = vector.broadcast %cst_122 : f32 to vector<8x1xf32>
    %255 = arith.cmpf ole, %249, %254 : vector<8x1xf32>
    %256 = arith.andi %253, %255 : vector<8x1xi1>
    %cst_123 = arith.constant 0.000000e+00 : f32
    %257 = vector.broadcast %cst_123 : f32 to vector<8x1xf32>
    %258 = arith.cmpf oge, %250, %257 : vector<8x1xf32>
    %259 = arith.andi %256, %258 : vector<8x1xi1>
    %cst_124 = arith.constant 1.500000e+01 : f32
    %260 = vector.broadcast %cst_124 : f32 to vector<8x1xf32>
    %261 = arith.cmpf ole, %250, %260 : vector<8x1xf32>
    %262 = arith.andi %259, %261 : vector<8x1xi1>
    %cst_125 = arith.constant 0.000000e+00 : f32
    %263 = vector.broadcast %cst_125 : f32 to vector<8x1xf32>
    %264 = arith.cmpf oge, %251, %263 : vector<8x1xf32>
    %265 = arith.andi %262, %264 : vector<8x1xi1>
    %cst_126 = arith.constant 1.500000e+01 : f32
    %266 = vector.broadcast %cst_126 : f32 to vector<8x1xf32>
    %267 = arith.cmpf ole, %251, %266 : vector<8x1xf32>
    %268 = arith.andi %265, %267 : vector<8x1xi1>
    %269 = arith.extui %268 : vector<8x1xi1> to vector<8x1xi32>
    %270 = arith.sitofp %269 : vector<8x1xi32> to vector<8x1xf32>
    %271 = vector.broadcast %270 : vector<8x1xf32> to vector<8x128xf32>
    %272 = arith.mulf %246, %271 : vector<8x128xf32>
    %273 = arith.truncf %272 : vector<8x128xf32> to vector<8x128xbf16>
    %cst_127 = arith.constant dense<0.000000e+00> : vector<8x128xf32>
    %274 = tpu.matmul %273, %1, %cst_127 {dimension_numbers = #tpu.dot_dimension_numbers<[1], [0], [0], [1], [0, 0, 1, 1], [], []>} : vector<8x128xbf16>, vector<128x128xbf16>, vector<8x128xf32> -> vector<8x128xf32>
    %cst_128 = arith.constant dense<0.000000e+00> : vector<8x128xf32>
    %275 = tpu.matmul %248, %2, %cst_128 {dimension_numbers = #tpu.dot_dimension_numbers<[1], [0], [0], [1], [0, 0, 1, 1], [], []>} : vector<8x8xf32>, vector<8x128xf32>, vector<8x128xf32> -> vector<8x128xf32>
    %276 = arith.addf %274, %275 : vector<8x128xf32>
    %277 = vector.broadcast %4 : vector<1x128xf32> to vector<8x128xf32>
    %278 = arith.addf %276, %277 : vector<8x128xf32>
    %c5_129 = arith.constant 5 : index
    %c0_130 = arith.constant 0 : index
    %c0_131 = arith.constant 0 : index
    %279 = vector.load %arg3[%c5_129, %c0_130, %c0_131] : memref<8x8x128xbf16, #tpu.memory_space<vmem>>, vector<1x8x128xbf16>
    %280 = vector.shape_cast %279 : vector<1x8x128xbf16> to vector<8x128xbf16>
    %281 = arith.extf %280 : vector<8x128xbf16> to vector<8x128xf32>
    %282 = arith.addf %278, %281 : vector<8x128xf32>
    %283 = arith.truncf %282 : vector<8x128xf32> to vector<8x128xbf16>
    %c5_132 = arith.constant 5 : index
    %c0_133 = arith.constant 0 : index
    %c0_134 = arith.constant 0 : index
    %284 = vector.load %arg9[%c5_132, %c0_133, %c0_134] : memref<8x8x128xbf16, #tpu.memory_space<vmem>>, vector<1x8x128xbf16>
    %285 = vector.shape_cast %284 : vector<1x8x128xbf16> to vector<8x128xbf16>
    %286 = vector.shape_cast %283 : vector<8x128xbf16> to vector<1x8x128xbf16>
    tpu.vector_store %arg9[%c5_132, %c0_133, %c0_134], %286 {strides = array<i32>} : memref<8x8x128xbf16, #tpu.memory_space<vmem>>, vector<1x8x128xbf16>,
    %c6 = arith.constant 6 : index
    %c0_135 = arith.constant 0 : index
    %c0_136 = arith.constant 0 : index
    %287 = vector.load %arg4[%c6, %c0_135, %c0_136] : memref<8x8x128xbf16, #tpu.memory_space<vmem>>, vector<1x8x128xbf16>
    %288 = vector.shape_cast %287 : vector<1x8x128xbf16> to vector<8x128xbf16>
    %cst_137 = arith.constant dense<0.000000e+00> : vector<8x128xf32>
    %289 = tpu.matmul %0, %288, %cst_137 {dimension_numbers = #tpu.dot_dimension_numbers<[1], [0], [0], [1], [0, 0, 1, 1], [], []>} : vector<8x8xbf16>, vector<8x128xbf16>, vector<8x128xf32> -> vector<8x128xf32>
    %290 = vector.broadcast %3 : vector<1x128xf32> to vector<8x128xf32>
    %291 = arith.addf %289, %290 : vector<8x128xf32>
    %cst_138 = arith.constant 0.000000e+00 : f32
    %292 = vector.broadcast %cst_138 : f32 to vector<8x128xf32>
    %293 = arith.maximumf %291, %292 : vector<8x128xf32>
    %c6_139 = arith.constant 6 : index
    %c0_140 = arith.constant 0 : index
    %c0_141 = arith.constant 0 : index
    %294 = vector.load %arg2[%c6_139, %c0_140, %c0_141] : memref<8x8x8xf32, #tpu.memory_space<vmem>>, vector<1x8x8xf32>
    %295 = vector.shape_cast %294 : vector<1x8x8xf32> to vector<8x8xf32>
    %296 = vector.extract_strided_slice %295 {offsets = [0, 0], sizes = [8, 1], strides = [1, 1]} : vector<8x8xf32> to vector<8x1xf32>
    %297 = vector.extract_strided_slice %295 {offsets = [0, 1], sizes = [8, 1], strides = [1, 1]} : vector<8x8xf32> to vector<8x1xf32>
    %298 = vector.extract_strided_slice %295 {offsets = [0, 2], sizes = [8, 1], strides = [1, 1]} : vector<8x8xf32> to vector<8x1xf32>
    %cst_142 = arith.constant 0.000000e+00 : f32
    %299 = vector.broadcast %cst_142 : f32 to vector<8x1xf32>
    %300 = arith.cmpf oge, %296, %299 : vector<8x1xf32>
    %cst_143 = arith.constant 1.500000e+01 : f32
    %301 = vector.broadcast %cst_143 : f32 to vector<8x1xf32>
    %302 = arith.cmpf ole, %296, %301 : vector<8x1xf32>
    %303 = arith.andi %300, %302 : vector<8x1xi1>
    %cst_144 = arith.constant 0.000000e+00 : f32
    %304 = vector.broadcast %cst_144 : f32 to vector<8x1xf32>
    %305 = arith.cmpf oge, %297, %304 : vector<8x1xf32>
    %306 = arith.andi %303, %305 : vector<8x1xi1>
    %cst_145 = arith.constant 1.500000e+01 : f32
    %307 = vector.broadcast %cst_145 : f32 to vector<8x1xf32>
    %308 = arith.cmpf ole, %297, %307 : vector<8x1xf32>
    %309 = arith.andi %306, %308 : vector<8x1xi1>
    %cst_146 = arith.constant 0.000000e+00 : f32
    %310 = vector.broadcast %cst_146 : f32 to vector<8x1xf32>
    %311 = arith.cmpf oge, %298, %310 : vector<8x1xf32>
    %312 = arith.andi %309, %311 : vector<8x1xi1>
    %cst_147 = arith.constant 1.500000e+01 : f32
    %313 = vector.broadcast %cst_147 : f32 to vector<8x1xf32>
    %314 = arith.cmpf ole, %298, %313 : vector<8x1xf32>
    %315 = arith.andi %312, %314 : vector<8x1xi1>
    %316 = arith.extui %315 : vector<8x1xi1> to vector<8x1xi32>
    %317 = arith.sitofp %316 : vector<8x1xi32> to vector<8x1xf32>
    %318 = vector.broadcast %317 : vector<8x1xf32> to vector<8x128xf32>
    %319 = arith.mulf %293, %318 : vector<8x128xf32>
    %320 = arith.truncf %319 : vector<8x128xf32> to vector<8x128xbf16>
    %cst_148 = arith.constant dense<0.000000e+00> : vector<8x128xf32>
    %321 = tpu.matmul %320, %1, %cst_148 {dimension_numbers = #tpu.dot_dimension_numbers<[1], [0], [0], [1], [0, 0, 1, 1], [], []>} : vector<8x128xbf16>, vector<128x128xbf16>, vector<8x128xf32> -> vector<8x128xf32>
    %cst_149 = arith.constant dense<0.000000e+00> : vector<8x128xf32>
    %322 = tpu.matmul %295, %2, %cst_149 {dimension_numbers = #tpu.dot_dimension_numbers<[1], [0], [0], [1], [0, 0, 1, 1], [], []>} : vector<8x8xf32>, vector<8x128xf32>, vector<8x128xf32> -> vector<8x128xf32>
    %323 = arith.addf %321, %322 : vector<8x128xf32>
    %324 = vector.broadcast %4 : vector<1x128xf32> to vector<8x128xf32>
    %325 = arith.addf %323, %324 : vector<8x128xf32>
    %c6_150 = arith.constant 6 : index
    %c0_151 = arith.constant 0 : index
    %c0_152 = arith.constant 0 : index
    %326 = vector.load %arg3[%c6_150, %c0_151, %c0_152] : memref<8x8x128xbf16, #tpu.memory_space<vmem>>, vector<1x8x128xbf16>
    %327 = vector.shape_cast %326 : vector<1x8x128xbf16> to vector<8x128xbf16>
    %328 = arith.extf %327 : vector<8x128xbf16> to vector<8x128xf32>
    %329 = arith.addf %325, %328 : vector<8x128xf32>
    %330 = arith.truncf %329 : vector<8x128xf32> to vector<8x128xbf16>
    %c6_153 = arith.constant 6 : index
    %c0_154 = arith.constant 0 : index
    %c0_155 = arith.constant 0 : index
    %331 = vector.load %arg9[%c6_153, %c0_154, %c0_155] : memref<8x8x128xbf16, #tpu.memory_space<vmem>>, vector<1x8x128xbf16>
    %332 = vector.shape_cast %331 : vector<1x8x128xbf16> to vector<8x128xbf16>
    %333 = vector.shape_cast %330 : vector<8x128xbf16> to vector<1x8x128xbf16>
    tpu.vector_store %arg9[%c6_153, %c0_154, %c0_155], %333 {strides = array<i32>} : memref<8x8x128xbf16, #tpu.memory_space<vmem>>, vector<1x8x128xbf16>,
    %c7 = arith.constant 7 : index
    %c0_156 = arith.constant 0 : index
    %c0_157 = arith.constant 0 : index
    %334 = vector.load %arg4[%c7, %c0_156, %c0_157] : memref<8x8x128xbf16, #tpu.memory_space<vmem>>, vector<1x8x128xbf16>
    %335 = vector.shape_cast %334 : vector<1x8x128xbf16> to vector<8x128xbf16>
    %cst_158 = arith.constant dense<0.000000e+00> : vector<8x128xf32>
    %336 = tpu.matmul %0, %335, %cst_158 {dimension_numbers = #tpu.dot_dimension_numbers<[1], [0], [0], [1], [0, 0, 1, 1], [], []>} : vector<8x8xbf16>, vector<8x128xbf16>, vector<8x128xf32> -> vector<8x128xf32>
    %337 = vector.broadcast %3 : vector<1x128xf32> to vector<8x128xf32>
    %338 = arith.addf %336, %337 : vector<8x128xf32>
    %cst_159 = arith.constant 0.000000e+00 : f32
    %339 = vector.broadcast %cst_159 : f32 to vector<8x128xf32>
    %340 = arith.maximumf %338, %339 : vector<8x128xf32>
    %c7_160 = arith.constant 7 : index
    %c0_161 = arith.constant 0 : index
    %c0_162 = arith.constant 0 : index
    %341 = vector.load %arg2[%c7_160, %c0_161, %c0_162] : memref<8x8x8xf32, #tpu.memory_space<vmem>>, vector<1x8x8xf32>
    %342 = vector.shape_cast %341 : vector<1x8x8xf32> to vector<8x8xf32>
    %343 = vector.extract_strided_slice %342 {offsets = [0, 0], sizes = [8, 1], strides = [1, 1]} : vector<8x8xf32> to vector<8x1xf32>
    %344 = vector.extract_strided_slice %342 {offsets = [0, 1], sizes = [8, 1], strides = [1, 1]} : vector<8x8xf32> to vector<8x1xf32>
    %345 = vector.extract_strided_slice %342 {offsets = [0, 2], sizes = [8, 1], strides = [1, 1]} : vector<8x8xf32> to vector<8x1xf32>
    %cst_163 = arith.constant 0.000000e+00 : f32
    %346 = vector.broadcast %cst_163 : f32 to vector<8x1xf32>
    %347 = arith.cmpf oge, %343, %346 : vector<8x1xf32>
    %cst_164 = arith.constant 1.500000e+01 : f32
    %348 = vector.broadcast %cst_164 : f32 to vector<8x1xf32>
    %349 = arith.cmpf ole, %343, %348 : vector<8x1xf32>
    %350 = arith.andi %347, %349 : vector<8x1xi1>
    %cst_165 = arith.constant 0.000000e+00 : f32
    %351 = vector.broadcast %cst_165 : f32 to vector<8x1xf32>
    %352 = arith.cmpf oge, %344, %351 : vector<8x1xf32>
    %353 = arith.andi %350, %352 : vector<8x1xi1>
    %cst_166 = arith.constant 1.500000e+01 : f32
    %354 = vector.broadcast %cst_166 : f32 to vector<8x1xf32>
    %355 = arith.cmpf ole, %344, %354 : vector<8x1xf32>
    %356 = arith.andi %353, %355 : vector<8x1xi1>
    %cst_167 = arith.constant 0.000000e+00 : f32
    %357 = vector.broadcast %cst_167 : f32 to vector<8x1xf32>
    %358 = arith.cmpf oge, %345, %357 : vector<8x1xf32>
    %359 = arith.andi %356, %358 : vector<8x1xi1>
    %cst_168 = arith.constant 1.500000e+01 : f32
    %360 = vector.broadcast %cst_168 : f32 to vector<8x1xf32>
    %361 = arith.cmpf ole, %345, %360 : vector<8x1xf32>
    %362 = arith.andi %359, %361 : vector<8x1xi1>
    %363 = arith.extui %362 : vector<8x1xi1> to vector<8x1xi32>
    %364 = arith.sitofp %363 : vector<8x1xi32> to vector<8x1xf32>
    %365 = vector.broadcast %364 : vector<8x1xf32> to vector<8x128xf32>
    %366 = arith.mulf %340, %365 : vector<8x128xf32>
    %367 = arith.truncf %366 : vector<8x128xf32> to vector<8x128xbf16>
    %cst_169 = arith.constant dense<0.000000e+00> : vector<8x128xf32>
    %368 = tpu.matmul %367, %1, %cst_169 {dimension_numbers = #tpu.dot_dimension_numbers<[1], [0], [0], [1], [0, 0, 1, 1], [], []>} : vector<8x128xbf16>, vector<128x128xbf16>, vector<8x128xf32> -> vector<8x128xf32>
    %cst_170 = arith.constant dense<0.000000e+00> : vector<8x128xf32>
    %369 = tpu.matmul %342, %2, %cst_170 {dimension_numbers = #tpu.dot_dimension_numbers<[1], [0], [0], [1], [0, 0, 1, 1], [], []>} : vector<8x8xf32>, vector<8x128xf32>, vector<8x128xf32> -> vector<8x128xf32>
    %370 = arith.addf %368, %369 : vector<8x128xf32>
    %371 = vector.broadcast %4 : vector<1x128xf32> to vector<8x128xf32>
    %372 = arith.addf %370, %371 : vector<8x128xf32>
    %c7_171 = arith.constant 7 : index
    %c0_172 = arith.constant 0 : index
    %c0_173 = arith.constant 0 : index
    %373 = vector.load %arg3[%c7_171, %c0_172, %c0_173] : memref<8x8x128xbf16, #tpu.memory_space<vmem>>, vector<1x8x128xbf16>
    %374 = vector.shape_cast %373 : vector<1x8x128xbf16> to vector<8x128xbf16>
    %375 = arith.extf %374 : vector<8x128xbf16> to vector<8x128xf32>
    %376 = arith.addf %372, %375 : vector<8x128xf32>
    %377 = arith.truncf %376 : vector<8x128xf32> to vector<8x128xbf16>
    %c7_174 = arith.constant 7 : index
    %c0_175 = arith.constant 0 : index
    %c0_176 = arith.constant 0 : index
    %378 = vector.load %arg9[%c7_174, %c0_175, %c0_176] : memref<8x8x128xbf16, #tpu.memory_space<vmem>>, vector<1x8x128xbf16>
    %379 = vector.shape_cast %378 : vector<1x8x128xbf16> to vector<8x128xbf16>
    %380 = vector.shape_cast %377 : vector<8x128xbf16> to vector<1x8x128xbf16>
    tpu.vector_store %arg9[%c7_174, %c0_175, %c0_176], %380 {strides = array<i32>} : memref<8x8x128xbf16, #tpu.memory_space<vmem>>, vector<1x8x128xbf16>,
    return
  }
  func.func @transform_0(%arg0: i32) -> (i32, i32) {
    %c0_i32 = arith.constant 0 : i32
    %c0_i32_0 = arith.constant 0 : i32
    return %arg0, %c0_i32 : i32, i32
  }
  func.func @transform_1(%arg0: i32) -> (i32, i32, i32) {
    %c0_i32 = arith.constant 0 : i32
    %c0_i32_0 = arith.constant 0 : i32
    %c0_i32_1 = arith.constant 0 : i32
    return %c0_i32, %arg0, %c0_i32_0 : i32, i32, i32
  }
  func.func @transform_2(%arg0: i32) -> (i32, i32, i32) {
    %c0_i32 = arith.constant 0 : i32
    %c0_i32_0 = arith.constant 0 : i32
    %c0_i32_1 = arith.constant 0 : i32
    return %c0_i32, %arg0, %c0_i32_0 : i32, i32, i32
  }
  func.func @transform_3(%arg0: i32) -> (i32, i32, i32) {
    %c0_i32 = arith.constant 0 : i32
    %c0_i32_0 = arith.constant 0 : i32
    %c0_i32_1 = arith.constant 0 : i32
    %c0_i32_2 = arith.constant 0 : i32
    return %c0_i32, %c0_i32_0, %c0_i32_1 : i32, i32, i32
  }
  func.func @transform_4(%arg0: i32) -> (i32, i32) {
    %c0_i32 = arith.constant 0 : i32
    %c0_i32_0 = arith.constant 0 : i32
    %c0_i32_1 = arith.constant 0 : i32
    return %c0_i32, %c0_i32_0 : i32, i32
  }
  func.func @transform_5(%arg0: i32) -> (i32, i32) {
    %c0_i32 = arith.constant 0 : i32
    %c0_i32_0 = arith.constant 0 : i32
    %c0_i32_1 = arith.constant 0 : i32
    return %c0_i32, %c0_i32_0 : i32, i32
  }
  func.func @transform_6(%arg0: i32) -> (i32, i32) {
    %c0_i32 = arith.constant 0 : i32
    %c0_i32_0 = arith.constant 0 : i32
    %c0_i32_1 = arith.constant 0 : i32
    return %c0_i32, %c0_i32_0 : i32, i32
  }
  func.func @transform_7(%arg0: i32) -> (i32, i32) {
    %c0_i32 = arith.constant 0 : i32
    %c0_i32_0 = arith.constant 0 : i32
    %c0_i32_1 = arith.constant 0 : i32
    return %c0_i32, %c0_i32_0 : i32, i32
  }
  func.func @transform_8(%arg0: i32) -> (i32, i32, i32) {
    %c0_i32 = arith.constant 0 : i32
    %c0_i32_0 = arith.constant 0 : i32
    %c0_i32_1 = arith.constant 0 : i32
    return %c0_i32, %arg0, %c0_i32_0 : i32, i32, i32
  }
}

</mosaic_0001>

<llo_original>
// kernel: tpu_custom_call.1
$region0: #{tpu_custom_call.1}
  #allocation0 [shape = 'u32[]', space=smem, size = 0x4, offset = 0x4, fixed_abs, tag = 'smem constant byte address 0x4 - core index']
  #allocation1 [shape = 'u32[144,128]{1,0:T(1,128)}', space=vmem, size = 0x12000, scoped, tag = 'internal scratch']
  %s0 = inlined_call_operand.vmem [shape: bf16[64,8], index: 0, kind: input, shape index: {}]
  %s1 = inlined_call_operand.vmem [shape: f32[8,64,8], index: 1, kind: input, shape index: {}]
  %s2 = inlined_call_operand.vmem [shape: bf16[8,64,128], index: 2, kind: input, shape index: {}]
  %s3 = inlined_call_operand.vmem [shape: bf16[8,8,128], index: 3, kind: input, shape index: {}]
  %s4 = inlined_call_operand.vmem [shape: f32[1,128], index: 4, kind: input, shape index: {}]
  %s5 = inlined_call_operand.vmem [shape: bf16[128,128], index: 5, kind: input, shape index: {}]
  %s6 = inlined_call_operand.vmem [shape: f32[8,128], index: 6, kind: input, shape index: {}]
  %s7 = inlined_call_operand.vmem [shape: f32[1,128], index: 7, kind: input, shape index: {}]
  %s8 = inlined_call_operand.hbm [shape: bf16[8,64,128], index: 8, kind: output, shape index: {}]
  %s9 = sld [smem:[#allocation0]]
  $region144: #{tpu_custom_call.1} parent=0
    _
  %s11 = ssub.s32 1, %s9
  %s12 = scalar_select 0, %s11, %s9
  $region1: #{tpu_custom_call.1} parent=0
    #allocation2 [shape = 'u8[65536]{0}', space=vmem, size = 0x10000, scoped, tag = 'input window, operand 1']
    #allocation3 [shape = 'u8[32768]{0}', space=vmem, size = 0x8000, scoped, tag = 'input window, operand 2']
    #allocation4 [shape = 'u8[32768]{0}', space=vmem, size = 0x8000, scoped, tag = 'output window, operand 0']
    #allocation5 [shape = 's32[2]{0}', space=sflag, size = 0x8, scoped, tag = 'scoped memory for tpu_custom_call.1']
    %13 = vsyncpa [#allocation5], 0
    %s14 = scalar_lea.sflag [#allocation5], 1
    %15 = vsyncpa %s14, 0
    loop: start=0, step=1, limit=10
    $region2: #{tpu_custom_call.1} parent=1 // loop_pre_header
      _
    $region3: #{tpu_custom_call.1} parent=1 // loop_header
      %s17 = sphi 0, %s21
      %p18 = scmp.ge.s32.totalorder %s17, 10
      %s27 = sphi 0, %s29
      %s30 = sphi 0, %s27
      %s31 = sphi 0, %s30
      %s47 = sphi 0, %s31
      %s53 = sphi 0, %s55
      %s56 = sphi 0, %s53
      %s57 = sphi 0, %s56
      %s73 = sphi 0, %s57
      %s79 = sphi 0, %s81
      %s82 = sphi 0, %s79
      %s83 = sphi 0, %s82
      %s99 = sphi 0, %s83
      %s103 = sphi 0, %s103
      %s105 = sphi 0, %s103
      %s106 = sphi 0, %s105
      %s120 = sphi 0, %s106
      %s124 = sphi 0, %s124
      %s126 = sphi 0, %s124
      %s127 = sphi 0, %s126
      %s141 = sphi 0, %s127
      %s145 = sphi 0, %s145
      %s147 = sphi 0, %s145
      %s148 = sphi 0, %s147
      %s162 = sphi 0, %s148
      %s166 = sphi 0, %s166
      %s168 = sphi 0, %s166
      %s169 = sphi 0, %s168
      %s183 = sphi 0, %s169
      %s187 = sphi 0, %s187
      %s189 = sphi 0, %s187
      %s190 = sphi 0, %s189
      %s204 = sphi 0, %s190
      %s210 = sphi 0, %s212
      %s213 = sphi 0, %s210
      %s214 = sphi 0, %s213
      %s230 = sphi 0, %s214
    $region4: #{tpu_custom_call.1} parent=1 // loop_header_branch
      %20 = sbr.rel (%p18) target = $region8
    $region5: #{tpu_custom_call.1} parent=1 // loop_body
      %s22 = ssub.s32 %s17, 1
      %s23 = ssub.s32 %s17, 2
      %s24 = sadd.s32 %s17, 1
      %s25 = ssub.s32 %s17, %s24
      %p26 = scmp.eq.s32.totalorder %s25, 0
      %s28 = sadd.s32 %s27, 1
      %s29 = scalar_select %p26, %s27, %s28
      %p32 = pneg %p26
      %p33 = scmp.eq.s32.totalorder %s17, 7
      %p34 = por %p32, %p33
      %p35 = scmp.ne.s32.totalorder %s27, %s30
      %p36 = scmp.eq.s32.totalorder %s17, 0
      %p37 = por %p35, %p36
      %p38 = scmp.ne.s32.totalorder %s27, %s30
      %p39 = scmp.eq.s32.totalorder %s22, 7
      %p40 = por %p38, %p39
      %p41 = scmp.ne.s32.totalorder %s30, %s31
      %p42 = scmp.eq.s32.totalorder %s22, 0
      %p43 = por %p41, %p42
      %p44 = scmp.ne.s32.totalorder %s30, %s31
      %p45 = scmp.eq.s32.totalorder %s23, 7
      %p46 = por %p44, %p45
      %p48 = scmp.ne.s32.totalorder %s31, %s47
      %p49 = scmp.eq.s32.totalorder %s23, 0
      %p50 = por %p48, %p49
      %s51 = ssub.s32 %s17, %s24
      %p52 = scmp.eq.s32.totalorder %s51, 0
      %s54 = sadd.s32 %s53, 1
      %s55 = scalar_select %p52, %s53, %s54
      %p58 = pneg %p52
      %p59 = scmp.eq.s32.totalorder %s17, 7
      %p60 = por %p58, %p59
      %p61 = scmp.ne.s32.totalorder %s53, %s56
      %p62 = scmp.eq.s32.totalorder %s17, 0
      %p63 = por %p61, %p62
      %p64 = scmp.ne.s32.totalorder %s53, %s56
      %p65 = scmp.eq.s32.totalorder %s22, 7
      %p66 = por %p64, %p65
      %p67 = scmp.ne.s32.totalorder %s56, %s57
      %p68 = scmp.eq.s32.totalorder %s22, 0
      %p69 = por %p67, %p68
      %p70 = scmp.ne.s32.totalorder %s56, %s57
      %p71 = scmp.eq.s32.totalorder %s23, 7
      %p72 = por %p70, %p71
      %p74 = scmp.ne.s32.totalorder %s57, %s73
      %p75 = scmp.eq.s32.totalorder %s23, 0
      %p76 = por %p74, %p75
      %s77 = ssub.s32 %s17, %s24
      %p78 = scmp.eq.s32.totalorder %s77, 0
      %s80 = sadd.s32 %s79, 1
      %s81 = scalar_select %p78, %s79, %s80
      %p84 = pneg %p78
      %p85 = scmp.eq.s32.totalorder %s17, 7
      %p86 = por %p84, %p85
      %p87 = scmp.ne.s32.totalorder %s79, %s82
      %p88 = scmp.eq.s32.totalorder %s17, 0
      %p89 = por %p87, %p88
      %p90 = scmp.ne.s32.totalorder %s79, %s82
      %p91 = scmp.eq.s32.totalorder %s22, 7
      %p92 = por %p90, %p91
      %p93 = scmp.ne.s32.totalorder %s82, %s83
      %p94 = scmp.eq.s32.totalorder %s22, 0
      %p95 = por %p93, %p94
      %p96 = scmp.ne.s32.totalorder %s82, %s83
      %p97 = scmp.eq.s32.totalorder %s23, 7
      %p98 = por %p96, %p97
      %p100 = scmp.ne.s32.totalorder %s83, %s99
      %p101 = scmp.eq.s32.totalorder %s23, 0
      %p102 = por %p100, %p101
      %s104 = sadd.s32 %s103, 1
      %p107 = scmp.eq.s32.totalorder %s17, 7
      %p108 = scmp.ne.s32.totalorder %s103, %s105
      %p109 = scmp.eq.s32.totalorder %s17, 0
      %p110 = por %p108, %p109
      %p111 = scmp.ne.s32.totalorder %s103, %s105
      %p112 = scmp.eq.s32.totalorder %s22, 7
      %p113 = por %p111, %p112
      %p114 = scmp.ne.s32.totalorder %s105, %s106
      %p115 = scmp.eq.s32.totalorder %s22, 0
      %p116 = por %p114, %p115
      %p117 = scmp.ne.s32.totalorder %s105, %s106
      %p118 = scmp.eq.s32.totalorder %s23, 7
      %p119 = por %p117, %p118
      %p121 = scmp.ne.s32.totalorder %s106, %s120
      %p122 = scmp.eq.s32.totalorder %s23, 0
      %p123 = por %p121, %p122
      %s125 = sadd.s32 %s124, 1
      %p128 = scmp.eq.s32.totalorder %s17, 7
      %p129 = scmp.ne.s32.totalorder %s124, %s126
      %p130 = scmp.eq.s32.totalorder %s17, 0
      %p131 = por %p129, %p130
      %p132 = scmp.ne.s32.totalorder %s124, %s126
      %p133 = scmp.eq.s32.totalorder %s22, 7
      %p134 = por %p132, %p133
      %p135 = scmp.ne.s32.totalorder %s126, %s127
      %p136 = scmp.eq.s32.totalorder %s22, 0
      %p137 = por %p135, %p136
      %p138 = scmp.ne.s32.totalorder %s126, %s127
      %p139 = scmp.eq.s32.totalorder %s23, 7
      %p140 = por %p138, %p139
      %p142 = scmp.ne.s32.totalorder %s127, %s141
      %p143 = scmp.eq.s32.totalorder %s23, 0
      %p144 = por %p142, %p143
      %s146 = sadd.s32 %s145, 1
      %p149 = scmp.eq.s32.totalorder %s17, 7
      %p150 = scmp.ne.s32.totalorder %s145, %s147
      %p151 = scmp.eq.s32.totalorder %s17, 0
      %p152 = por %p150, %p151
      %p153 = scmp.ne.s32.totalorder %s145, %s147
      %p154 = scmp.eq.s32.totalorder %s22, 7
      %p155 = por %p153, %p154
      %p156 = scmp.ne.s32.totalorder %s147, %s148
      %p157 = scmp.eq.s32.totalorder %s22, 0
      %p158 = por %p156, %p157
      %p159 = scmp.ne.s32.totalorder %s147, %s148
      %p160 = scmp.eq.s32.totalorder %s23, 7
      %p161 = por %p159, %p160
      %p163 = scmp.ne.s32.totalorder %s148, %s162
      %p164 = scmp.eq.s32.totalorder %s23, 0
      %p165 = por %p163, %p164
      %s167 = sadd.s32 %s166, 1
      %p170 = scmp.eq.s32.totalorder %s17, 7
      %p171 = scmp.ne.s32.totalorder %s166, %s168
      %p172 = scmp.eq.s32.totalorder %s17, 0
      %p173 = por %p171, %p172
      %p174 = scmp.ne.s32.totalorder %s166, %s168
      %p175 = scmp.eq.s32.totalorder %s22, 7
      %p176 = por %p174, %p175
      %p177 = scmp.ne.s32.totalorder %s168, %s169
      %p178 = scmp.eq.s32.totalorder %s22, 0
      %p179 = por %p177, %p178
      %p180 = scmp.ne.s32.totalorder %s168, %s169
      %p181 = scmp.eq.s32.totalorder %s23, 7
      %p182 = por %p180, %p181
      %p184 = scmp.ne.s32.totalorder %s169, %s183
      %p185 = scmp.eq.s32.totalorder %s23, 0
      %p186 = por %p184, %p185
      %s188 = sadd.s32 %s187, 1
      %p191 = scmp.eq.s32.totalorder %s17, 7
      %p192 = scmp.ne.s32.totalorder %s187, %s189
      %p193 = scmp.eq.s32.totalorder %s17, 0
      %p194 = por %p192, %p193
      %p195 = scmp.ne.s32.totalorder %s187, %s189
      %p196 = scmp.eq.s32.totalorder %s22, 7
      %p197 = por %p195, %p196
      %p198 = scmp.ne.s32.totalorder %s189, %s190
      %p199 = scmp.eq.s32.totalorder %s22, 0
      %p200 = por %p198, %p199
      %p201 = scmp.ne.s32.totalorder %s189, %s190
      %p202 = scmp.eq.s32.totalorder %s23, 7
      %p203 = por %p201, %p202
      %p205 = scmp.ne.s32.totalorder %s190, %s204
      %p206 = scmp.eq.s32.totalorder %s23, 0
      %p207 = por %p205, %p206
      %s208 = ssub.s32 %s17, %s24
      %p209 = scmp.eq.s32.totalorder %s208, 0
      %s211 = sadd.s32 %s210, 1
      %s212 = scalar_select %p209, %s210, %s211
      %p215 = pneg %p209
      %p216 = scmp.eq.s32.totalorder %s17, 7
      %p217 = por %p215, %p216
      %p218 = scmp.ne.s32.totalorder %s210, %s213
      %p219 = scmp.eq.s32.totalorder %s17, 0
      %p220 = por %p218, %p219
      %p221 = scmp.ne.s32.totalorder %s210, %s213
      %p222 = scmp.eq.s32.totalorder %s22, 7
      %p223 = por %p221, %p222
      %p224 = scmp.ne.s32.totalorder %s213, %s214
      %p225 = scmp.eq.s32.totalorder %s22, 0
      %p226 = por %p224, %p225
      %p227 = scmp.ne.s32.totalorder %s213, %s214
      %p228 = scmp.eq.s32.totalorder %s23, 7
      %p229 = por %p227, %p228
      %p231 = scmp.ne.s32.totalorder %s214, %s230
      %p232 = scmp.eq.s32.totalorder %s23, 0
      %p233 = por %p231, %p232
      %p234 = scmp.le.s32.totalorder 1, %s17
      %p235 = scmp.lt.s32.totalorder %s17, 9
      %p236 = pnand %p234, %p235
      %p237 = pneg %p236
      // Predicated region
      $region9: #{tpu_custom_call.1} parent=5 // pred_check
        _
      $region10: #{tpu_custom_call.1} parent=5 // pred_check_branch
        %239 = sbr.rel (%p236) target = $region12
      $region11: #{tpu_custom_call.1} parent=5 // pred_region
        %s240 = ssub.s32 %s17, 1
        // Predicated region
        $region13: #{tpu_custom_call.1} parent=11 // pred_check
          %p241 = pneg %p116
        $region14: #{tpu_custom_call.1} parent=11 // pred_check_branch
          %243 = sbr.rel (%p241) target = $region16
        $region15: #{tpu_custom_call.1} parent=11 // pred_region
          _
        $region16: #{tpu_custom_call.1} parent=11 // pred_fallthru
          _
        // Predicated region
        $region17: #{tpu_custom_call.1} parent=11 // pred_check
          %p244 = pneg %p137
        $region18: #{tpu_custom_call.1} parent=11 // pred_check_branch
          %246 = sbr.rel (%p244) target = $region20
        $region19: #{tpu_custom_call.1} parent=11 // pred_region
          _
        $region20: #{tpu_custom_call.1} parent=11 // pred_fallthru
          _
        // Predicated region
        $region21: #{tpu_custom_call.1} parent=11 // pred_check
          %p247 = pneg %p158
        $region22: #{tpu_custom_call.1} parent=11 // pred_check_branch
          %249 = sbr.rel (%p247) target = $region24
        $region23: #{tpu_custom_call.1} parent=11 // pred_region
          _
        $region24: #{tpu_custom_call.1} parent=11 // pred_fallthru
          _
        // Predicated region
        $region25: #{tpu_custom_call.1} parent=11 // pred_check
          %p250 = pneg %p179
        $region26: #{tpu_custom_call.1} parent=11 // pred_check_branch
          %252 = sbr.rel (%p250) target = $region28
        $region27: #{tpu_custom_call.1} parent=11 // pred_region
          _
        $region28: #{tpu_custom_call.1} parent=11 // pred_fallthru
          _
        // Predicated region
        $region29: #{tpu_custom_call.1} parent=11 // pred_check
          %p253 = pneg %p200
        $region30: #{tpu_custom_call.1} parent=11 // pred_check_branch
          %255 = sbr.rel (%p253) target = $region32
        $region31: #{tpu_custom_call.1} parent=11 // pred_region
          _
        $region32: #{tpu_custom_call.1} parent=11 // pred_fallthru
          _
      $region12: #{tpu_custom_call.1} parent=5 // pred_fallthru
        _
      %p256 = scmp.lt.s32.totalorder %s17, 8
      // Predicated region
      $region33: #{tpu_custom_call.1} parent=5 // pred_check
        %p257 = pneg %p256
      $region34: #{tpu_custom_call.1} parent=5 // pred_check_branch
        %259 = sbr.rel (%p257) target = $region36
      $region35: #{tpu_custom_call.1} parent=5 // pred_region
        // Predicated region
        $region37: #{tpu_custom_call.1} parent=35 // pred_check
          %p260 = pneg %p37
        $region38: #{tpu_custom_call.1} parent=35 // pred_check_branch
          %262 = sbr.rel (%p260) target = $region40
        $region39: #{tpu_custom_call.1} parent=35 // pred_region
          %p263 = scmp.lt.s32.totalorder %s17, 7
          %s264 = scalar_select %p263, %s17, 7
          %s265 = smul.addr %s264, 4
          %s266 = scalar_lea.vmem %s0, %s265
        $region40: #{tpu_custom_call.1} parent=35 // pred_fallthru
          _
        // Predicated region
        $region41: #{tpu_custom_call.1} parent=35 // pred_check
          %p267 = pneg %p63
        $region42: #{tpu_custom_call.1} parent=35 // pred_check_branch
          %269 = sbr.rel (%p267) target = $region44
        $region43: #{tpu_custom_call.1} parent=35 // pred_region
          %s270 = sand.u32 %s53, 1
          %s271 = sand.u32 %s53, 1
          %s272 = smul.addr %s271, 64
          %s273 = scalar_lea.vmem [#allocation2], %s272
          %s274 = smul.addr %s17, 8
          %s275 = scalar_lea.vmem %s1, %s274
          // Predicated region
          $region45: #{tpu_custom_call.1} parent=43 // pred_check
            _
          $region46: #{tpu_custom_call.1} parent=43 // pred_check_branch
            %277 = sbr.rel (0) target = $region48
          $region47: #{tpu_custom_call.1} parent=43 // pred_region
            // Predicated region
            $region49: #{tpu_custom_call.1} parent=47 // pred_check
              _
            $region50: #{tpu_custom_call.1} parent=47 // pred_check_branch
              %279 = sbr.rel (0) target = $region52
            $region51: #{tpu_custom_call.1} parent=47 // pred_region
              // Predicated region
              $region64: #{tpu_custom_call.1} parent=51 // pred_check
                _
              $region65: #{tpu_custom_call.1} parent=51 // pred_check_branch
                %308 = sbr.rel (0) target = $region67
              $region66: #{tpu_custom_call.1} parent=51 // pred_region
                loop: start=0, step=1, limit=1
                $region68: #{tpu_custom_call.1} parent=66 // loop_pre_header
                  _
                $region69: #{tpu_custom_call.1} parent=66 // loop_header
                  %s310 = sphi 0, %s314
                  %p311 = scmp.ge.s32.totalorder %s310, 1
                  %s315 = sphi %s275, %s275
                  %s316 = sphi %s273, %s273
                $region70: #{tpu_custom_call.1} parent=66 // loop_header_branch
                  %313 = sbr.rel (%p311) target = $region74
                $region71: #{tpu_custom_call.1} parent=66 // loop_body
                  %v317 = vld [vmem:[%s315] sm:$0xff]
                  %318 = vst [vmem:[%s316] sm:$0xff] %v317
                  %v319 = vld [vmem:[%s315 + $0x40] sm:$0xff]
                  %320 = vst [vmem:[%s316 + $0x8] sm:$0xff] %v319
                  %v321 = vld [vmem:[%s315 + $0x80] sm:$0xff]
                  %322 = vst [vmem:[%s316 + $0x10] sm:$0xff] %v321
                  %v323 = vld [vmem:[%s315 + $0xc0] sm:$0xff]
                  %324 = vst [vmem:[%s316 + $0x18] sm:$0xff] %v323
                  %v325 = vld [vmem:[%s315 + $0x100] sm:$0xff]
                  %326 = vst [vmem:[%s316 + $0x20] sm:$0xff] %v325
                  %v327 = vld [vmem:[%s315 + $0x140] sm:$0xff]
                  %328 = vst [vmem:[%s316 + $0x28] sm:$0xff] %v327
                  %v329 = vld [vmem:[%s315 + $0x180] sm:$0xff]
                  %330 = vst [vmem:[%s316 + $0x30] sm:$0xff] %v329
                  %v331 = vld [vmem:[%s315 + $0x1c0] sm:$0xff]
                  %332 = vst [vmem:[%s316 + $0x38] sm:$0xff] %v331
                $region72: #{tpu_custom_call.1} parent=66 // loop_footer
                  %s314 = sadd.s32 1, %s310
                $region73: #{tpu_custom_call.1} parent=66 // loop_footer_branch
                  %309 = sbr.rel target = $region69
                $region74: #{tpu_custom_call.1} parent=66 // loop_exit
                  _
              $region67: #{tpu_custom_call.1} parent=51 // pred_fallthru
                _
              // Predicated region
              $region75: #{tpu_custom_call.1} parent=51 // pred_check
                _
              $region76: #{tpu_custom_call.1} parent=51 // pred_check_branch
                %334 = sbr.rel target = $region78
              $region77: #{tpu_custom_call.1} parent=51 // pred_region
                _
              $region78: #{tpu_custom_call.1} parent=51 // pred_fallthru
                _
            $region52: #{tpu_custom_call.1} parent=47 // pred_fallthru
              _
            // Predicated region
            $region53: #{tpu_custom_call.1} parent=47 // pred_check
              _
            $region54: #{tpu_custom_call.1} parent=47 // pred_check_branch
              %281 = sbr.rel target = $region56
            $region55: #{tpu_custom_call.1} parent=47 // pred_region
              loop: start=0, step=1, limit=1
              $region57: #{tpu_custom_call.1} parent=55 // loop_pre_header
                _
              $region58: #{tpu_custom_call.1} parent=55 // loop_header
                %s284 = sphi 0, %s288
                %p285 = scmp.ge.s32.totalorder %s284, 1
                %s289 = sphi %s275, %s275
                %s290 = sphi %s273, %s273
              $region59: #{tpu_custom_call.1} parent=55 // loop_header_branch
                %287 = sbr.rel (%p285) target = $region63
              $region60: #{tpu_custom_call.1} parent=55 // loop_body
                %v291 = vld [vmem:[%s289] sm:$0xff]
                %292 = vst [vmem:[%s290] sm:$0xff] %v291
                %v293 = vld [vmem:[%s289 + $0x40] sm:$0xff]
                %294 = vst [vmem:[%s290 + $0x8] sm:$0xff] %v293
                %v295 = vld [vmem:[%s289 + $0x80] sm:$0xff]
                %296 = vst [vmem:[%s290 + $0x10] sm:$0xff] %v295
                %v297 = vld [vmem:[%s289 + $0xc0] sm:$0xff]
                %298 = vst [vmem:[%s290 + $0x18] sm:$0xff] %v297
                %v299 = vld [vmem:[%s289 + $0x100] sm:$0xff]
                %300 = vst [vmem:[%s290 + $0x20] sm:$0xff] %v299
                %v301 = vld [vmem:[%s289 + $0x140] sm:$0xff]
                %302 = vst [vmem:[%s290 + $0x28] sm:$0xff] %v301
                %v303 = vld [vmem:[%s289 + $0x180] sm:$0xff]
                %304 = vst [vmem:[%s290 + $0x30] sm:$0xff] %v303
                %v305 = vld [vmem:[%s289 + $0x1c0] sm:$0xff]
                %306 = vst [vmem:[%s290 + $0x38] sm:$0xff] %v305
              $region61: #{tpu_custom_call.1} parent=55 // loop_footer
                %s288 = sadd.s32 1, %s284
              $region62: #{tpu_custom_call.1} parent=55 // loop_footer_branch
                %283 = sbr.rel target = $region58
              $region63: #{tpu_custom_call.1} parent=55 // loop_exit
                _
            $region56: #{tpu_custom_call.1} parent=47 // pred_fallthru
              _
          $region48: #{tpu_custom_call.1} parent=43 // pred_fallthru
            _
          %335 = vnop
        $region44: #{tpu_custom_call.1} parent=35 // pred_fallthru
          _
        // Predicated region
        $region79: #{tpu_custom_call.1} parent=35 // pred_check
          %p336 = pneg %p89
        $region80: #{tpu_custom_call.1} parent=35 // pred_check_branch
          %338 = sbr.rel (%p336) target = $region82
        $region81: #{tpu_custom_call.1} parent=35 // pred_region
          %s339 = sand.u32 %s79, 1
          %s340 = sand.u32 %s79, 1
          %s341 = smul.addr %s340, 32
          %s342 = scalar_lea.vmem [#allocation3], %s341
          %s343 = smul.addr %s17, 4
          %s344 = scalar_lea.vmem %s2, %s343
          // Predicated region
          $region83: #{tpu_custom_call.1} parent=81 // pred_check
            _
          $region84: #{tpu_custom_call.1} parent=81 // pred_check_branch
            %346 = sbr.rel (0) target = $region86
          $region85: #{tpu_custom_call.1} parent=81 // pred_region
            // Predicated region
            $region87: #{tpu_custom_call.1} parent=85 // pred_check
              _
            $region88: #{tpu_custom_call.1} parent=85 // pred_check_branch
              %348 = sbr.rel target = $region90
            $region89: #{tpu_custom_call.1} parent=85 // pred_region
              // Predicated region
              $region102: #{tpu_custom_call.1} parent=89 // pred_check
                _
              $region103: #{tpu_custom_call.1} parent=89 // pred_check_branch
                %377 = sbr.rel (0) target = $region105
              $region104: #{tpu_custom_call.1} parent=89 // pred_region
                loop: start=0, step=1, limit=1
                $region106: #{tpu_custom_call.1} parent=104 // loop_pre_header
                  _
                $region107: #{tpu_custom_call.1} parent=104 // loop_header
                  %s379 = sphi 0, %s383
                  %p380 = scmp.ge.s32.totalorder %s379, 1
                  %s384 = sphi %s344, %s344
                  %s385 = sphi %s342, %s342
                $region108: #{tpu_custom_call.1} parent=104 // loop_header_branch
                  %382 = sbr.rel (%p380) target = $region112
                $region109: #{tpu_custom_call.1} parent=104 // loop_body
                  _
                $region110: #{tpu_custom_call.1} parent=104 // loop_footer
                  %s383 = sadd.s32 1, %s379
                $region111: #{tpu_custom_call.1} parent=104 // loop_footer_branch
                  %378 = sbr.rel target = $region107
                $region112: #{tpu_custom_call.1} parent=104 // loop_exit
                  _
                loop: start=0, step=1, limit=1
                $region113: #{tpu_custom_call.1} parent=104 // loop_pre_header
                  _
                $region114: #{tpu_custom_call.1} parent=104 // loop_header
                  %s388 = sphi 0, %s392
                  %p389 = scmp.ge.s32.totalorder %s388, 1
                  %s393 = sphi %s344, %s344
                  %s394 = sphi %s342, %s342
                $region115: #{tpu_custom_call.1} parent=104 // loop_header_branch
                  %391 = sbr.rel (%p389) target = $region119
                $region116: #{tpu_custom_call.1} parent=104 // loop_body
                  %v395 = vld [vmem:[%s393] sm:$0xf]
                  %396 = vst [vmem:[%s394] sm:$0xf] %v395
                  %v397 = vld [vmem:[%s393 + $0x20] sm:$0xf]
                  %398 = vst [vmem:[%s394 + $0x4] sm:$0xf] %v397
                  %v399 = vld [vmem:[%s393 + $0x40] sm:$0xf]
                  %400 = vst [vmem:[%s394 + $0x8] sm:$0xf] %v399
                  %v401 = vld [vmem:[%s393 + $0x60] sm:$0xf]
                  %402 = vst [vmem:[%s394 + $0xc] sm:$0xf] %v401
                  %v403 = vld [vmem:[%s393 + $0x80] sm:$0xf]
                  %404 = vst [vmem:[%s394 + $0x10] sm:$0xf] %v403
                  %v405 = vld [vmem:[%s393 + $0xa0] sm:$0xf]
                  %406 = vst [vmem:[%s394 + $0x14] sm:$0xf] %v405
                  %v407 = vld [vmem:[%s393 + $0xc0] sm:$0xf]
                  %408 = vst [vmem:[%s394 + $0x18] sm:$0xf] %v407
                  %v409 = vld [vmem:[%s393 + $0xe0] sm:$0xf]
                  %410 = vst [vmem:[%s394 + $0x1c] sm:$0xf] %v409
                $region117: #{tpu_custom_call.1} parent=104 // loop_footer
                  %s392 = sadd.s32 1, %s388
                $region118: #{tpu_custom_call.1} parent=104 // loop_footer_branch
                  %387 = sbr.rel target = $region114
                $region119: #{tpu_custom_call.1} parent=104 // loop_exit
                  _
              $region105: #{tpu_custom_call.1} parent=89 // pred_fallthru
                _
            $region90: #{tpu_custom_call.1} parent=85 // pred_fallthru
              _
            // Predicated region
            $region91: #{tpu_custom_call.1} parent=85 // pred_check
              _
            $region92: #{tpu_custom_call.1} parent=85 // pred_check_branch
              %350 = sbr.rel (0) target = $region94
            $region93: #{tpu_custom_call.1} parent=85 // pred_region
              loop: start=0, step=1, limit=1
              $region95: #{tpu_custom_call.1} parent=93 // loop_pre_header
                _
              $region96: #{tpu_custom_call.1} parent=93 // loop_header
                %s353 = sphi 0, %s357
                %p354 = scmp.ge.s32.totalorder %s353, 1
                %s358 = sphi %s344, %s344
                %s359 = sphi %s342, %s342
              $region97: #{tpu_custom_call.1} parent=93 // loop_header_branch
                %356 = sbr.rel (%p354) target = $region101
              $region98: #{tpu_custom_call.1} parent=93 // loop_body
                %v360 = vld [vmem:[%s358] sm:$0xf]
                %361 = vst [vmem:[%s359] sm:$0xf] %v360
                %v362 = vld [vmem:[%s358 + $0x20] sm:$0xf]
                %363 = vst [vmem:[%s359 + $0x4] sm:$0xf] %v362
                %v364 = vld [vmem:[%s358 + $0x40] sm:$0xf]
                %365 = vst [vmem:[%s359 + $0x8] sm:$0xf] %v364
                %v366 = vld [vmem:[%s358 + $0x60] sm:$0xf]
                %367 = vst [vmem:[%s359 + $0xc] sm:$0xf] %v366
                %v368 = vld [vmem:[%s358 + $0x80] sm:$0xf]
                %369 = vst [vmem:[%s359 + $0x10] sm:$0xf] %v368
                %v370 = vld [vmem:[%s358 + $0xa0] sm:$0xf]
                %371 = vst [vmem:[%s359 + $0x14] sm:$0xf] %v370
                %v372 = vld [vmem:[%s358 + $0xc0] sm:$0xf]
                %373 = vst [vmem:[%s359 + $0x18] sm:$0xf] %v372
                %v374 = vld [vmem:[%s358 + $0xe0] sm:$0xf]
                %375 = vst [vmem:[%s359 + $0x1c] sm:$0xf] %v374
              $region99: #{tpu_custom_call.1} parent=93 // loop_footer
                %s357 = sadd.s32 1, %s353
              $region100: #{tpu_custom_call.1} parent=93 // loop_footer_branch
                %352 = sbr.rel target = $region96
              $region101: #{tpu_custom_call.1} parent=93 // loop_exit
                _
            $region94: #{tpu_custom_call.1} parent=85 // pred_fallthru
              _
          $region86: #{tpu_custom_call.1} parent=81 // pred_fallthru
            _
          %411 = vnop
        $region82: #{tpu_custom_call.1} parent=35 // pred_fallthru
          _
      $region36: #{tpu_custom_call.1} parent=5 // pred_fallthru
        _
      %p412 = scmp.le.s32.totalorder 1, %s17
      %p413 = scmp.lt.s32.totalorder %s17, 9
      %p414 = pnand %p412, %p413
      %p415 = pneg %p414
      // Predicated region
      $region120: #{tpu_custom_call.1} parent=5 // pred_check
        _
      $region121: #{tpu_custom_call.1} parent=5 // pred_check_branch
        %417 = sbr.rel (%p414) target = $region123
      $region122: #{tpu_custom_call.1} parent=5 // pred_region
        %s418 = ssub.s32 %s17, 1
        %s419 = sand.u32 %s56, 1
        %s420 = sand.u32 %s56, 1
        %s421 = smul.addr %s420, 64
        %s422 = scalar_lea.vmem [#allocation2], %s421
        // Predicated region
        $region124: #{tpu_custom_call.1} parent=122 // pred_check
          %p423 = pneg %p69
        $region125: #{tpu_custom_call.1} parent=122 // pred_check_branch
          %425 = sbr.rel (%p423) target = $region127
        $region126: #{tpu_custom_call.1} parent=122 // pred_region
          _
        $region127: #{tpu_custom_call.1} parent=122 // pred_fallthru
          _
        %s426 = sand.u32 %s82, 1
        %s427 = sand.u32 %s82, 1
        %s428 = smul.addr %s427, 32
        %s429 = scalar_lea.vmem [#allocation3], %s428
        // Predicated region
        $region128: #{tpu_custom_call.1} parent=122 // pred_check
          %p430 = pneg %p95
        $region129: #{tpu_custom_call.1} parent=122 // pred_check_branch
          %432 = sbr.rel (%p430) target = $region131
        $region130: #{tpu_custom_call.1} parent=122 // pred_region
          _
        $region131: #{tpu_custom_call.1} parent=122 // pred_fallthru
          _
        %p433 = scmp.lt.s32.totalorder %s22, 7
        %s434 = scalar_select %p433, %s22, 7
        %s435 = smul.addr %s434, 4
        %s436 = scalar_lea.vmem %s0, %s435
        %p437 = pneg %p43
        %p438 = pneg %p40
        %s439 = sand.u32 %s56, 1
        %s440 = sand.u32 %s56, 1
        %s441 = smul.addr %s440, 64
        %s442 = scalar_lea.vmem [#allocation2], %s441
        %p443 = pneg %p69
        %p444 = pneg %p66
        %s445 = sand.u32 %s82, 1
        %s446 = sand.u32 %s82, 1
        %s447 = smul.addr %s446, 32
        %s448 = scalar_lea.vmem [#allocation3], %s447
        %p449 = pneg %p95
        %p450 = pneg %p92
        %p451 = pneg %p116
        %p452 = pneg %p113
        %p453 = pneg %p137
        %p454 = pneg %p134
        %p455 = pneg %p158
        %p456 = pneg %p155
        %p457 = pneg %p179
        %p458 = pneg %p176
        %p459 = pneg %p200
        %p460 = pneg %p197
        %p461 = pneg %p226
        %p462 = pneg %p223
        %s463 = sand.u32 %s213, 1
        %s464 = scalar_lea.sflag [#allocation5], %s463
        %s465 = sand.u32 %s213, 1
        %s466 = smul.addr %s465, 32
        %s467 = scalar_lea.vmem [#allocation4], %s466
        %p468 = scmp.lt.s32.totalorder %s22, 7
        %s469 = scalar_select %p468, %s22, 7
        %s470 = smul.addr %s469, 4
        %s471 = scalar_lea.vmem %s0, %s470
        %v473 = vld [vmem:[%s471] sm:$0xf]
        %v474 = vld [vmem:[%s5] sm:$0xf]
        %v475 = vld [vmem:[%s5 + $0x4] sm:$0xf]
        %v476 = vld [vmem:[%s5 + $0x8] sm:$0xf]
        %v477 = vld [vmem:[%s5 + $0xc] sm:$0xf]
        %v478 = vld [vmem:[%s5 + $0x10] sm:$0xf]
        %v479 = vld [vmem:[%s5 + $0x14] sm:$0xf]
        %v480 = vld [vmem:[%s5 + $0x18] sm:$0xf]
        %v481 = vld [vmem:[%s5 + $0x1c] sm:$0xf]
        %v482 = vld [vmem:[%s5 + $0x20] sm:$0xf]
        %v483 = vld [vmem:[%s5 + $0x24] sm:$0xf]
        %v484 = vld [vmem:[%s5 + $0x28] sm:$0xf]
        %v485 = vld [vmem:[%s5 + $0x2c] sm:$0xf]
        %v486 = vld [vmem:[%s5 + $0x30] sm:$0xf]
        %v487 = vld [vmem:[%s5 + $0x34] sm:$0xf]
        %v488 = vld [vmem:[%s5 + $0x38] sm:$0xf]
        %v489 = vld [vmem:[%s5 + $0x3c] sm:$0xf]
        %v490 = vld [vmem:[%s6] sm:$0xff]
        %v491 = vld [vmem:[%s4] sm:$0x1]
        %v492 = vld [vmem:[%s7] sm:$0x1]
        %v493 = vld [vmem:[%s3] sm:$0xf]
        %v495 = vlaneseq
        %v496 = vshrl.u32 %v495, 7
        %v497 = vsub.s32 0, %v496
        %v498 = vrot.slane %v491, %v497
        %vm500 = vcmask 64512
        %v502 = vsel %vm500, %v473, 0
        %vm504 = vcmask 1043456
        %v506 = vsel %vm504, %v493, 0
        %508 = vmatprep.subr.bf16.mxu0 0
        %509 = vmatpush1.bf16.msra.mxu0 %v506
        %510 = vmatprep.subr.bf16.mxu0 0
        %511 = vmatpush1.bf16.msra.mxu0 0
        %512 = vmatprep.subr.bf16.mxu0 0
        %513 = vmatpush1.bf16.msra.mxu0 0
        %514 = vmatprep.subr.bf16.mxu0 0
        %515 = vmatpush1.bf16.msra.mxu0 0
        %516 = vmatprep.subr.bf16.mxu0 0
        %517 = vmatpush1.bf16.msra.mxu0 0
        %518 = vmatprep.subr.bf16.mxu0 0
        %519 = vmatpush1.bf16.msra.mxu0 0
        %520 = vmatprep.subr.bf16.mxu0 0
        %521 = vmatpush1.bf16.msra.mxu0 0
        %522 = vmatprep.subr.bf16.mxu0 0
        %523 = vmatpush1.bf16.msra.mxu0 0
        %524 = vmatprep.subr.bf16.mxu0 0
        %525 = vmatpush1.bf16.msra.mxu0 0
        %526 = vmatprep.subr.bf16.mxu0 0
        %527 = vmatpush1.bf16.msra.mxu0 0
        %528 = vmatprep.subr.bf16.mxu0 0
        %529 = vmatpush1.bf16.msra.mxu0 0
        %530 = vmatprep.subr.bf16.mxu0 0
        %531 = vmatpush1.bf16.msra.mxu0 0
        %532 = vmatprep.subr.bf16.mxu0 0
        %533 = vmatpush1.bf16.msra.mxu0 0
        %534 = vmatprep.subr.bf16.mxu0 0
        %535 = vmatpush1.bf16.msra.mxu0 0
        %536 = vmatprep.subr.bf16.mxu0 0
        %537 = vmatpush1.bf16.msra.mxu0 0
        %538 = vmatprep.subr.bf16.mxu0 0
        %539 = vmatpush1.bf16.msra.mxu0 0
        %540 = vmatprep.mubr.bf16.mxu0 0
        %541 = vmatmul.mubr.bf16.gmra.mrb[0].mxu0 %v502
        %v542 = vpop.f32.mrb[0].mxu0
        %v543 = vadd.f32 %v498, %v542
        %v544 = vpop.f32.mrb[0].mxu0
        %v545 = vpop.f32.mrb[0].mxu0
        %v546 = vpop.f32.mrb[0].mxu0
        %547 = vdwg.mxu0
        %v548 = vmax.f32 %v543, 0.0
        %v549 = vld [vmem:[%s422] sm:$0xff]
        %vm550 = vcmp.ge.f32.partialorder %v549, 0.0
        %vm551 = vcmp.le.f32.partialorder %v549, 15.0
        %vm552 = vmand %vm550, %vm551
        %v553 = vsel %vm550, 1, 0
        %554 = vrot.lane.b32.xlu0 %v553, 127
        %v555 = vpop.permute.xlu0 %554
        %vm556 = vcmp.ne.s32.totalorder %v555, 0
        %vm557 = vmand %vm552, %vm556
        %v558 = vsel %vm551, 1, 0
        %559 = vrot.lane.b32.xlu0 %v558, 127
        %v560 = vpop.permute.xlu0 %559
        %vm561 = vcmp.ne.s32.totalorder %v560, 0
        %vm562 = vmand %vm557, %vm561
        %563 = vrot.lane.b32.xlu0 %v553, 126
        %v564 = vpop.permute.xlu0 %563
        %vm565 = vcmp.ne.s32.totalorder %v564, 0
        %vm566 = vmand %vm562, %vm565
        %567 = vrot.lane.b32.xlu0 %v558, 126
        %v568 = vpop.permute.xlu0 %567
        %vm569 = vcmp.ne.s32.totalorder %v568, 0
        %vm570 = vmand %vm566, %vm569
        %v571 = vsel %vm570, 1, 0
        %v572 = vcvt.s32.f32 %v571
        %574 = vset.pattern.permute.xlu0 0
        %575 = vperm.xlu0 %574, %v572
        %v576 = vpop.permute.xlu0 %575
        %v578 = vmul.f32 %v548, %v576
        %v579 = vpack.c.bf16 %v578, %v578
        %v581 = vsel %vm500, %v549, 0
        %583 = vmatprep.subr.mxu0 0.0
        %584 = vmatpush1.msra.mxu0 %v490
        %585 = vmatprep.subr.mxu0 0.0
        %586 = vmatpush1.msra.mxu0 0.0
        %587 = vmatprep.subr.mxu0 0.0
        %588 = vmatpush1.msra.mxu0 0.0
        %589 = vmatprep.subr.mxu0 0.0
        %590 = vmatpush1.msra.mxu0 0.0
        %591 = vmatprep.subr.mxu0 0.0
        %592 = vmatpush1.msra.mxu0 0.0
        %593 = vmatprep.subr.mxu0 0.0
        %594 = vmatpush1.msra.mxu0 0.0
        %595 = vmatprep.subr.mxu0 0.0
        %596 = vmatpush1.msra.mxu0 0.0
        %597 = vmatprep.subr.mxu0 0.0
        %598 = vmatpush1.msra.mxu0 0.0
        %599 = vmatprep.subr.mxu0 0.0
        %600 = vmatpush1.msra.mxu0 0.0
        %601 = vmatprep.subr.mxu0 0.0
        %602 = vmatpush1.msra.mxu0 0.0
        %603 = vmatprep.subr.mxu0 0.0
        %604 = vmatpush1.msra.mxu0 0.0
        %605 = vmatprep.subr.mxu0 0.0
        %606 = vmatpush1.msra.mxu0 0.0
        %607 = vmatprep.subr.mxu0 0.0
        %608 = vmatpush1.msra.mxu0 0.0
        %609 = vmatprep.subr.mxu0 0.0
        %610 = vmatpush1.msra.mxu0 0.0
        %611 = vmatprep.subr.mxu0 0.0
        %612 = vmatpush1.msra.mxu0 0.0
        %613 = vmatprep.subr.mxu0 0.0
        %614 = vmatpush1.msra.mxu0 0.0
        %615 = vmatprep.subr.mxu0 0.0
        %616 = vmatpush1.msra.mxu0 0.0
        %617 = vmatprep.subr.mxu0 0.0
        %618 = vmatpush1.msra.mxu0 0.0
        %619 = vmatprep.subr.mxu0 0.0
        %620 = vmatpush1.msra.mxu0 0.0
        %621 = vmatprep.subr.mxu0 0.0
        %622 = vmatpush1.msra.mxu0 0.0
        %623 = vmatprep.subr.mxu0 0.0
        %624 = vmatpush1.msra.mxu0 0.0
        %625 = vmatprep.subr.mxu0 0.0
        %626 = vmatpush1.msra.mxu0 0.0
        %627 = vmatprep.subr.mxu0 0.0
        %628 = vmatpush1.msra.mxu0 0.0
        %629 = vmatprep.subr.mxu0 0.0
        %630 = vmatpush1.msra.mxu0 0.0
        %631 = vmatprep.subr.mxu0 0.0
        %632 = vmatpush1.msra.mxu0 0.0
        %633 = vmatprep.subr.mxu0 0.0
        %634 = vmatpush1.msra.mxu0 0.0
        %635 = vmatprep.subr.mxu0 0.0
        %636 = vmatpush1.msra.mxu0 0.0
        %637 = vmatprep.subr.mxu0 0.0
        %638 = vmatpush1.msra.mxu0 0.0
        %639 = vmatprep.subr.mxu0 0.0
        %640 = vmatpush1.msra.mxu0 0.0
        %641 = vmatprep.subr.mxu0 0.0
        %642 = vmatpush1.msra.mxu0 0.0
        %643 = vmatprep.subr.mxu0 0.0
        %644 = vmatpush1.msra.mxu0 0.0
        %645 = vmatprep.subr.mxu0 0.0
        %646 = vmatpush1.msra.mxu0 0.0
        %647 = vmatprep.mubr.f32.mxu0 0.0
        %648 = vmatmul.mubr.f32.gmra.mrb[0].mxu0 %v581
        %v649 = vpop.f32.mrb[0].mxu0
        %v650 = vadd.f32 0.0, %v649
        %v651 = vpop.f32.mrb[0].mxu0
        %652 = vdwg.mxu0
        %v669 = vunpack.c.l.b16 %v474
        %v670 = vunpack.c.l.b16 %v475
        %v671 = vunpack.c.l.b16 %v476
        %v672 = vunpack.c.l.b16 %v477
        %v673 = vunpack.c.l.b16 %v478
        %v674 = vunpack.c.l.b16 %v479
        %v675 = vunpack.c.l.b16 %v480
        %v676 = vunpack.c.l.b16 %v481
        %v677 = vunpack.c.l.b16 %v482
        %v678 = vunpack.c.l.b16 %v483
        %v679 = vunpack.c.l.b16 %v484
        %v680 = vunpack.c.l.b16 %v485
        %v681 = vunpack.c.l.b16 %v486
        %v682 = vunpack.c.l.b16 %v487
        %v683 = vunpack.c.l.b16 %v488
        %v684 = vunpack.c.l.b16 %v489
        %v685 = vpack.c.b16 %v670, %v669
        %v686 = vpack.c.b16 %v672, %v671
        %v687 = vpack.c.b16 %v674, %v673
        %v688 = vpack.c.b16 %v676, %v675
        %v689 = vpack.c.b16 %v678, %v677
        %v690 = vpack.c.b16 %v680, %v679
        %v691 = vpack.c.b16 %v682, %v681
        %v692 = vpack.c.b16 %v684, %v683
        %701 = vmatprep.subr.bf16.mxu0 0
        %702 = vmatpush1.bf16.msra.mxu0 %v685
        %703 = vmatprep.subr.bf16.mxu0 0
        %704 = vmatpush1.bf16.msra.mxu0 %v686
        %705 = vmatprep.subr.bf16.mxu0 0
        %706 = vmatpush1.bf16.msra.mxu0 %v687
        %707 = vmatprep.subr.bf16.mxu0 0
        %708 = vmatpush1.bf16.msra.mxu0 %v688
        %709 = vmatprep.subr.bf16.mxu0 0
        %710 = vmatpush1.bf16.msra.mxu0 %v689
        %711 = vmatprep.subr.bf16.mxu0 0
        %712 = vmatpush1.bf16.msra.mxu0 %v690
        %713 = vmatprep.subr.bf16.mxu0 0
        %714 = vmatpush1.bf16.msra.mxu0 %v691
        %715 = vmatprep.subr.bf16.mxu0 0
        %716 = vmatpush1.bf16.msra.mxu0 %v692
        %717 = vmatprep.subr.bf16.mxu0 0
        %718 = vmatpush1.bf16.msra.mxu0 0
        %719 = vmatprep.subr.bf16.mxu0 0
        %720 = vmatpush1.bf16.msra.mxu0 0
        %721 = vmatprep.subr.bf16.mxu0 0
        %722 = vmatpush1.bf16.msra.mxu0 0
        %723 = vmatprep.subr.bf16.mxu0 0
        %724 = vmatpush1.bf16.msra.mxu0 0
        %725 = vmatprep.subr.bf16.mxu0 0
        %726 = vmatpush1.bf16.msra.mxu0 0
        %727 = vmatprep.subr.bf16.mxu0 0
        %728 = vmatpush1.bf16.msra.mxu0 0
        %729 = vmatprep.subr.bf16.mxu0 0
        %730 = vmatpush1.bf16.msra.mxu0 0
        %731 = vmatprep.subr.bf16.mxu0 0
        %732 = vmatpush1.bf16.msra.mxu0 0
        %733 = vmatprep.mubr.bf16.mxu0 0
        %734 = vmatmul.mubr.bf16.gmra.mrb[0].mxu0 %v579
        %v735 = vpop.f32.mrb[0].mxu0
        %v736 = vadd.f32 %v650, %v735
        %v737 = vpop.f32.mrb[0].mxu0
        %v738 = vpop.f32.mrb[0].mxu0
        %v739 = vpop.f32.mrb[0].mxu0
        %740 = vdwg.mxu0
        %v742 = vlaneseq
        %v743 = vshrl.u32 %v742, 7
        %v744 = vsub.s32 0, %v743
        %v745 = vrot.slane %v492, %v744
        %v747 = vadd.f32 %v736, %v745
        %v748 = vld [vmem:[%s429] sm:$0xf]
        %v749 = vunpack.c.l.bf16 %v748
        %v750 = vadd.f32 %v747, %v749
        %v751 = vpack.c.bf16 %v750, %v750
        %752 = vst [vmem:[%s467] sm:$0xf] %v751
        %s753 = scalar_lea.vmem %s3, 4
        %v754 = vld [vmem:[%s753] sm:$0xf]
        %v756 = vsel %vm504, %v754, 0
        %758 = vmatprep.subr.bf16.mxu0 0
        %759 = vmatpush1.bf16.msra.mxu0 %v756
        %760 = vmatprep.subr.bf16.mxu0 0
        %761 = vmatpush1.bf16.msra.mxu0 0
        %762 = vmatprep.subr.bf16.mxu0 0
        %763 = vmatpush1.bf16.msra.mxu0 0
        %764 = vmatprep.subr.bf16.mxu0 0
        %765 = vmatpush1.bf16.msra.mxu0 0
        %766 = vmatprep.subr.bf16.mxu0 0
        %767 = vmatpush1.bf16.msra.mxu0 0
        %768 = vmatprep.subr.bf16.mxu0 0
        %769 = vmatpush1.bf16.msra.mxu0 0
        %770 = vmatprep.subr.bf16.mxu0 0
        %771 = vmatpush1.bf16.msra.mxu0 0
        %772 = vmatprep.subr.bf16.mxu0 0
        %773 = vmatpush1.bf16.msra.mxu0 0
        %774 = vmatprep.subr.bf16.mxu0 0
        %775 = vmatpush1.bf16.msra.mxu0 0
        %776 = vmatprep.subr.bf16.mxu0 0
        %777 = vmatpush1.bf16.msra.mxu0 0
        %778 = vmatprep.subr.bf16.mxu0 0
        %779 = vmatpush1.bf16.msra.mxu0 0
        %780 = vmatprep.subr.bf16.mxu0 0
        %781 = vmatpush1.bf16.msra.mxu0 0
        %782 = vmatprep.subr.bf16.mxu0 0
        %783 = vmatpush1.bf16.msra.mxu0 0
        %784 = vmatprep.subr.bf16.mxu0 0
        %785 = vmatpush1.bf16.msra.mxu0 0
        %786 = vmatprep.subr.bf16.mxu0 0
        %787 = vmatpush1.bf16.msra.mxu0 0
        %788 = vmatprep.subr.bf16.mxu0 0
        %789 = vmatpush1.bf16.msra.mxu0 0
        %790 = vmatprep.mubr.bf16.mxu0 0
        %791 = vmatmul.mubr.bf16.gmra.mrb[0].mxu0 %v502
        %v792 = vpop.f32.mrb[0].mxu0
        %v793 = vadd.f32 %v498, %v792
        %v794 = vpop.f32.mrb[0].mxu0
        %v795 = vpop.f32.mrb[0].mxu0
        %v796 = vpop.f32.mrb[0].mxu0
        %797 = vdwg.mxu0
        %v798 = vmax.f32 %v793, 0.0
        %s799 = scalar_lea.vmem %s422, 8 [#allocation2]
        %v800 = vld [vmem:[%s799] sm:$0xff]
        %vm801 = vcmp.ge.f32.partialorder %v800, 0.0
        %vm802 = vcmp.le.f32.partialorder %v800, 15.0
        %vm803 = vmand %vm801, %vm802
        %v804 = vsel %vm801, 1, 0
        %805 = vrot.lane.b32.xlu0 %v804, 127
        %v806 = vpop.permute.xlu0 %805
        %vm807 = vcmp.ne.s32.totalorder %v806, 0
        %vm808 = vmand %vm803, %vm807
        %v809 = vsel %vm802, 1, 0
        %810 = vrot.lane.b32.xlu0 %v809, 127
        %v811 = vpop.permute.xlu0 %810
        %vm812 = vcmp.ne.s32.totalorder %v811, 0
        %vm813 = vmand %vm808, %vm812
        %814 = vrot.lane.b32.xlu0 %v804, 126
        %v815 = vpop.permute.xlu0 %814
        %vm816 = vcmp.ne.s32.totalorder %v815, 0
        %vm817 = vmand %vm813, %vm816
        %818 = vrot.lane.b32.xlu0 %v809, 126
        %v819 = vpop.permute.xlu0 %818
        %vm820 = vcmp.ne.s32.totalorder %v819, 0
        %vm821 = vmand %vm817, %vm820
        %v822 = vsel %vm821, 1, 0
        %v823 = vcvt.s32.f32 %v822
        %825 = vset.pattern.permute.xlu0 0
        %826 = vperm.xlu0 %825, %v823
        %v827 = vpop.permute.xlu0 %826
        %v829 = vmul.f32 %v798, %v827
        %v830 = vpack.c.bf16 %v829, %v829
        %v832 = vsel %vm500, %v800, 0
        %834 = vmatprep.subr.mxu0 0.0
        %835 = vmatpush1.msra.mxu0 %v490
        %836 = vmatprep.subr.mxu0 0.0
        %837 = vmatpush1.msra.mxu0 0.0
        %838 = vmatprep.subr.mxu0 0.0
        %839 = vmatpush1.msra.mxu0 0.0
        %840 = vmatprep.subr.mxu0 0.0
        %841 = vmatpush1.msra.mxu0 0.0
        %842 = vmatprep.subr.mxu0 0.0
        %843 = vmatpush1.msra.mxu0 0.0
        %844 = vmatprep.subr.mxu0 0.0
        %845 = vmatpush1.msra.mxu0 0.0
        %846 = vmatprep.subr.mxu0 0.0
        %847 = vmatpush1.msra.mxu0 0.0
        %848 = vmatprep.subr.mxu0 0.0
        %849 = vmatpush1.msra.mxu0 0.0
        %850 = vmatprep.subr.mxu0 0.0
        %851 = vmatpush1.msra.mxu0 0.0
        %852 = vmatprep.subr.mxu0 0.0
        %853 = vmatpush1.msra.mxu0 0.0
        %854 = vmatprep.subr.mxu0 0.0
        %855 = vmatpush1.msra.mxu0 0.0
        %856 = vmatprep.subr.mxu0 0.0
        %857 = vmatpush1.msra.mxu0 0.0
        %858 = vmatprep.subr.mxu0 0.0
        %859 = vmatpush1.msra.mxu0 0.0
        %860 = vmatprep.subr.mxu0 0.0
        %861 = vmatpush1.msra.mxu0 0.0
        %862 = vmatprep.subr.mxu0 0.0
        %863 = vmatpush1.msra.mxu0 0.0
        %864 = vmatprep.subr.mxu0 0.0
        %865 = vmatpush1.msra.mxu0 0.0
        %866 = vmatprep.subr.mxu0 0.0
        %867 = vmatpush1.msra.mxu0 0.0
        %868 = vmatprep.subr.mxu0 0.0
        %869 = vmatpush1.msra.mxu0 0.0
        %870 = vmatprep.subr.mxu0 0.0
        %871 = vmatpush1.msra.mxu0 0.0
        %872 = vmatprep.subr.mxu0 0.0
        %873 = vmatpush1.msra.mxu0 0.0
        %874 = vmatprep.subr.mxu0 0.0
        %875 = vmatpush1.msra.mxu0 0.0
        %876 = vmatprep.subr.mxu0 0.0
        %877 = vmatpush1.msra.mxu0 0.0
        %878 = vmatprep.subr.mxu0 0.0
        %879 = vmatpush1.msra.mxu0 0.0
        %880 = vmatprep.subr.mxu0 0.0
        %881 = vmatpush1.msra.mxu0 0.0
        %882 = vmatprep.subr.mxu0 0.0
        %883 = vmatpush1.msra.mxu0 0.0
        %884 = vmatprep.subr.mxu0 0.0
        %885 = vmatpush1.msra.mxu0 0.0
        %886 = vmatprep.subr.mxu0 0.0
        %887 = vmatpush1.msra.mxu0 0.0
        %888 = vmatprep.subr.mxu0 0.0
        %889 = vmatpush1.msra.mxu0 0.0
        %890 = vmatprep.subr.mxu0 0.0
        %891 = vmatpush1.msra.mxu0 0.0
        %892 = vmatprep.subr.mxu0 0.0
        %893 = vmatpush1.msra.mxu0 0.0
        %894 = vmatprep.subr.mxu0 0.0
        %895 = vmatpush1.msra.mxu0 0.0
        %896 = vmatprep.subr.mxu0 0.0
        %897 = vmatpush1.msra.mxu0 0.0
        %898 = vmatprep.mubr.f32.mxu0 0.0
        %899 = vmatmul.mubr.f32.gmra.mrb[0].mxu0 %v832
        %v900 = vpop.f32.mrb[0].mxu0
        %v901 = vadd.f32 0.0, %v900
        %v902 = vpop.f32.mrb[0].mxu0
        %903 = vdwg.mxu0
        %904 = vmatprep.subr.bf16.mxu0 0
        %905 = vmatpush1.bf16.msra.mxu0 %v685
        %906 = vmatprep.subr.bf16.mxu0 0
        %907 = vmatpush1.bf16.msra.mxu0 %v686
        %908 = vmatprep.subr.bf16.mxu0 0
        %909 = vmatpush1.bf16.msra.mxu0 %v687
        %910 = vmatprep.subr.bf16.mxu0 0
        %911 = vmatpush1.bf16.msra.mxu0 %v688
        %912 = vmatprep.subr.bf16.mxu0 0
        %913 = vmatpush1.bf16.msra.mxu0 %v689
        %914 = vmatprep.subr.bf16.mxu0 0
        %915 = vmatpush1.bf16.msra.mxu0 %v690
        %916 = vmatprep.subr.bf16.mxu0 0
        %917 = vmatpush1.bf16.msra.mxu0 %v691
        %918 = vmatprep.subr.bf16.mxu0 0
        %919 = vmatpush1.bf16.msra.mxu0 %v692
        %920 = vmatprep.subr.bf16.mxu0 0
        %921 = vmatpush1.bf16.msra.mxu0 0
        %922 = vmatprep.subr.bf16.mxu0 0
        %923 = vmatpush1.bf16.msra.mxu0 0
        %924 = vmatprep.subr.bf16.mxu0 0
        %925 = vmatpush1.bf16.msra.mxu0 0
        %926 = vmatprep.subr.bf16.mxu0 0
        %927 = vmatpush1.bf16.msra.mxu0 0
        %928 = vmatprep.subr.bf16.mxu0 0
        %929 = vmatpush1.bf16.msra.mxu0 0
        %930 = vmatprep.subr.bf16.mxu0 0
        %931 = vmatpush1.bf16.msra.mxu0 0
        %932 = vmatprep.subr.bf16.mxu0 0
        %933 = vmatpush1.bf16.msra.mxu0 0
        %934 = vmatprep.subr.bf16.mxu0 0
        %935 = vmatpush1.bf16.msra.mxu0 0
        %936 = vmatprep.mubr.bf16.mxu0 0
        %937 = vmatmul.mubr.bf16.gmra.mrb[0].mxu0 %v830
        %v938 = vpop.f32.mrb[0].mxu0
        %v939 = vadd.f32 %v901, %v938
        %v940 = vpop.f32.mrb[0].mxu0
        %v941 = vpop.f32.mrb[0].mxu0
        %v942 = vpop.f32.mrb[0].mxu0
        %943 = vdwg.mxu0
        %v944 = vadd.f32 %v939, %v745
        %s945 = scalar_lea.vmem %s429, 4 [#allocation3]
        %v946 = vld [vmem:[%s945] sm:$0xf]
        %v947 = vunpack.c.l.bf16 %v946
        %v948 = vadd.f32 %v944, %v947
        %v949 = vpack.c.bf16 %v948, %v948
        %s950 = scalar_lea.vmem %s467, 4 [#allocation4]
        %951 = vst [vmem:[%s950] sm:$0xf] %v949
        %s952 = scalar_lea.vmem %s3, 8
        %v953 = vld [vmem:[%s952] sm:$0xf]
        %v955 = vsel %vm504, %v953, 0
        %957 = vmatprep.subr.bf16.mxu0 0
        %958 = vmatpush1.bf16.msra.mxu0 %v955
        %959 = vmatprep.subr.bf16.mxu0 0
        %960 = vmatpush1.bf16.msra.mxu0 0
        %961 = vmatprep.subr.bf16.mxu0 0
        %962 = vmatpush1.bf16.msra.mxu0 0
        %963 = vmatprep.subr.bf16.mxu0 0
        %964 = vmatpush1.bf16.msra.mxu0 0
        %965 = vmatprep.subr.bf16.mxu0 0
        %966 = vmatpush1.bf16.msra.mxu0 0
        %967 = vmatprep.subr.bf16.mxu0 0
        %968 = vmatpush1.bf16.msra.mxu0 0
        %969 = vmatprep.subr.bf16.mxu0 0
        %970 = vmatpush1.bf16.msra.mxu0 0
        %971 = vmatprep.subr.bf16.mxu0 0
        %972 = vmatpush1.bf16.msra.mxu0 0
        %973 = vmatprep.subr.bf16.mxu0 0
        %974 = vmatpush1.bf16.msra.mxu0 0
        %975 = vmatprep.subr.bf16.mxu0 0
        %976 = vmatpush1.bf16.msra.mxu0 0
        %977 = vmatprep.subr.bf16.mxu0 0
        %978 = vmatpush1.bf16.msra.mxu0 0
        %979 = vmatprep.subr.bf16.mxu0 0
        %980 = vmatpush1.bf16.msra.mxu0 0
        %981 = vmatprep.subr.bf16.mxu0 0
        %982 = vmatpush1.bf16.msra.mxu0 0
        %983 = vmatprep.subr.bf16.mxu0 0
        %984 = vmatpush1.bf16.msra.mxu0 0
        %985 = vmatprep.subr.bf16.mxu0 0
        %986 = vmatpush1.bf16.msra.mxu0 0
        %987 = vmatprep.subr.bf16.mxu0 0
        %988 = vmatpush1.bf16.msra.mxu0 0
        %989 = vmatprep.mubr.bf16.mxu0 0
        %990 = vmatmul.mubr.bf16.gmra.mrb[0].mxu0 %v502
        %v991 = vpop.f32.mrb[0].mxu0
        %v992 = vadd.f32 %v498, %v991
        %v993 = vpop.f32.mrb[0].mxu0
        %v994 = vpop.f32.mrb[0].mxu0
        %v995 = vpop.f32.mrb[0].mxu0
        %996 = vdwg.mxu0
        %v997 = vmax.f32 %v992, 0.0
        %s998 = scalar_lea.vmem %s422, 16 [#allocation2]
        %v999 = vld [vmem:[%s998] sm:$0xff]
        %vm1000 = vcmp.ge.f32.partialorder %v999, 0.0
        %vm1001 = vcmp.le.f32.partialorder %v999, 15.0
        %vm1002 = vmand %vm1000, %vm1001
        %v1003 = vsel %vm1000, 1, 0
        %1004 = vrot.lane.b32.xlu0 %v1003, 127
        %v1005 = vpop.permute.xlu0 %1004
        %vm1006 = vcmp.ne.s32.totalorder %v1005, 0
        %vm1007 = vmand %vm1002, %vm1006
        %v1008 = vsel %vm1001, 1, 0
        %1009 = vrot.lane.b32.xlu0 %v1008, 127
        %v1010 = vpop.permute.xlu0 %1009
        %vm1011 = vcmp.ne.s32.totalorder %v1010, 0
        %vm1012 = vmand %vm1007, %vm1011
        %1013 = vrot.lane.b32.xlu0 %v1003, 126
        %v1014 = vpop.permute.xlu0 %1013
        %vm1015 = vcmp.ne.s32.totalorder %v1014, 0
        %vm1016 = vmand %vm1012, %vm1015
        %1017 = vrot.lane.b32.xlu0 %v1008, 126
        %v1018 = vpop.permute.xlu0 %1017
        %vm1019 = vcmp.ne.s32.totalorder %v1018, 0
        %vm1020 = vmand %vm1016, %vm1019
        %v1021 = vsel %vm1020, 1, 0
        %v1022 = vcvt.s32.f32 %v1021
        %1024 = vset.pattern.permute.xlu0 0
        %1025 = vperm.xlu0 %1024, %v1022
        %v1026 = vpop.permute.xlu0 %1025
        %v1028 = vmul.f32 %v997, %v1026
        %v1029 = vpack.c.bf16 %v1028, %v1028
        %v1031 = vsel %vm500, %v999, 0
        %1033 = vmatprep.subr.mxu0 0.0
        %1034 = vmatpush1.msra.mxu0 %v490
        %1035 = vmatprep.subr.mxu0 0.0
        %1036 = vmatpush1.msra.mxu0 0.0
        %1037 = vmatprep.subr.mxu0 0.0
        %1038 = vmatpush1.msra.mxu0 0.0
        %1039 = vmatprep.subr.mxu0 0.0
        %1040 = vmatpush1.msra.mxu0 0.0
        %1041 = vmatprep.subr.mxu0 0.0
        %1042 = vmatpush1.msra.mxu0 0.0
        %1043 = vmatprep.subr.mxu0 0.0
        %1044 = vmatpush1.msra.mxu0 0.0
        %1045 = vmatprep.subr.mxu0 0.0
        %1046 = vmatpush1.msra.mxu0 0.0
        %1047 = vmatprep.subr.mxu0 0.0
        %1048 = vmatpush1.msra.mxu0 0.0
        %1049 = vmatprep.subr.mxu0 0.0
        %1050 = vmatpush1.msra.mxu0 0.0
        %1051 = vmatprep.subr.mxu0 0.0
        %1052 = vmatpush1.msra.mxu0 0.0
        %1053 = vmatprep.subr.mxu0 0.0
        %1054 = vmatpush1.msra.mxu0 0.0
        %1055 = vmatprep.subr.mxu0 0.0
        %1056 = vmatpush1.msra.mxu0 0.0
        %1057 = vmatprep.subr.mxu0 0.0
        %1058 = vmatpush1.msra.mxu0 0.0
        %1059 = vmatprep.subr.mxu0 0.0
        %1060 = vmatpush1.msra.mxu0 0.0
        %1061 = vmatprep.subr.mxu0 0.0
        %1062 = vmatpush1.msra.mxu0 0.0
        %1063 = vmatprep.subr.mxu0 0.0
        %1064 = vmatpush1.msra.mxu0 0.0
        %1065 = vmatprep.subr.mxu0 0.0
        %1066 = vmatpush1.msra.mxu0 0.0
        %1067 = vmatprep.subr.mxu0 0.0
        %1068 = vmatpush1.msra.mxu0 0.0
        %1069 = vmatprep.subr.mxu0 0.0
        %1070 = vmatpush1.msra.mxu0 0.0
        %1071 = vmatprep.subr.mxu0 0.0
        %1072 = vmatpush1.msra.mxu0 0.0
        %1073 = vmatprep.subr.mxu0 0.0
        %1074 = vmatpush1.msra.mxu0 0.0
        %1075 = vmatprep.subr.mxu0 0.0
        %1076 = vmatpush1.msra.mxu0 0.0
        %1077 = vmatprep.subr.mxu0 0.0
        %1078 = vmatpush1.msra.mxu0 0.0
        %1079 = vmatprep.subr.mxu0 0.0
        %1080 = vmatpush1.msra.mxu0 0.0
        %1081 = vmatprep.subr.mxu0 0.0
        %1082 = vmatpush1.msra.mxu0 0.0
        %1083 = vmatprep.subr.mxu0 0.0
        %1084 = vmatpush1.msra.mxu0 0.0
        %1085 = vmatprep.subr.mxu0 0.0
        %1086 = vmatpush1.msra.mxu0 0.0
        %1087 = vmatprep.subr.mxu0 0.0
        %1088 = vmatpush1.msra.mxu0 0.0
        %1089 = vmatprep.subr.mxu0 0.0
        %1090 = vmatpush1.msra.mxu0 0.0
        %1091 = vmatprep.subr.mxu0 0.0
        %1092 = vmatpush1.msra.mxu0 0.0
        %1093 = vmatprep.subr.mxu0 0.0
        %1094 = vmatpush1.msra.mxu0 0.0
        %1095 = vmatprep.subr.mxu0 0.0
        %1096 = vmatpush1.msra.mxu0 0.0
        %1097 = vmatprep.mubr.f32.mxu0 0.0
        %1098 = vmatmul.mubr.f32.gmra.mrb[0].mxu0 %v1031
        %v1099 = vpop.f32.mrb[0].mxu0
        %v1100 = vadd.f32 0.0, %v1099
        %v1101 = vpop.f32.mrb[0].mxu0
        %1102 = vdwg.mxu0
        %1103 = vmatprep.subr.bf16.mxu0 0
        %1104 = vmatpush1.bf16.msra.mxu0 %v685
        %1105 = vmatprep.subr.bf16.mxu0 0
        %1106 = vmatpush1.bf16.msra.mxu0 %v686
        %1107 = vmatprep.subr.bf16.mxu0 0
        %1108 = vmatpush1.bf16.msra.mxu0 %v687
        %1109 = vmatprep.subr.bf16.mxu0 0
        %1110 = vmatpush1.bf16.msra.mxu0 %v688
        %1111 = vmatprep.subr.bf16.mxu0 0
        %1112 = vmatpush1.bf16.msra.mxu0 %v689
        %1113 = vmatprep.subr.bf16.mxu0 0
        %1114 = vmatpush1.bf16.msra.mxu0 %v690
        %1115 = vmatprep.subr.bf16.mxu0 0
        %1116 = vmatpush1.bf16.msra.mxu0 %v691
        %1117 = vmatprep.subr.bf16.mxu0 0
        %1118 = vmatpush1.bf16.msra.mxu0 %v692
        %1119 = vmatprep.subr.bf16.mxu0 0
        %1120 = vmatpush1.bf16.msra.mxu0 0
        %1121 = vmatprep.subr.bf16.mxu0 0
        %1122 = vmatpush1.bf16.msra.mxu0 0
        %1123 = vmatprep.subr.bf16.mxu0 0
        %1124 = vmatpush1.bf16.msra.mxu0 0
        %1125 = vmatprep.subr.bf16.mxu0 0
        %1126 = vmatpush1.bf16.msra.mxu0 0
        %1127 = vmatprep.subr.bf16.mxu0 0
        %1128 = vmatpush1.bf16.msra.mxu0 0
        %1129 = vmatprep.subr.bf16.mxu0 0
        %1130 = vmatpush1.bf16.msra.mxu0 0
        %1131 = vmatprep.subr.bf16.mxu0 0
        %1132 = vmatpush1.bf16.msra.mxu0 0
        %1133 = vmatprep.subr.bf16.mxu0 0
        %1134 = vmatpush1.bf16.msra.mxu0 0
        %1135 = vmatprep.mubr.bf16.mxu0 0
        %1136 = vmatmul.mubr.bf16.gmra.mrb[0].mxu0 %v1029
        %v1137 = vpop.f32.mrb[0].mxu0
        %v1138 = vadd.f32 %v1100, %v1137
        %v1139 = vpop.f32.mrb[0].mxu0
        %v1140 = vpop.f32.mrb[0].mxu0
        %v1141 = vpop.f32.mrb[0].mxu0
        %1142 = vdwg.mxu0
        %v1143 = vadd.f32 %v1138, %v745
        %s1144 = scalar_lea.vmem %s429, 8 [#allocation3]
        %v1145 = vld [vmem:[%s1144] sm:$0xf]
        %v1146 = vunpack.c.l.bf16 %v1145
        %v1147 = vadd.f32 %v1143, %v1146
        %v1148 = vpack.c.bf16 %v1147, %v1147
        %s1149 = scalar_lea.vmem %s467, 8 [#allocation4]
        %1150 = vst [vmem:[%s1149] sm:$0xf] %v1148
        %s1151 = scalar_lea.vmem %s3, 12
        %v1152 = vld [vmem:[%s1151] sm:$0xf]
        %v1154 = vsel %vm504, %v1152, 0
        %1156 = vmatprep.subr.bf16.mxu0 0
        %1157 = vmatpush1.bf16.msra.mxu0 %v1154
        %1158 = vmatprep.subr.bf16.mxu0 0
        %1159 = vmatpush1.bf16.msra.mxu0 0
        %1160 = vmatprep.subr.bf16.mxu0 0
        %1161 = vmatpush1.bf16.msra.mxu0 0
        %1162 = vmatprep.subr.bf16.mxu0 0
        %1163 = vmatpush1.bf16.msra.mxu0 0
        %1164 = vmatprep.subr.bf16.mxu0 0
        %1165 = vmatpush1.bf16.msra.mxu0 0
        %1166 = vmatprep.subr.bf16.mxu0 0
        %1167 = vmatpush1.bf16.msra.mxu0 0
        %1168 = vmatprep.subr.bf16.mxu0 0
        %1169 = vmatpush1.bf16.msra.mxu0 0
        %1170 = vmatprep.subr.bf16.mxu0 0
        %1171 = vmatpush1.bf16.msra.mxu0 0
        %1172 = vmatprep.subr.bf16.mxu0 0
        %1173 = vmatpush1.bf16.msra.mxu0 0
        %1174 = vmatprep.subr.bf16.mxu0 0
        %1175 = vmatpush1.bf16.msra.mxu0 0
        %1176 = vmatprep.subr.bf16.mxu0 0
        %1177 = vmatpush1.bf16.msra.mxu0 0
        %1178 = vmatprep.subr.bf16.mxu0 0
        %1179 = vmatpush1.bf16.msra.mxu0 0
        %1180 = vmatprep.subr.bf16.mxu0 0
        %1181 = vmatpush1.bf16.msra.mxu0 0
        %1182 = vmatprep.subr.bf16.mxu0 0
        %1183 = vmatpush1.bf16.msra.mxu0 0
        %1184 = vmatprep.subr.bf16.mxu0 0
        %1185 = vmatpush1.bf16.msra.mxu0 0
        %1186 = vmatprep.subr.bf16.mxu0 0
        %1187 = vmatpush1.bf16.msra.mxu0 0
        %1188 = vmatprep.mubr.bf16.mxu0 0
        %1189 = vmatmul.mubr.bf16.gmra.mrb[0].mxu0 %v502
        %v1190 = vpop.f32.mrb[0].mxu0
        %v1191 = vadd.f32 %v498, %v1190
        %v1192 = vpop.f32.mrb[0].mxu0
        %v1193 = vpop.f32.mrb[0].mxu0
        %v1194 = vpop.f32.mrb[0].mxu0
        %1195 = vdwg.mxu0
        %v1196 = vmax.f32 %v1191, 0.0
        %s1197 = scalar_lea.vmem %s422, 24 [#allocation2]
        %v1198 = vld [vmem:[%s1197] sm:$0xff]
        %vm1199 = vcmp.ge.f32.partialorder %v1198, 0.0
        %vm1200 = vcmp.le.f32.partialorder %v1198, 15.0
        %vm1201 = vmand %vm1199, %vm1200
        %v1202 = vsel %vm1199, 1, 0
        %1203 = vrot.lane.b32.xlu0 %v1202, 127
        %v1204 = vpop.permute.xlu0 %1203
        %vm1205 = vcmp.ne.s32.totalorder %v1204, 0
        %vm1206 = vmand %vm1201, %vm1205
        %v1207 = vsel %vm1200, 1, 0
        %1208 = vrot.lane.b32.xlu0 %v1207, 127
        %v1209 = vpop.permute.xlu0 %1208
        %vm1210 = vcmp.ne.s32.totalorder %v1209, 0
        %vm1211 = vmand %vm1206, %vm1210
        %1212 = vrot.lane.b32.xlu0 %v1202, 126
        %v1213 = vpop.permute.xlu0 %1212
        %vm1214 = vcmp.ne.s32.totalorder %v1213, 0
        %vm1215 = vmand %vm1211, %vm1214
        %1216 = vrot.lane.b32.xlu0 %v1207, 126
        %v1217 = vpop.permute.xlu0 %1216
        %vm1218 = vcmp.ne.s32.totalorder %v1217, 0
        %vm1219 = vmand %vm1215, %vm1218
        %v1220 = vsel %vm1219, 1, 0
        %v1221 = vcvt.s32.f32 %v1220
        %1223 = vset.pattern.permute.xlu0 0
        %1224 = vperm.xlu0 %1223, %v1221
        %v1225 = vpop.permute.xlu0 %1224
        %v1227 = vmul.f32 %v1196, %v1225
        %v1228 = vpack.c.bf16 %v1227, %v1227
        %v1230 = vsel %vm500, %v1198, 0
        %1232 = vmatprep.subr.mxu0 0.0
        %1233 = vmatpush1.msra.mxu0 %v490
        %1234 = vmatprep.subr.mxu0 0.0
        %1235 = vmatpush1.msra.mxu0 0.0
        %1236 = vmatprep.subr.mxu0 0.0
        %1237 = vmatpush1.msra.mxu0 0.0
        %1238 = vmatprep.subr.mxu0 0.0
        %1239 = vmatpush1.msra.mxu0 0.0
        %1240 = vmatprep.subr.mxu0 0.0
        %1241 = vmatpush1.msra.mxu0 0.0
        %1242 = vmatprep.subr.mxu0 0.0
        %1243 = vmatpush1.msra.mxu0 0.0
        %1244 = vmatprep.subr.mxu0 0.0
        %1245 = vmatpush1.msra.mxu0 0.0
        %1246 = vmatprep.subr.mxu0 0.0
        %1247 = vmatpush1.msra.mxu0 0.0
        %1248 = vmatprep.subr.mxu0 0.0
        %1249 = vmatpush1.msra.mxu0 0.0
        %1250 = vmatprep.subr.mxu0 0.0
        %1251 = vmatpush1.msra.mxu0 0.0
        %1252 = vmatprep.subr.mxu0 0.0
        %1253 = vmatpush1.msra.mxu0 0.0
        %1254 = vmatprep.subr.mxu0 0.0
        %1255 = vmatpush1.msra.mxu0 0.0
        %1256 = vmatprep.subr.mxu0 0.0
        %1257 = vmatpush1.msra.mxu0 0.0
        %1258 = vmatprep.subr.mxu0 0.0
        %1259 = vmatpush1.msra.mxu0 0.0
        %1260 = vmatprep.subr.mxu0 0.0
        %1261 = vmatpush1.msra.mxu0 0.0
        %1262 = vmatprep.subr.mxu0 0.0
        %1263 = vmatpush1.msra.mxu0 0.0
        %1264 = vmatprep.subr.mxu0 0.0
        %1265 = vmatpush1.msra.mxu0 0.0
        %1266 = vmatprep.subr.mxu0 0.0
        %1267 = vmatpush1.msra.mxu0 0.0
        %1268 = vmatprep.subr.mxu0 0.0
        %1269 = vmatpush1.msra.mxu0 0.0
        %1270 = vmatprep.subr.mxu0 0.0
        %1271 = vmatpush1.msra.mxu0 0.0
        %1272 = vmatprep.subr.mxu0 0.0
        %1273 = vmatpush1.msra.mxu0 0.0
        %1274 = vmatprep.subr.mxu0 0.0
        %1275 = vmatpush1.msra.mxu0 0.0
        %1276 = vmatprep.subr.mxu0 0.0
        %1277 = vmatpush1.msra.mxu0 0.0
        %1278 = vmatprep.subr.mxu0 0.0
        %1279 = vmatpush1.msra.mxu0 0.0
        %1280 = vmatprep.subr.mxu0 0.0
        %1281 = vmatpush1.msra.mxu0 0.0
        %1282 = vmatprep.subr.mxu0 0.0
        %1283 = vmatpush1.msra.mxu0 0.0
        %1284 = vmatprep.subr.mxu0 0.0
        %1285 = vmatpush1.msra.mxu0 0.0
        %1286 = vmatprep.subr.mxu0 0.0
        %1287 = vmatpush1.msra.mxu0 0.0
        %1288 = vmatprep.subr.mxu0 0.0
        %1289 = vmatpush1.msra.mxu0 0.0
        %1290 = vmatprep.subr.mxu0 0.0
        %1291 = vmatpush1.msra.mxu0 0.0
        %1292 = vmatprep.subr.mxu0 0.0
        %1293 = vmatpush1.msra.mxu0 0.0
        %1294 = vmatprep.subr.mxu0 0.0
        %1295 = vmatpush1.msra.mxu0 0.0
        %1296 = vmatprep.mubr.f32.mxu0 0.0
        %1297 = vmatmul.mubr.f32.gmra.mrb[0].mxu0 %v1230
        %v1298 = vpop.f32.mrb[0].mxu0
        %v1299 = vadd.f32 0.0, %v1298
        %v1300 = vpop.f32.mrb[0].mxu0
        %1301 = vdwg.mxu0
        %1302 = vmatprep.subr.bf16.mxu0 0
        %1303 = vmatpush1.bf16.msra.mxu0 %v685
        %1304 = vmatprep.subr.bf16.mxu0 0
        %1305 = vmatpush1.bf16.msra.mxu0 %v686
        %1306 = vmatprep.subr.bf16.mxu0 0
        %1307 = vmatpush1.bf16.msra.mxu0 %v687
        %1308 = vmatprep.subr.bf16.mxu0 0
        %1309 = vmatpush1.bf16.msra.mxu0 %v688
        %1310 = vmatprep.subr.bf16.mxu0 0
        %1311 = vmatpush1.bf16.msra.mxu0 %v689
        %1312 = vmatprep.subr.bf16.mxu0 0
        %1313 = vmatpush1.bf16.msra.mxu0 %v690
        %1314 = vmatprep.subr.bf16.mxu0 0
        %1315 = vmatpush1.bf16.msra.mxu0 %v691
        %1316 = vmatprep.subr.bf16.mxu0 0
        %1317 = vmatpush1.bf16.msra.mxu0 %v692
        %1318 = vmatprep.subr.bf16.mxu0 0
        %1319 = vmatpush1.bf16.msra.mxu0 0
        %1320 = vmatprep.subr.bf16.mxu0 0
        %1321 = vmatpush1.bf16.msra.mxu0 0
        %1322 = vmatprep.subr.bf16.mxu0 0
        %1323 = vmatpush1.bf16.msra.mxu0 0
        %1324 = vmatprep.subr.bf16.mxu0 0
        %1325 = vmatpush1.bf16.msra.mxu0 0
        %1326 = vmatprep.subr.bf16.mxu0 0
        %1327 = vmatpush1.bf16.msra.mxu0 0
        %1328 = vmatprep.subr.bf16.mxu0 0
        %1329 = vmatpush1.bf16.msra.mxu0 0
        %1330 = vmatprep.subr.bf16.mxu0 0
        %1331 = vmatpush1.bf16.msra.mxu0 0
        %1332 = vmatprep.subr.bf16.mxu0 0
        %1333 = vmatpush1.bf16.msra.mxu0 0
        %1334 = vmatprep.mubr.bf16.mxu0 0
        %1335 = vmatmul.mubr.bf16.gmra.mrb[0].mxu0 %v1228
        %v1336 = vpop.f32.mrb[0].mxu0
        %v1337 = vadd.f32 %v1299, %v1336
        %v1338 = vpop.f32.mrb[0].mxu0
        %v1339 = vpop.f32.mrb[0].mxu0
        %v1340 = vpop.f32.mrb[0].mxu0
        %1341 = vdwg.mxu0
        %v1342 = vadd.f32 %v1337, %v745
        %s1343 = scalar_lea.vmem %s429, 12 [#allocation3]
        %v1344 = vld [vmem:[%s1343] sm:$0xf]
        %v1345 = vunpack.c.l.bf16 %v1344
        %v1346 = vadd.f32 %v1342, %v1345
        %v1347 = vpack.c.bf16 %v1346, %v1346
        %s1348 = scalar_lea.vmem %s467, 12 [#allocation4]
        %1349 = vst [vmem:[%s1348] sm:$0xf] %v1347
        %s1350 = scalar_lea.vmem %s3, 16
        %v1351 = vld [vmem:[%s1350] sm:$0xf]
        %v1353 = vsel %vm504, %v1351, 0
        %1355 = vmatprep.subr.bf16.mxu0 0
        %1356 = vmatpush1.bf16.msra.mxu0 %v1353
        %1357 = vmatprep.subr.bf16.mxu0 0
        %1358 = vmatpush1.bf16.msra.mxu0 0
        %1359 = vmatprep.subr.bf16.mxu0 0
        %1360 = vmatpush1.bf16.msra.mxu0 0
        %1361 = vmatprep.subr.bf16.mxu0 0
        %1362 = vmatpush1.bf16.msra.mxu0 0
        %1363 = vmatprep.subr.bf16.mxu0 0
        %1364 = vmatpush1.bf16.msra.mxu0 0
        %1365 = vmatprep.subr.bf16.mxu0 0
        %1366 = vmatpush1.bf16.msra.mxu0 0
        %1367 = vmatprep.subr.bf16.mxu0 0
        %1368 = vmatpush1.bf16.msra.mxu0 0
        %1369 = vmatprep.subr.bf16.mxu0 0
        %1370 = vmatpush1.bf16.msra.mxu0 0
        %1371 = vmatprep.subr.bf16.mxu0 0
        %1372 = vmatpush1.bf16.msra.mxu0 0
        %1373 = vmatprep.subr.bf16.mxu0 0
        %1374 = vmatpush1.bf16.msra.mxu0 0
        %1375 = vmatprep.subr.bf16.mxu0 0
        %1376 = vmatpush1.bf16.msra.mxu0 0
        %1377 = vmatprep.subr.bf16.mxu0 0
        %1378 = vmatpush1.bf16.msra.mxu0 0
        %1379 = vmatprep.subr.bf16.mxu0 0
        %1380 = vmatpush1.bf16.msra.mxu0 0
        %1381 = vmatprep.subr.bf16.mxu0 0
        %1382 = vmatpush1.bf16.msra.mxu0 0
        %1383 = vmatprep.subr.bf16.mxu0 0
        %1384 = vmatpush1.bf16.msra.mxu0 0
        %1385 = vmatprep.subr.bf16.mxu0 0
        %1386 = vmatpush1.bf16.msra.mxu0 0
        %1387 = vmatprep.mubr.bf16.mxu0 0
        %1388 = vmatmul.mubr.bf16.gmra.mrb[0].mxu0 %v502
        %v1389 = vpop.f32.mrb[0].mxu0
        %v1390 = vadd.f32 %v498, %v1389
        %v1391 = vpop.f32.mrb[0].mxu0
        %v1392 = vpop.f32.mrb[0].mxu0
        %v1393 = vpop.f32.mrb[0].mxu0
        %1394 = vdwg.mxu0
        %v1395 = vmax.f32 %v1390, 0.0
        %s1396 = scalar_lea.vmem %s422, 32 [#allocation2]
        %v1397 = vld [vmem:[%s1396] sm:$0xff]
        %vm1398 = vcmp.ge.f32.partialorder %v1397, 0.0
        %vm1399 = vcmp.le.f32.partialorder %v1397, 15.0
        %vm1400 = vmand %vm1398, %vm1399
        %v1401 = vsel %vm1398, 1, 0
        %1402 = vrot.lane.b32.xlu0 %v1401, 127
        %v1403 = vpop.permute.xlu0 %1402
        %vm1404 = vcmp.ne.s32.totalorder %v1403, 0
        %vm1405 = vmand %vm1400, %vm1404
        %v1406 = vsel %vm1399, 1, 0
        %1407 = vrot.lane.b32.xlu0 %v1406, 127
        %v1408 = vpop.permute.xlu0 %1407
        %vm1409 = vcmp.ne.s32.totalorder %v1408, 0
        %vm1410 = vmand %vm1405, %vm1409
        %1411 = vrot.lane.b32.xlu0 %v1401, 126
        %v1412 = vpop.permute.xlu0 %1411
        %vm1413 = vcmp.ne.s32.totalorder %v1412, 0
        %vm1414 = vmand %vm1410, %vm1413
        %1415 = vrot.lane.b32.xlu0 %v1406, 126
        %v1416 = vpop.permute.xlu0 %1415
        %vm1417 = vcmp.ne.s32.totalorder %v1416, 0
        %vm1418 = vmand %vm1414, %vm1417
        %v1419 = vsel %vm1418, 1, 0
        %v1420 = vcvt.s32.f32 %v1419
        %1422 = vset.pattern.permute.xlu0 0
        %1423 = vperm.xlu0 %1422, %v1420
        %v1424 = vpop.permute.xlu0 %1423
        %v1426 = vmul.f32 %v1395, %v1424
        %v1427 = vpack.c.bf16 %v1426, %v1426
        %v1429 = vsel %vm500, %v1397, 0
        %1431 = vmatprep.subr.mxu0 0.0
        %1432 = vmatpush1.msra.mxu0 %v490
        %1433 = vmatprep.subr.mxu0 0.0
        %1434 = vmatpush1.msra.mxu0 0.0
        %1435 = vmatprep.subr.mxu0 0.0
        %1436 = vmatpush1.msra.mxu0 0.0
        %1437 = vmatprep.subr.mxu0 0.0
        %1438 = vmatpush1.msra.mxu0 0.0
        %1439 = vmatprep.subr.mxu0 0.0
        %1440 = vmatpush1.msra.mxu0 0.0
        %1441 = vmatprep.subr.mxu0 0.0
        %1442 = vmatpush1.msra.mxu0 0.0
        %1443 = vmatprep.subr.mxu0 0.0
        %1444 = vmatpush1.msra.mxu0 0.0
        %1445 = vmatprep.subr.mxu0 0.0
        %1446 = vmatpush1.msra.mxu0 0.0
        %1447 = vmatprep.subr.mxu0 0.0
        %1448 = vmatpush1.msra.mxu0 0.0
        %1449 = vmatprep.subr.mxu0 0.0
        %1450 = vmatpush1.msra.mxu0 0.0
        %1451 = vmatprep.subr.mxu0 0.0
        %1452 = vmatpush1.msra.mxu0 0.0
        %1453 = vmatprep.subr.mxu0 0.0
        %1454 = vmatpush1.msra.mxu0 0.0
        %1455 = vmatprep.subr.mxu0 0.0
        %1456 = vmatpush1.msra.mxu0 0.0
        %1457 = vmatprep.subr.mxu0 0.0
        %1458 = vmatpush1.msra.mxu0 0.0
        %1459 = vmatprep.subr.mxu0 0.0
        %1460 = vmatpush1.msra.mxu0 0.0
        %1461 = vmatprep.subr.mxu0 0.0
        %1462 = vmatpush1.msra.mxu0 0.0
        %1463 = vmatprep.subr.mxu0 0.0
        %1464 = vmatpush1.msra.mxu0 0.0
        %1465 = vmatprep.subr.mxu0 0.0
        %1466 = vmatpush1.msra.mxu0 0.0
        %1467 = vmatprep.subr.mxu0 0.0
        %1468 = vmatpush1.msra.mxu0 0.0
        %1469 = vmatprep.subr.mxu0 0.0
        %1470 = vmatpush1.msra.mxu0 0.0
        %1471 = vmatprep.subr.mxu0 0.0
        %1472 = vmatpush1.msra.mxu0 0.0
        %1473 = vmatprep.subr.mxu0 0.0
        %1474 = vmatpush1.msra.mxu0 0.0
        %1475 = vmatprep.subr.mxu0 0.0
        %1476 = vmatpush1.msra.mxu0 0.0
        %1477 = vmatprep.subr.mxu0 0.0
        %1478 = vmatpush1.msra.mxu0 0.0
        %1479 = vmatprep.subr.mxu0 0.0
        %1480 = vmatpush1.msra.mxu0 0.0
        %1481 = vmatprep.subr.mxu0 0.0
        %1482 = vmatpush1.msra.mxu0 0.0
        %1483 = vmatprep.subr.mxu0 0.0
        %1484 = vmatpush1.msra.mxu0 0.0
        %1485 = vmatprep.subr.mxu0 0.0
        %1486 = vmatpush1.msra.mxu0 0.0
        %1487 = vmatprep.subr.mxu0 0.0
        %1488 = vmatpush1.msra.mxu0 0.0
        %1489 = vmatprep.subr.mxu0 0.0
        %1490 = vmatpush1.msra.mxu0 0.0
        %1491 = vmatprep.subr.mxu0 0.0
        %1492 = vmatpush1.msra.mxu0 0.0
        %1493 = vmatprep.subr.mxu0 0.0
        %1494 = vmatpush1.msra.mxu0 0.0
        %1495 = vmatprep.mubr.f32.mxu0 0.0
        %1496 = vmatmul.mubr.f32.gmra.mrb[0].mxu0 %v1429
        %v1497 = vpop.f32.mrb[0].mxu0
        %v1498 = vadd.f32 0.0, %v1497
        %v1499 = vpop.f32.mrb[0].mxu0
        %1500 = vdwg.mxu0
        %1501 = vmatprep.subr.bf16.mxu0 0
        %1502 = vmatpush1.bf16.msra.mxu0 %v685
        %1503 = vmatprep.subr.bf16.mxu0 0
        %1504 = vmatpush1.bf16.msra.mxu0 %v686
        %1505 = vmatprep.subr.bf16.mxu0 0
        %1506 = vmatpush1.bf16.msra.mxu0 %v687
        %1507 = vmatprep.subr.bf16.mxu0 0
        %1508 = vmatpush1.bf16.msra.mxu0 %v688
        %1509 = vmatprep.subr.bf16.mxu0 0
        %1510 = vmatpush1.bf16.msra.mxu0 %v689
        %1511 = vmatprep.subr.bf16.mxu0 0
        %1512 = vmatpush1.bf16.msra.mxu0 %v690
        %1513 = vmatprep.subr.bf16.mxu0 0
        %1514 = vmatpush1.bf16.msra.mxu0 %v691
        %1515 = vmatprep.subr.bf16.mxu0 0
        %1516 = vmatpush1.bf16.msra.mxu0 %v692
        %1517 = vmatprep.subr.bf16.mxu0 0
        %1518 = vmatpush1.bf16.msra.mxu0 0
        %1519 = vmatprep.subr.bf16.mxu0 0
        %1520 = vmatpush1.bf16.msra.mxu0 0
        %1521 = vmatprep.subr.bf16.mxu0 0
        %1522 = vmatpush1.bf16.msra.mxu0 0
        %1523 = vmatprep.subr.bf16.mxu0 0
        %1524 = vmatpush1.bf16.msra.mxu0 0
        %1525 = vmatprep.subr.bf16.mxu0 0
        %1526 = vmatpush1.bf16.msra.mxu0 0
        %1527 = vmatprep.subr.bf16.mxu0 0
        %1528 = vmatpush1.bf16.msra.mxu0 0
        %1529 = vmatprep.subr.bf16.mxu0 0
        %1530 = vmatpush1.bf16.msra.mxu0 0
        %1531 = vmatprep.subr.bf16.mxu0 0
        %1532 = vmatpush1.bf16.msra.mxu0 0
        %1533 = vmatprep.mubr.bf16.mxu0 0
        %1534 = vmatmul.mubr.bf16.gmra.mrb[0].mxu0 %v1427
        %v1535 = vpop.f32.mrb[0].mxu0
        %v1536 = vadd.f32 %v1498, %v1535
        %v1537 = vpop.f32.mrb[0].mxu0
        %v1538 = vpop.f32.mrb[0].mxu0
        %v1539 = vpop.f32.mrb[0].mxu0
        %1540 = vdwg.mxu0
        %v1541 = vadd.f32 %v1536, %v745
        %s1542 = scalar_lea.vmem %s429, 16 [#allocation3]
        %v1543 = vld [vmem:[%s1542] sm:$0xf]
        %v1544 = vunpack.c.l.bf16 %v1543
        %v1545 = vadd.f32 %v1541, %v1544
        %v1546 = vpack.c.bf16 %v1545, %v1545
        %s1547 = scalar_lea.vmem %s467, 16 [#allocation4]
        %1548 = vst [vmem:[%s1547] sm:$0xf] %v1546
        %s1549 = scalar_lea.vmem %s3, 20
        %v1550 = vld [vmem:[%s1549] sm:$0xf]
        %v1552 = vsel %vm504, %v1550, 0
        %1554 = vmatprep.subr.bf16.mxu0 0
        %1555 = vmatpush1.bf16.msra.mxu0 %v1552
        %1556 = vmatprep.subr.bf16.mxu0 0
        %1557 = vmatpush1.bf16.msra.mxu0 0
        %1558 = vmatprep.subr.bf16.mxu0 0
        %1559 = vmatpush1.bf16.msra.mxu0 0
        %1560 = vmatprep.subr.bf16.mxu0 0
        %1561 = vmatpush1.bf16.msra.mxu0 0
        %1562 = vmatprep.subr.bf16.mxu0 0
        %1563 = vmatpush1.bf16.msra.mxu0 0
        %1564 = vmatprep.subr.bf16.mxu0 0
        %1565 = vmatpush1.bf16.msra.mxu0 0
        %1566 = vmatprep.subr.bf16.mxu0 0
        %1567 = vmatpush1.bf16.msra.mxu0 0
        %1568 = vmatprep.subr.bf16.mxu0 0
        %1569 = vmatpush1.bf16.msra.mxu0 0
        %1570 = vmatprep.subr.bf16.mxu0 0
        %1571 = vmatpush1.bf16.msra.mxu0 0
        %1572 = vmatprep.subr.bf16.mxu0 0
        %1573 = vmatpush1.bf16.msra.mxu0 0
        %1574 = vmatprep.subr.bf16.mxu0 0
        %1575 = vmatpush1.bf16.msra.mxu0 0
        %1576 = vmatprep.subr.bf16.mxu0 0
        %1577 = vmatpush1.bf16.msra.mxu0 0
        %1578 = vmatprep.subr.bf16.mxu0 0
        %1579 = vmatpush1.bf16.msra.mxu0 0
        %1580 = vmatprep.subr.bf16.mxu0 0
        %1581 = vmatpush1.bf16.msra.mxu0 0
        %1582 = vmatprep.subr.bf16.mxu0 0
        %1583 = vmatpush1.bf16.msra.mxu0 0
        %1584 = vmatprep.subr.bf16.mxu0 0
        %1585 = vmatpush1.bf16.msra.mxu0 0
        %1586 = vmatprep.mubr.bf16.mxu0 0
        %1587 = vmatmul.mubr.bf16.gmra.mrb[0].mxu0 %v502
        %v1588 = vpop.f32.mrb[0].mxu0
        %v1589 = vadd.f32 %v498, %v1588
        %v1590 = vpop.f32.mrb[0].mxu0
        %v1591 = vpop.f32.mrb[0].mxu0
        %v1592 = vpop.f32.mrb[0].mxu0
        %1593 = vdwg.mxu0
        %v1594 = vmax.f32 %v1589, 0.0
        %s1595 = scalar_lea.vmem %s422, 40 [#allocation2]
        %v1596 = vld [vmem:[%s1595] sm:$0xff]
        %vm1597 = vcmp.ge.f32.partialorder %v1596, 0.0
        %vm1598 = vcmp.le.f32.partialorder %v1596, 15.0
        %vm1599 = vmand %vm1597, %vm1598
        %v1600 = vsel %vm1597, 1, 0
        %1601 = vrot.lane.b32.xlu0 %v1600, 127
        %v1602 = vpop.permute.xlu0 %1601
        %vm1603 = vcmp.ne.s32.totalorder %v1602, 0
        %vm1604 = vmand %vm1599, %vm1603
        %v1605 = vsel %vm1598, 1, 0
        %1606 = vrot.lane.b32.xlu0 %v1605, 127
        %v1607 = vpop.permute.xlu0 %1606
        %vm1608 = vcmp.ne.s32.totalorder %v1607, 0
        %vm1609 = vmand %vm1604, %vm1608
        %1610 = vrot.lane.b32.xlu0 %v1600, 126
        %v1611 = vpop.permute.xlu0 %1610
        %vm1612 = vcmp.ne.s32.totalorder %v1611, 0
        %vm1613 = vmand %vm1609, %vm1612
        %1614 = vrot.lane.b32.xlu0 %v1605, 126
        %v1615 = vpop.permute.xlu0 %1614
        %vm1616 = vcmp.ne.s32.totalorder %v1615, 0
        %vm1617 = vmand %vm1613, %vm1616
        %v1618 = vsel %vm1617, 1, 0
        %v1619 = vcvt.s32.f32 %v1618
        %1621 = vset.pattern.permute.xlu0 0
        %1622 = vperm.xlu0 %1621, %v1619
        %v1623 = vpop.permute.xlu0 %1622
        %v1625 = vmul.f32 %v1594, %v1623
        %v1626 = vpack.c.bf16 %v1625, %v1625
        %v1628 = vsel %vm500, %v1596, 0
        %1630 = vmatprep.subr.mxu0 0.0
        %1631 = vmatpush1.msra.mxu0 %v490
        %1632 = vmatprep.subr.mxu0 0.0
        %1633 = vmatpush1.msra.mxu0 0.0
        %1634 = vmatprep.subr.mxu0 0.0
        %1635 = vmatpush1.msra.mxu0 0.0
        %1636 = vmatprep.subr.mxu0 0.0
        %1637 = vmatpush1.msra.mxu0 0.0
        %1638 = vmatprep.subr.mxu0 0.0
        %1639 = vmatpush1.msra.mxu0 0.0
        %1640 = vmatprep.subr.mxu0 0.0
        %1641 = vmatpush1.msra.mxu0 0.0
        %1642 = vmatprep.subr.mxu0 0.0
        %1643 = vmatpush1.msra.mxu0 0.0
        %1644 = vmatprep.subr.mxu0 0.0
        %1645 = vmatpush1.msra.mxu0 0.0
        %1646 = vmatprep.subr.mxu0 0.0
        %1647 = vmatpush1.msra.mxu0 0.0
        %1648 = vmatprep.subr.mxu0 0.0
        %1649 = vmatpush1.msra.mxu0 0.0
        %1650 = vmatprep.subr.mxu0 0.0
        %1651 = vmatpush1.msra.mxu0 0.0
        %1652 = vmatprep.subr.mxu0 0.0
        %1653 = vmatpush1.msra.mxu0 0.0
        %1654 = vmatprep.subr.mxu0 0.0
        %1655 = vmatpush1.msra.mxu0 0.0
        %1656 = vmatprep.subr.mxu0 0.0
        %1657 = vmatpush1.msra.mxu0 0.0
        %1658 = vmatprep.subr.mxu0 0.0
        %1659 = vmatpush1.msra.mxu0 0.0
        %1660 = vmatprep.subr.mxu0 0.0
        %1661 = vmatpush1.msra.mxu0 0.0
        %1662 = vmatprep.subr.mxu0 0.0
        %1663 = vmatpush1.msra.mxu0 0.0
        %1664 = vmatprep.subr.mxu0 0.0
        %1665 = vmatpush1.msra.mxu0 0.0
        %1666 = vmatprep.subr.mxu0 0.0
        %1667 = vmatpush1.msra.mxu0 0.0
        %1668 = vmatprep.subr.mxu0 0.0
        %1669 = vmatpush1.msra.mxu0 0.0
        %1670 = vmatprep.subr.mxu0 0.0
        %1671 = vmatpush1.msra.mxu0 0.0
        %1672 = vmatprep.subr.mxu0 0.0
        %1673 = vmatpush1.msra.mxu0 0.0
        %1674 = vmatprep.subr.mxu0 0.0
        %1675 = vmatpush1.msra.mxu0 0.0
        %1676 = vmatprep.subr.mxu0 0.0
        %1677 = vmatpush1.msra.mxu0 0.0
        %1678 = vmatprep.subr.mxu0 0.0
        %1679 = vmatpush1.msra.mxu0 0.0
        %1680 = vmatprep.subr.mxu0 0.0
        %1681 = vmatpush1.msra.mxu0 0.0
        %1682 = vmatprep.subr.mxu0 0.0
        %1683 = vmatpush1.msra.mxu0 0.0
        %1684 = vmatprep.subr.mxu0 0.0
        %1685 = vmatpush1.msra.mxu0 0.0
        %1686 = vmatprep.subr.mxu0 0.0
        %1687 = vmatpush1.msra.mxu0 0.0
        %1688 = vmatprep.subr.mxu0 0.0
        %1689 = vmatpush1.msra.mxu0 0.0
        %1690 = vmatprep.subr.mxu0 0.0
        %1691 = vmatpush1.msra.mxu0 0.0
        %1692 = vmatprep.subr.mxu0 0.0
        %1693 = vmatpush1.msra.mxu0 0.0
        %1694 = vmatprep.mubr.f32.mxu0 0.0
        %1695 = vmatmul.mubr.f32.gmra.mrb[0].mxu0 %v1628
        %v1696 = vpop.f32.mrb[0].mxu0
        %v1697 = vadd.f32 0.0, %v1696
        %v1698 = vpop.f32.mrb[0].mxu0
        %1699 = vdwg.mxu0
        %1700 = vmatprep.subr.bf16.mxu0 0
        %1701 = vmatpush1.bf16.msra.mxu0 %v685
        %1702 = vmatprep.subr.bf16.mxu0 0
        %1703 = vmatpush1.bf16.msra.mxu0 %v686
        %1704 = vmatprep.subr.bf16.mxu0 0
        %1705 = vmatpush1.bf16.msra.mxu0 %v687
        %1706 = vmatprep.subr.bf16.mxu0 0
        %1707 = vmatpush1.bf16.msra.mxu0 %v688
        %1708 = vmatprep.subr.bf16.mxu0 0
        %1709 = vmatpush1.bf16.msra.mxu0 %v689
        %1710 = vmatprep.subr.bf16.mxu0 0
        %1711 = vmatpush1.bf16.msra.mxu0 %v690
        %1712 = vmatprep.subr.bf16.mxu0 0
        %1713 = vmatpush1.bf16.msra.mxu0 %v691
        %1714 = vmatprep.subr.bf16.mxu0 0
        %1715 = vmatpush1.bf16.msra.mxu0 %v692
        %1716 = vmatprep.subr.bf16.mxu0 0
        %1717 = vmatpush1.bf16.msra.mxu0 0
        %1718 = vmatprep.subr.bf16.mxu0 0
        %1719 = vmatpush1.bf16.msra.mxu0 0
        %1720 = vmatprep.subr.bf16.mxu0 0
        %1721 = vmatpush1.bf16.msra.mxu0 0
        %1722 = vmatprep.subr.bf16.mxu0 0
        %1723 = vmatpush1.bf16.msra.mxu0 0
        %1724 = vmatprep.subr.bf16.mxu0 0
        %1725 = vmatpush1.bf16.msra.mxu0 0
        %1726 = vmatprep.subr.bf16.mxu0 0
        %1727 = vmatpush1.bf16.msra.mxu0 0
        %1728 = vmatprep.subr.bf16.mxu0 0
        %1729 = vmatpush1.bf16.msra.mxu0 0
        %1730 = vmatprep.subr.bf16.mxu0 0
        %1731 = vmatpush1.bf16.msra.mxu0 0
        %1732 = vmatprep.mubr.bf16.mxu0 0
        %1733 = vmatmul.mubr.bf16.gmra.mrb[0].mxu0 %v1626
        %v1734 = vpop.f32.mrb[0].mxu0
        %v1735 = vadd.f32 %v1697, %v1734
        %v1736 = vpop.f32.mrb[0].mxu0
        %v1737 = vpop.f32.mrb[0].mxu0
        %v1738 = vpop.f32.mrb[0].mxu0
        %1739 = vdwg.mxu0
        %v1740 = vadd.f32 %v1735, %v745
        %s1741 = scalar_lea.vmem %s429, 20 [#allocation3]
        %v1742 = vld [vmem:[%s1741] sm:$0xf]
        %v1743 = vunpack.c.l.bf16 %v1742
        %v1744 = vadd.f32 %v1740, %v1743
        %v1745 = vpack.c.bf16 %v1744, %v1744
        %s1746 = scalar_lea.vmem %s467, 20 [#allocation4]
        %1747 = vst [vmem:[%s1746] sm:$0xf] %v1745
        %s1748 = scalar_lea.vmem %s3, 24
        %v1749 = vld [vmem:[%s1748] sm:$0xf]
        %v1751 = vsel %vm504, %v1749, 0
        %1753 = vmatprep.subr.bf16.mxu0 0
        %1754 = vmatpush1.bf16.msra.mxu0 %v1751
        %1755 = vmatprep.subr.bf16.mxu0 0
        %1756 = vmatpush1.bf16.msra.mxu0 0
        %1757 = vmatprep.subr.bf16.mxu0 0
        %1758 = vmatpush1.bf16.msra.mxu0 0
        %1759 = vmatprep.subr.bf16.mxu0 0
        %1760 = vmatpush1.bf16.msra.mxu0 0
        %1761 = vmatprep.subr.bf16.mxu0 0
        %1762 = vmatpush1.bf16.msra.mxu0 0
        %1763 = vmatprep.subr.bf16.mxu0 0
        %1764 = vmatpush1.bf16.msra.mxu0 0
        %1765 = vmatprep.subr.bf16.mxu0 0
        %1766 = vmatpush1.bf16.msra.mxu0 0
        %1767 = vmatprep.subr.bf16.mxu0 0
        %1768 = vmatpush1.bf16.msra.mxu0 0
        %1769 = vmatprep.subr.bf16.mxu0 0
        %1770 = vmatpush1.bf16.msra.mxu0 0
        %1771 = vmatprep.subr.bf16.mxu0 0
        %1772 = vmatpush1.bf16.msra.mxu0 0
        %1773 = vmatprep.subr.bf16.mxu0 0
        %1774 = vmatpush1.bf16.msra.mxu0 0
        %1775 = vmatprep.subr.bf16.mxu0 0
        %1776 = vmatpush1.bf16.msra.mxu0 0
        %1777 = vmatprep.subr.bf16.mxu0 0
        %1778 = vmatpush1.bf16.msra.mxu0 0
        %1779 = vmatprep.subr.bf16.mxu0 0
        %1780 = vmatpush1.bf16.msra.mxu0 0
        %1781 = vmatprep.subr.bf16.mxu0 0
        %1782 = vmatpush1.bf16.msra.mxu0 0
        %1783 = vmatprep.subr.bf16.mxu0 0
        %1784 = vmatpush1.bf16.msra.mxu0 0
        %1785 = vmatprep.mubr.bf16.mxu0 0
        %1786 = vmatmul.mubr.bf16.gmra.mrb[0].mxu0 %v502
        %v1787 = vpop.f32.mrb[0].mxu0
        %v1788 = vadd.f32 %v498, %v1787
        %v1789 = vpop.f32.mrb[0].mxu0
        %v1790 = vpop.f32.mrb[0].mxu0
        %v1791 = vpop.f32.mrb[0].mxu0
        %1792 = vdwg.mxu0
        %v1793 = vmax.f32 %v1788, 0.0
        %s1794 = scalar_lea.vmem %s422, 48 [#allocation2]
        %v1795 = vld [vmem:[%s1794] sm:$0xff]
        %vm1796 = vcmp.ge.f32.partialorder %v1795, 0.0
        %vm1797 = vcmp.le.f32.partialorder %v1795, 15.0
        %vm1798 = vmand %vm1796, %vm1797
        %v1799 = vsel %vm1796, 1, 0
        %1800 = vrot.lane.b32.xlu0 %v1799, 127
        %v1801 = vpop.permute.xlu0 %1800
        %vm1802 = vcmp.ne.s32.totalorder %v1801, 0
        %vm1803 = vmand %vm1798, %vm1802
        %v1804 = vsel %vm1797, 1, 0
        %1805 = vrot.lane.b32.xlu0 %v1804, 127
        %v1806 = vpop.permute.xlu0 %1805
        %vm1807 = vcmp.ne.s32.totalorder %v1806, 0
        %vm1808 = vmand %vm1803, %vm1807
        %1809 = vrot.lane.b32.xlu0 %v1799, 126
        %v1810 = vpop.permute.xlu0 %1809
        %vm1811 = vcmp.ne.s32.totalorder %v1810, 0
        %vm1812 = vmand %vm1808, %vm1811
        %1813 = vrot.lane.b32.xlu0 %v1804, 126
        %v1814 = vpop.permute.xlu0 %1813
        %vm1815 = vcmp.ne.s32.totalorder %v1814, 0
        %vm1816 = vmand %vm1812, %vm1815
        %v1817 = vsel %vm1816, 1, 0
        %v1818 = vcvt.s32.f32 %v1817
        %1820 = vset.pattern.permute.xlu0 0
        %1821 = vperm.xlu0 %1820, %v1818
        %v1822 = vpop.permute.xlu0 %1821
        %v1824 = vmul.f32 %v1793, %v1822
        %v1825 = vpack.c.bf16 %v1824, %v1824
        %v1827 = vsel %vm500, %v1795, 0
        %1829 = vmatprep.subr.mxu0 0.0
        %1830 = vmatpush1.msra.mxu0 %v490
        %1831 = vmatprep.subr.mxu0 0.0
        %1832 = vmatpush1.msra.mxu0 0.0
        %1833 = vmatprep.subr.mxu0 0.0
        %1834 = vmatpush1.msra.mxu0 0.0
        %1835 = vmatprep.subr.mxu0 0.0
        %1836 = vmatpush1.msra.mxu0 0.0
        %1837 = vmatprep.subr.mxu0 0.0
        %1838 = vmatpush1.msra.mxu0 0.0
        %1839 = vmatprep.subr.mxu0 0.0
        %1840 = vmatpush1.msra.mxu0 0.0
        %1841 = vmatprep.subr.mxu0 0.0
        %1842 = vmatpush1.msra.mxu0 0.0
        %1843 = vmatprep.subr.mxu0 0.0
        %1844 = vmatpush1.msra.mxu0 0.0
        %1845 = vmatprep.subr.mxu0 0.0
        %1846 = vmatpush1.msra.mxu0 0.0
        %1847 = vmatprep.subr.mxu0 0.0
        %1848 = vmatpush1.msra.mxu0 0.0
        %1849 = vmatprep.subr.mxu0 0.0
        %1850 = vmatpush1.msra.mxu0 0.0
        %1851 = vmatprep.subr.mxu0 0.0
        %1852 = vmatpush1.msra.mxu0 0.0
        %1853 = vmatprep.subr.mxu0 0.0
        %1854 = vmatpush1.msra.mxu0 0.0
        %1855 = vmatprep.subr.mxu0 0.0
        %1856 = vmatpush1.msra.mxu0 0.0
        %1857 = vmatprep.subr.mxu0 0.0
        %1858 = vmatpush1.msra.mxu0 0.0
        %1859 = vmatprep.subr.mxu0 0.0
        %1860 = vmatpush1.msra.mxu0 0.0
        %1861 = vmatprep.subr.mxu0 0.0
        %1862 = vmatpush1.msra.mxu0 0.0
        %1863 = vmatprep.subr.mxu0 0.0
        %1864 = vmatpush1.msra.mxu0 0.0
        %1865 = vmatprep.subr.mxu0 0.0
        %1866 = vmatpush1.msra.mxu0 0.0
        %1867 = vmatprep.subr.mxu0 0.0
        %1868 = vmatpush1.msra.mxu0 0.0
        %1869 = vmatprep.subr.mxu0 0.0
        %1870 = vmatpush1.msra.mxu0 0.0
        %1871 = vmatprep.subr.mxu0 0.0
        %1872 = vmatpush1.msra.mxu0 0.0
        %1873 = vmatprep.subr.mxu0 0.0
        %1874 = vmatpush1.msra.mxu0 0.0
        %1875 = vmatprep.subr.mxu0 0.0
        %1876 = vmatpush1.msra.mxu0 0.0
        %1877 = vmatprep.subr.mxu0 0.0
        %1878 = vmatpush1.msra.mxu0 0.0
        %1879 = vmatprep.subr.mxu0 0.0
        %1880 = vmatpush1.msra.mxu0 0.0
        %1881 = vmatprep.subr.mxu0 0.0
        %1882 = vmatpush1.msra.mxu0 0.0
        %1883 = vmatprep.subr.mxu0 0.0
        %1884 = vmatpush1.msra.mxu0 0.0
        %1885 = vmatprep.subr.mxu0 0.0
        %1886 = vmatpush1.msra.mxu0 0.0
        %1887 = vmatprep.subr.mxu0 0.0
        %1888 = vmatpush1.msra.mxu0 0.0
        %1889 = vmatprep.subr.mxu0 0.0
        %1890 = vmatpush1.msra.mxu0 0.0
        %1891 = vmatprep.subr.mxu0 0.0
        %1892 = vmatpush1.msra.mxu0 0.0
        %1893 = vmatprep.mubr.f32.mxu0 0.0
        %1894 = vmatmul.mubr.f32.gmra.mrb[0].mxu0 %v1827
        %v1895 = vpop.f32.mrb[0].mxu0
        %v1896 = vadd.f32 0.0, %v1895
        %v1897 = vpop.f32.mrb[0].mxu0
        %1898 = vdwg.mxu0
        %1899 = vmatprep.subr.bf16.mxu0 0
        %1900 = vmatpush1.bf16.msra.mxu0 %v685
        %1901 = vmatprep.subr.bf16.mxu0 0
        %1902 = vmatpush1.bf16.msra.mxu0 %v686
        %1903 = vmatprep.subr.bf16.mxu0 0
        %1904 = vmatpush1.bf16.msra.mxu0 %v687
        %1905 = vmatprep.subr.bf16.mxu0 0
        %1906 = vmatpush1.bf16.msra.mxu0 %v688
        %1907 = vmatprep.subr.bf16.mxu0 0
        %1908 = vmatpush1.bf16.msra.mxu0 %v689
        %1909 = vmatprep.subr.bf16.mxu0 0
        %1910 = vmatpush1.bf16.msra.mxu0 %v690
        %1911 = vmatprep.subr.bf16.mxu0 0
        %1912 = vmatpush1.bf16.msra.mxu0 %v691
        %1913 = vmatprep.subr.bf16.mxu0 0
        %1914 = vmatpush1.bf16.msra.mxu0 %v692
        %1915 = vmatprep.subr.bf16.mxu0 0
        %1916 = vmatpush1.bf16.msra.mxu0 0
        %1917 = vmatprep.subr.bf16.mxu0 0
        %1918 = vmatpush1.bf16.msra.mxu0 0
        %1919 = vmatprep.subr.bf16.mxu0 0
        %1920 = vmatpush1.bf16.msra.mxu0 0
        %1921 = vmatprep.subr.bf16.mxu0 0
        %1922 = vmatpush1.bf16.msra.mxu0 0
        %1923 = vmatprep.subr.bf16.mxu0 0
        %1924 = vmatpush1.bf16.msra.mxu0 0
        %1925 = vmatprep.subr.bf16.mxu0 0
        %1926 = vmatpush1.bf16.msra.mxu0 0
        %1927 = vmatprep.subr.bf16.mxu0 0
        %1928 = vmatpush1.bf16.msra.mxu0 0
        %1929 = vmatprep.subr.bf16.mxu0 0
        %1930 = vmatpush1.bf16.msra.mxu0 0
        %1931 = vmatprep.mubr.bf16.mxu0 0
        %1932 = vmatmul.mubr.bf16.gmra.mrb[0].mxu0 %v1825
        %v1933 = vpop.f32.mrb[0].mxu0
        %v1934 = vadd.f32 %v1896, %v1933
        %v1935 = vpop.f32.mrb[0].mxu0
        %v1936 = vpop.f32.mrb[0].mxu0
        %v1937 = vpop.f32.mrb[0].mxu0
        %1938 = vdwg.mxu0
        %v1939 = vadd.f32 %v1934, %v745
        %s1940 = scalar_lea.vmem %s429, 24 [#allocation3]
        %v1941 = vld [vmem:[%s1940] sm:$0xf]
        %v1942 = vunpack.c.l.bf16 %v1941
        %v1943 = vadd.f32 %v1939, %v1942
        %v1944 = vpack.c.bf16 %v1943, %v1943
        %s1945 = scalar_lea.vmem %s467, 24 [#allocation4]
        %1946 = vst [vmem:[%s1945] sm:$0xf] %v1944
        %s1947 = scalar_lea.vmem %s3, 28
        %v1948 = vld [vmem:[%s1947] sm:$0xf]
        %v1950 = vsel %vm504, %v1948, 0
        %1952 = vmatprep.subr.bf16.mxu0 0
        %1953 = vmatpush1.bf16.msra.mxu0 %v1950
        %1954 = vmatprep.subr.bf16.mxu0 0
        %1955 = vmatpush1.bf16.msra.mxu0 0
        %1956 = vmatprep.subr.bf16.mxu0 0
        %1957 = vmatpush1.bf16.msra.mxu0 0
        %1958 = vmatprep.subr.bf16.mxu0 0
        %1959 = vmatpush1.bf16.msra.mxu0 0
        %1960 = vmatprep.subr.bf16.mxu0 0
        %1961 = vmatpush1.bf16.msra.mxu0 0
        %1962 = vmatprep.subr.bf16.mxu0 0
        %1963 = vmatpush1.bf16.msra.mxu0 0
        %1964 = vmatprep.subr.bf16.mxu0 0
        %1965 = vmatpush1.bf16.msra.mxu0 0
        %1966 = vmatprep.subr.bf16.mxu0 0
        %1967 = vmatpush1.bf16.msra.mxu0 0
        %1968 = vmatprep.subr.bf16.mxu0 0
        %1969 = vmatpush1.bf16.msra.mxu0 0
        %1970 = vmatprep.subr.bf16.mxu0 0
        %1971 = vmatpush1.bf16.msra.mxu0 0
        %1972 = vmatprep.subr.bf16.mxu0 0
        %1973 = vmatpush1.bf16.msra.mxu0 0
        %1974 = vmatprep.subr.bf16.mxu0 0
        %1975 = vmatpush1.bf16.msra.mxu0 0
        %1976 = vmatprep.subr.bf16.mxu0 0
        %1977 = vmatpush1.bf16.msra.mxu0 0
        %1978 = vmatprep.subr.bf16.mxu0 0
        %1979 = vmatpush1.bf16.msra.mxu0 0
        %1980 = vmatprep.subr.bf16.mxu0 0
        %1981 = vmatpush1.bf16.msra.mxu0 0
        %1982 = vmatprep.subr.bf16.mxu0 0
        %1983 = vmatpush1.bf16.msra.mxu0 0
        %1984 = vmatprep.mubr.bf16.mxu0 0
        %1985 = vmatmul.mubr.bf16.gmra.mrb[0].mxu0 %v502
        %v1986 = vpop.f32.mrb[0].mxu0
        %v1987 = vadd.f32 %v498, %v1986
        %v1988 = vpop.f32.mrb[0].mxu0
        %v1989 = vpop.f32.mrb[0].mxu0
        %v1990 = vpop.f32.mrb[0].mxu0
        %1991 = vdwg.mxu0
        %v1992 = vmax.f32 %v1987, 0.0
        %s1993 = scalar_lea.vmem %s422, 56 [#allocation2]
        %v1994 = vld [vmem:[%s1993] sm:$0xff]
        %vm1995 = vcmp.ge.f32.partialorder %v1994, 0.0
        %vm1996 = vcmp.le.f32.partialorder %v1994, 15.0
        %vm1997 = vmand %vm1995, %vm1996
        %v1998 = vsel %vm1995, 1, 0
        %1999 = vrot.lane.b32.xlu0 %v1998, 127
        %v2000 = vpop.permute.xlu0 %1999
        %vm2001 = vcmp.ne.s32.totalorder %v2000, 0
        %vm2002 = vmand %vm1997, %vm2001
        %v2003 = vsel %vm1996, 1, 0
        %2004 = vrot.lane.b32.xlu0 %v2003, 127
        %v2005 = vpop.permute.xlu0 %2004
        %vm2006 = vcmp.ne.s32.totalorder %v2005, 0
        %vm2007 = vmand %vm2002, %vm2006
        %2008 = vrot.lane.b32.xlu0 %v1998, 126
        %v2009 = vpop.permute.xlu0 %2008
        %vm2010 = vcmp.ne.s32.totalorder %v2009, 0
        %vm2011 = vmand %vm2007, %vm2010
        %2012 = vrot.lane.b32.xlu0 %v2003, 126
        %v2013 = vpop.permute.xlu0 %2012
        %vm2014 = vcmp.ne.s32.totalorder %v2013, 0
        %vm2015 = vmand %vm2011, %vm2014
        %v2016 = vsel %vm2015, 1, 0
        %v2017 = vcvt.s32.f32 %v2016
        %2019 = vset.pattern.permute.xlu0 0
        %2020 = vperm.xlu0 %2019, %v2017
        %v2021 = vpop.permute.xlu0 %2020
        %v2023 = vmul.f32 %v1992, %v2021
        %v2024 = vpack.c.bf16 %v2023, %v2023
        %v2026 = vsel %vm500, %v1994, 0
        %2028 = vmatprep.subr.mxu0 0.0
        %2029 = vmatpush1.msra.mxu0 %v490
        %2030 = vmatprep.subr.mxu0 0.0
        %2031 = vmatpush1.msra.mxu0 0.0
        %2032 = vmatprep.subr.mxu0 0.0
        %2033 = vmatpush1.msra.mxu0 0.0
        %2034 = vmatprep.subr.mxu0 0.0
        %2035 = vmatpush1.msra.mxu0 0.0
        %2036 = vmatprep.subr.mxu0 0.0
        %2037 = vmatpush1.msra.mxu0 0.0
        %2038 = vmatprep.subr.mxu0 0.0
        %2039 = vmatpush1.msra.mxu0 0.0
        %2040 = vmatprep.subr.mxu0 0.0
        %2041 = vmatpush1.msra.mxu0 0.0
        %2042 = vmatprep.subr.mxu0 0.0
        %2043 = vmatpush1.msra.mxu0 0.0
        %2044 = vmatprep.subr.mxu0 0.0
        %2045 = vmatpush1.msra.mxu0 0.0
        %2046 = vmatprep.subr.mxu0 0.0
        %2047 = vmatpush1.msra.mxu0 0.0
        %2048 = vmatprep.subr.mxu0 0.0
        %2049 = vmatpush1.msra.mxu0 0.0
        %2050 = vmatprep.subr.mxu0 0.0
        %2051 = vmatpush1.msra.mxu0 0.0
        %2052 = vmatprep.subr.mxu0 0.0
        %2053 = vmatpush1.msra.mxu0 0.0
        %2054 = vmatprep.subr.mxu0 0.0
        %2055 = vmatpush1.msra.mxu0 0.0
        %2056 = vmatprep.subr.mxu0 0.0
        %2057 = vmatpush1.msra.mxu0 0.0
        %2058 = vmatprep.subr.mxu0 0.0
        %2059 = vmatpush1.msra.mxu0 0.0
        %2060 = vmatprep.subr.mxu0 0.0
        %2061 = vmatpush1.msra.mxu0 0.0
        %2062 = vmatprep.subr.mxu0 0.0
        %2063 = vmatpush1.msra.mxu0 0.0
        %2064 = vmatprep.subr.mxu0 0.0
        %2065 = vmatpush1.msra.mxu0 0.0
        %2066 = vmatprep.subr.mxu0 0.0
        %2067 = vmatpush1.msra.mxu0 0.0
        %2068 = vmatprep.subr.mxu0 0.0
        %2069 = vmatpush1.msra.mxu0 0.0
        %2070 = vmatprep.subr.mxu0 0.0
        %2071 = vmatpush1.msra.mxu0 0.0
        %2072 = vmatprep.subr.mxu0 0.0
        %2073 = vmatpush1.msra.mxu0 0.0
        %2074 = vmatprep.subr.mxu0 0.0
        %2075 = vmatpush1.msra.mxu0 0.0
        %2076 = vmatprep.subr.mxu0 0.0
        %2077 = vmatpush1.msra.mxu0 0.0
        %2078 = vmatprep.subr.mxu0 0.0
        %2079 = vmatpush1.msra.mxu0 0.0
        %2080 = vmatprep.subr.mxu0 0.0
        %2081 = vmatpush1.msra.mxu0 0.0
        %2082 = vmatprep.subr.mxu0 0.0
        %2083 = vmatpush1.msra.mxu0 0.0
        %2084 = vmatprep.subr.mxu0 0.0
        %2085 = vmatpush1.msra.mxu0 0.0
        %2086 = vmatprep.subr.mxu0 0.0
        %2087 = vmatpush1.msra.mxu0 0.0
        %2088 = vmatprep.subr.mxu0 0.0
        %2089 = vmatpush1.msra.mxu0 0.0
        %2090 = vmatprep.subr.mxu0 0.0
        %2091 = vmatpush1.msra.mxu0 0.0
        %2092 = vmatprep.mubr.f32.mxu0 0.0
        %2093 = vmatmul.mubr.f32.gmra.mrb[0].mxu0 %v2026
        %v2094 = vpop.f32.mrb[0].mxu0
        %v2095 = vadd.f32 0.0, %v2094
        %v2096 = vpop.f32.mrb[0].mxu0
        %2097 = vdwg.mxu0
        %2098 = vmatprep.subr.bf16.mxu0 0
        %2099 = vmatpush1.bf16.msra.mxu0 %v685
        %2100 = vmatprep.subr.bf16.mxu0 0
        %2101 = vmatpush1.bf16.msra.mxu0 %v686
        %2102 = vmatprep.subr.bf16.mxu0 0
        %2103 = vmatpush1.bf16.msra.mxu0 %v687
        %2104 = vmatprep.subr.bf16.mxu0 0
        %2105 = vmatpush1.bf16.msra.mxu0 %v688
        %2106 = vmatprep.subr.bf16.mxu0 0
        %2107 = vmatpush1.bf16.msra.mxu0 %v689
        %2108 = vmatprep.subr.bf16.mxu0 0
        %2109 = vmatpush1.bf16.msra.mxu0 %v690
        %2110 = vmatprep.subr.bf16.mxu0 0
        %2111 = vmatpush1.bf16.msra.mxu0 %v691
        %2112 = vmatprep.subr.bf16.mxu0 0
        %2113 = vmatpush1.bf16.msra.mxu0 %v692
        %2114 = vmatprep.subr.bf16.mxu0 0
        %2115 = vmatpush1.bf16.msra.mxu0 0
        %2116 = vmatprep.subr.bf16.mxu0 0
        %2117 = vmatpush1.bf16.msra.mxu0 0
        %2118 = vmatprep.subr.bf16.mxu0 0
        %2119 = vmatpush1.bf16.msra.mxu0 0
        %2120 = vmatprep.subr.bf16.mxu0 0
        %2121 = vmatpush1.bf16.msra.mxu0 0
        %2122 = vmatprep.subr.bf16.mxu0 0
        %2123 = vmatpush1.bf16.msra.mxu0 0
        %2124 = vmatprep.subr.bf16.mxu0 0
        %2125 = vmatpush1.bf16.msra.mxu0 0
        %2126 = vmatprep.subr.bf16.mxu0 0
        %2127 = vmatpush1.bf16.msra.mxu0 0
        %2128 = vmatprep.subr.bf16.mxu0 0
        %2129 = vmatpush1.bf16.msra.mxu0 0
        %2130 = vmatprep.mubr.bf16.mxu0 0
        %2131 = vmatmul.mubr.bf16.gmra.mrb[0].mxu0 %v2024
        %v2132 = vpop.f32.mrb[0].mxu0
        %v2133 = vadd.f32 %v2095, %v2132
        %v2134 = vpop.f32.mrb[0].mxu0
        %v2135 = vpop.f32.mrb[0].mxu0
        %v2136 = vpop.f32.mrb[0].mxu0
        %2137 = vdwg.mxu0
        %v2138 = vadd.f32 %v2133, %v745
        %s2139 = scalar_lea.vmem %s429, 28 [#allocation3]
        %v2140 = vld [vmem:[%s2139] sm:$0xf]
        %v2141 = vunpack.c.l.bf16 %v2140
        %v2142 = vadd.f32 %v2138, %v2141
        %v2143 = vpack.c.bf16 %v2142, %v2142
        %s2144 = scalar_lea.vmem %s467, 28 [#allocation4]
        %2145 = vst [vmem:[%s2144] sm:$0xf] %v2143
        %s2146 = sand.u32 %s213, 1
        %s2147 = scalar_lea.sflag [#allocation5], %s2146
        %s2148 = sand.u32 %s213, 1
        %s2149 = smul.addr %s2148, 32
        %s2150 = scalar_lea.vmem [#allocation4], %s2149
        // Predicated region
        $region132: #{tpu_custom_call.1} parent=122 // pred_check
          %p2151 = pneg %p223
        $region133: #{tpu_custom_call.1} parent=122 // pred_check_branch
          %2153 = sbr.rel (%p2151) target = $region135
        $region134: #{tpu_custom_call.1} parent=122 // pred_region
          %s2155 = ssub.s32 512, 512
          %2156 = vsyncadd %s2147, %s2155
          %s2157 = smul.addr %s22, 64
          %s2158 = scalar_lea.hbm %s8, %s2157
          %s2159 = sshll.u32 %s2150, 4
          %s2160 = int_to_ptr.vmem [resolvable:$true] %s2159
          %2165 = dma.vmem_to_hbm [thread:$0]  %s2160, 512, %s2158, %s2147, 64, 512, 4
        $region135: #{tpu_custom_call.1} parent=122 // pred_fallthru
          _
      $region123: #{tpu_custom_call.1} parent=5 // pred_fallthru
        _
      %p2166 = scmp.le.s32.totalorder 2, %s17
      // Predicated region
      $region136: #{tpu_custom_call.1} parent=5 // pred_check
        %p2167 = pneg %p2166
      $region137: #{tpu_custom_call.1} parent=5 // pred_check_branch
        %2169 = sbr.rel (%p2167) target = $region139
      $region138: #{tpu_custom_call.1} parent=5 // pred_region
        %s2170 = ssub.s32 %s17, 2
        // Predicated region
        $region140: #{tpu_custom_call.1} parent=138 // pred_check
          %p2171 = pneg %p229
        $region141: #{tpu_custom_call.1} parent=138 // pred_check_branch
          %2173 = sbr.rel (%p2171) target = $region143
        $region142: #{tpu_custom_call.1} parent=138 // pred_region
          %s2174 = sand.u32 %s214, 1
          %s2175 = scalar_lea.sflag [#allocation5], %s2174
          %s2176 = sand.u32 %s214, 1
          %s2177 = smul.addr %s2176, 32
          %s2178 = scalar_lea.vmem [#allocation4], %s2177
          %2179 = dma.done %s2175, 512
        $region143: #{tpu_custom_call.1} parent=138 // pred_fallthru
          _
      $region139: #{tpu_custom_call.1} parent=5 // pred_fallthru
        _
    $region6: #{tpu_custom_call.1} parent=1 // loop_footer
      %s21 = sadd.s32 1, %s17
    $region7: #{tpu_custom_call.1} parent=1 // loop_footer_branch
      %16 = sbr.rel target = $region3
    $region8: #{tpu_custom_call.1} parent=1 // loop_exit
      _
    %2180 = vsyncpa [#allocation5], 1
    %s2181 = scalar_lea.sflag [#allocation5], 1
    %2182 = vsyncpa %s2181, 1

</llo_original>
